<compile_context>
chip_gen: v7x
topology: tpu7x:2x2x1
jax: 0.10.0
libtpu: 0.0.40
codegen_flags: <defaults>
</compile_context>

<pallas_src>
import functools
import math

import numpy as np
import jax
import jax.numpy as jnp
from jax import lax
from jax.experimental import pallas as pl
from jax.experimental.pallas import tpu as pltpu

LANE = 128


# ----------------------------------------------------------------------------
# The single fused kernel.
# ----------------------------------------------------------------------------
def _treasure_net_kernel(x_ref, w_ref, b_ref, o_ref, *, cfg, lay):
    f32, bf16 = jnp.float32, jnp.bfloat16
    H = cfg['gru_hidden']
    nh = cfg['num_heads']
    nL = cfg['gru_layers']
    nA = cfg['attention_layers']
    Tp = lay['Tp']
    mm = functools.partial(jnp.einsum, preferred_element_type=f32)

    def W(name):                               # bf16 matmul weight (static slice)
        r0, nr, nc = lay['w'][name]
        return w_ref[r0:r0 + nr, 0:nc]

    def Bv(name):                              # f32 bias / LN vector, shape (1, nc)
        r0, nr, nc = lay['b'][name]
        return b_ref[r0:r0 + nr, 0:nc]

    x = x_ref[...]                             # (1, 1, T*M) bf16
    B = x.shape[0]

    # --- Conv2d + ReLU folded into ONE Toeplitz matmul (im2col done at pack) --
    feat = mm('bti,io->bto', x, W('toep')) + Bv('conv')          # (1, 1, Tp*128)
    feat = jnp.maximum(feat, 0.0)

    # Per-timestep blocks are 128-lane aligned -> free slices; stack on sublanes.
    seq = jnp.concatenate(
        [feat[:, :, t * LANE:(t + 1) * LANE] for t in range(Tp)], axis=1)  # (1,Tp,128)

    # --- 2-layer GRU (hidden=None -> zeros) -----------------------------------
    # Input projections hoisted out of the recurrence (one fused matmul/layer);
    # hidden side uses one fused 3x128-wide matmul per step; gate slices are
    # 128-lane aligned.
    for l in range(nL):
        wi, wh = W(f'gru{l}_wi'), W(f'gru{l}_wh')
        bi, bh = Bv(f'gru{l}_bi'), Bv(f'gru{l}_bh')
        gi = mm('bti,io->bto', seq.astype(bf16), wi) + bi        # (1, Tp, 384)
        h = jnp.zeros((B, 1, H), f32)
        ys = []
        for t in range(Tp):                                      # static unroll (Tp small)
            gh = mm('bti,io->bto', h.astype(bf16), wh) + bh      # (1, 1, 384)
            gt = gi[:, t:t + 1, :]
            r = jax.nn.sigmoid(gt[:, :, 0:H] + gh[:, :, 0:H])
            z = jax.nn.sigmoid(gt[:, :, LANE:LANE + H] + gh[:, :, LANE:LANE + H])
            n = jnp.tanh(gt[:, :, 2 * LANE:2 * LANE + H]
                         + r * gh[:, :, 2 * LANE:2 * LANE + H])
            h = (1.0 - z) * n + z * h
            ys.append(h)
        seq = jnp.concatenate(ys, axis=1)                        # (1, Tp, H)
        # TODO(synk): inter-layer GRU dropout (p=0.3) is identity at inference.

    # --- shared LayerNorm + multi-head self-attention -------------------------
    # Per-head Wq@Wk^T (scale + query-bias row folded) and Wv@Wo folded at pack
    # time; heads stacked on separate 128-lane blocks.
    out = seq
    ln_g, ln_b = Bv('ln_g'), Bv('ln_b')
    for a in range(nA):
        mu = jnp.mean(out, axis=-1, keepdims=True)
        var = jnp.mean(jnp.square(out - mu), axis=-1, keepdims=True)
        xn = (out - mu) * lax.rsqrt(var + 1e-5) * ln_g + ln_b    # f32
        xn_bf = xn.astype(bf16)
        t_all = mm('bti,io->bto', xn_bf, W(f'attn{a}_aqk')) + Bv(f'attn{a}_bqk')
        vo_all = mm('bti,io->bto', xn_bf, W(f'attn{a}_wvo')).astype(bf16)
        acc = jnp.zeros((B, Tp, H), f32)
        for hh in range(nh):
            th = t_all[:, :, hh * LANE:hh * LANE + H].astype(bf16)
            s = mm('bqd,bkd->bqk', th, xn_bf)                    # (1, Tp, Tp) f32
            s = s - jnp.max(s, axis=-1, keepdims=True)
            p = jnp.exp(s)
            p = p * pl.reciprocal(jnp.sum(p, axis=-1, keepdims=True), approx=True)
            acc = acc + mm('bqk,bkd->bqd', p.astype(bf16),
                           vo_all[:, :, hh * LANE:hh * LANE + H])
        out = acc + Bv(f'attn{a}_bout')                          # (1, Tp, H)
        # TODO(synk): attention dropout (p=0.3) is identity at inference.

    # --- classifier: flatten(Tp*H) @ W as ONE matmul --------------------------
    # Per-timestep weights stacked on 128-lane blocks; sum the tile-aligned
    # diagonal blocks of the result (no per-timestep matmuls, lane-dense store).
    z = mm('bti,io->bto', out.astype(bf16), W('cls'))            # (1, Tp, Tp*128)
    logits = jnp.zeros((B, 1, LANE), f32) + Bv('cls_b')
    for t in range(Tp):
        logits = logits + z[:, t:t + 1, t * LANE:(t + 1) * LANE]
    o_ref[...] = logits                                          # lane-dense (1,1,128)


# ----------------------------------------------------------------------------
# Parameter init (deterministic, synthetic, PyTorch-shaped).
# ----------------------------------------------------------------------------
def init_params(key, cfg):
    H = cfg['gru_hidden']
    C = cfg['conv_channels']
    kh, kw = cfg['kernel_size']
    st, sm = cfg['stride']
    Tp = (cfg['time_steps'] - kh) // st + 1
    Mp = (cfg['num_mels'] - kw) // sm + 1
    din0 = C * Mp
    n_cls = cfg['num_keywords'] + 1

    keys = iter(jax.random.split(key, 64))

    def w(shape, scale=0.1):
        return scale * jax.random.normal(next(keys), shape, jnp.float32)

    p = {
        'conv_w': w((C, 1, kh, kw)),
        'conv_b': w((C,)),
        'ln_g': jnp.ones((H,), jnp.float32),
        'ln_b': jnp.zeros((H,), jnp.float32),
        'cls_w': w((n_cls, Tp * H)),
        'cls_b': w((n_cls,)),
    }
    for l in range(cfg['gru_layers']):
        din = din0 if l == 0 else H
        p[f'gru{l}_wih'] = w((3 * H, din))
        p[f'gru{l}_whh'] = w((3 * H, H))
        p[f'gru{l}_bih'] = w((3 * H,))
        p[f'gru{l}_bhh'] = w((3 * H,))
    for l in range(cfg['attention_layers']):
        for nm in ('q', 'k', 'v', 'o'):
            p[f'attn{l}_w{nm}'] = w((H, H))
            p[f'attn{l}_b{nm}'] = w((H,))
    return p


# ----------------------------------------------------------------------------
# One-time conversion of PyTorch-layout params into two lane-dense slabs.
# All transposes / Toeplitz / gate-fusion / head-folding happen here, once.
# ----------------------------------------------------------------------------
def pack_params(params, cfg):
    C = cfg['conv_channels']
    kh, kw = cfg['kernel_size']
    st, sm = cfg['stride']
    T, M = cfg['time_steps'], cfg['num_mels']
    Tp = (T - kh) // st + 1
    Mp = (M - kw) // sm + 1
    H = cfg['gru_hidden']
    nh = cfg['num_heads']
    hd = H // nh
    nL, nA = cfg['gru_layers'], cfg['attention_layers']
    n_cls = cfg['num_keywords'] + 1
    Dg = C * Mp
    assert H % nh == 0 and Dg <= LANE and H <= LANE and n_cls <= LANE

    G3 = 3 * LANE
    CONV_N = Tp * LANE
    ATT_N = nh * LANE
    CLS_N = Tp * LANE
    scale = 1.0 / math.sqrt(hd)

    f = lambda a: np.asarray(a, np.float32)
    w_entries, b_entries = [], []

    # Conv2d (1->C, (kh,kw), stride (st,sm)) as a Toeplitz/im2col matrix acting
    # on the flattened (T*M) input; each output timestep is a 128-lane block
    # holding the channel-major (c*Mp + mp) flatten.  Padding lanes stay zero.
    cw, cb = f(params['conv_w']), f(params['conv_b'])
    toep = np.zeros((T * M, CONV_N), np.float32)
    bconv = np.zeros((CONV_N,), np.float32)
    for tp in range(Tp):
        for c in range(C):
            for mp in range(Mp):
                col = tp * LANE + c * Mp + mp
                bconv[col] = cb[c]
                for i in range(kh):
                    for j in range(kw):
                        toep[(tp * st + i) * M + mp * sm + j, col] = cw[c, 0, i, j]
    w_entries.append(('toep', toep))
    b_entries.append(('conv', bconv))

    # GRU: gates [r|z|n] fused; each gate padded to its own 128-lane block.
    for l in range(nL):
        din = Dg if l == 0 else H
        din_pad = LANE if l == 0 else H
        wih, whh = f(params[f'gru{l}_wih']), f(params[f'gru{l}_whh'])
        bih, bhh = f(params[f'gru{l}_bih']), f(params[f'gru{l}_bhh'])
        wi = np.zeros((din_pad, G3), np.float32)
        wh = np.zeros((H, G3), np.float32)
        bi = np.zeros((G3,), np.float32)
        bh = np.zeros((G3,), np.float32)
        for g in range(3):
            wi[:din, g * LANE:g * LANE + H] = wih[g * H:(g + 1) * H, :].T
            wh[:, g * LANE:g * LANE + H] = whh[g * H:(g + 1) * H, :].T
            bi[g * LANE:g * LANE + H] = bih[g * H:(g + 1) * H]
            bh[g * LANE:g * LANE + H] = bhh[g * H:(g + 1) * H]
        w_entries += [(f'gru{l}_wi', wi), (f'gru{l}_wh', wh)]
        b_entries += [(f'gru{l}_bi', bi), (f'gru{l}_bh', bh)]

    b_entries += [('ln_g', f(params['ln_g'])), ('ln_b', f(params['ln_b']))]

    # Attention: fold Wq@Wk^T (with 1/sqrt(hd) scale and query-bias row) and
    # Wv@Wo per head; heads on separate 128-lane blocks.  Value/output biases
    # collapse to one additive vector (softmax rows sum to 1); key bias only
    # shifts scores per-query -> softmax-invariant, dropped.
    for a in range(nA):
        wq, bq = f(params[f'attn{a}_wq']), f(params[f'attn{a}_bq'])
        wk = f(params[f'attn{a}_wk'])
        wv, bv = f(params[f'attn{a}_wv']), f(params[f'attn{a}_bv'])
        wo, bo = f(params[f'attn{a}_wo']), f(params[f'attn{a}_bo'])
        aqk = np.zeros((H, ATT_N), np.float32)
        wvo = np.zeros((H, ATT_N), np.float32)
        bqk = np.zeros((ATT_N,), np.float32)
        bout = bo.copy()
        for h in range(nh):
            Wq_h = wq[h * hd:(h + 1) * hd, :].T      # (H, hd)
            Wk_h = wk[h * hd:(h + 1) * hd, :].T      # (H, hd)
            Wv_h = wv[h * hd:(h + 1) * hd, :].T      # (H, hd)
            Wo_h = wo[:, h * hd:(h + 1) * hd].T      # (hd, H)
            aqk[:, h * LANE:h * LANE + H] = (Wq_h @ Wk_h.T) * scale
            wvo[:, h * LANE:h * LANE + H] = Wv_h @ Wo_h
            bqk[h * LANE:h * LANE + H] = (bq[h * hd:(h + 1) * hd] @ Wk_h.T) * scale
            bout = bout + bv[h * hd:(h + 1) * hd] @ Wo_h
        w_entries += [(f'attn{a}_aqk', aqk), (f'attn{a}_wvo', wvo)]
        b_entries += [(f'attn{a}_bqk', bqk), (f'attn{a}_bout', bout)]

    # Classifier: per-timestep weight blocks stacked on lanes; bias lane-padded.
    wcls, bcls = f(params['cls_w']), f(params['cls_b'])
    cls = np.zeros((H, CLS_N), np.float32)
    for t in range(Tp):
        cls[:, t * LANE:t * LANE + n_cls] = wcls[:, t * H:(t + 1) * H].T
    bcls_pad = np.zeros((LANE,), np.float32)
    bcls_pad[:n_cls] = bcls
    w_entries.append(('cls', cls))
    b_entries.append(('cls_b', bcls_pad))

    def build(entries, ncols, dtype):
        rows = sum(np.atleast_2d(a).shape[0] for _, a in entries)
        rows_pad = -(-rows // 8) * 8
        slab = np.zeros((rows_pad, ncols), np.float32)
        layout = {}
        r = 0
        for name, arr in entries:
            a2 = np.atleast_2d(arr)
            layout[name] = (r, a2.shape[0], a2.shape[1])
            slab[r:r + a2.shape[0], :a2.shape[1]] = a2
            r += a2.shape[0]
        return jnp.asarray(slab, dtype), layout

    ncols = max(CONV_N, G3, ATT_N, CLS_N, H)
    slab_w, wlay = build(w_entries, ncols, jnp.bfloat16)   # matmul weights (bf16)
    slab_b, blay = build(b_entries, ncols, jnp.float32)    # biases / LN (f32)
    return slab_w, slab_b, {'Tp': Tp, 'w': wlay, 'b': blay}


# ----------------------------------------------------------------------------
# Full TreasureNet forward (one pallas_call, batch-parallel grid).
# ----------------------------------------------------------------------------
def treasure_net_forward(x, slab_w, slab_b, cfg, lay):
    T, M = cfg['time_steps'], cfg['num_mels']
    n_cls = cfg['num_keywords'] + 1
    # PyTorch: squeeze(1) -> transpose(1,2); flatten (T,M) row-major for Toeplitz.
    x3 = jnp.transpose(x[:, 0, :, :], (0, 2, 1))          # (B, time_steps, num_mels)
    B = x3.shape[0]
    x2 = x3.reshape(B, 1, T * M).astype(jnp.bfloat16)

    out = pl.pallas_call(
        functools.partial(_treasure_net_kernel, cfg=cfg, lay=lay),
        grid=(B,),
        in_specs=[
            pl.BlockSpec((1, 1, T * M), lambda b: (b, 0, 0)),   # per-batch input
            pl.BlockSpec(slab_w.shape, lambda b: (0, 0)),       # weight slab (resident)
            pl.BlockSpec(slab_b.shape, lambda b: (0, 0)),       # bias slab (resident)
        ],
        out_specs=pl.BlockSpec((1, 1, LANE), lambda b: (b, 0, 0)),
        out_shape=jax.ShapeDtypeStruct((B, 1, LANE), jnp.float32),
        compiler_params=pltpu.CompilerParams(
            dimension_semantics=("parallel",)),                 # 2 TCs on v7x
    )(x2, slab_w, slab_b)
    return out.reshape(B, LANE)[:, :n_cls]                      # (B, num_keywords + 1)


if __name__ == "__main__":
    cfg = dict(num_keywords=1, time_steps=16, num_mels=16, conv_channels=4,
               kernel_size=(8, 4), stride=(2, 2), gru_hidden=32, gru_layers=2,
               num_heads=4, attention_layers=1)
    key = jax.random.PRNGKey(0)
    params = init_params(key, cfg)
    slab_w, slab_b, lay = pack_params(params, cfg)              # one-time repack
    x = jax.random.normal(jax.random.fold_in(key, 999),
                          (2, 1, cfg['num_mels'], cfg['time_steps']),
                          jnp.float32)
    fwd = jax.jit(functools.partial(treasure_net_forward, cfg=cfg, lay=lay))
    logits = fwd(x, slab_w, slab_b)
    jax.block_until_ready(logits)
    assert logits.shape == (2, cfg['num_keywords'] + 1)
    print("KERNEL_OK")
</pallas_src>

<mosaic_0001>
module attributes {stable_mosaic.version = 11 : i64} {
  func.func @_treasure_net_kernel(%arg0: i32, %arg1: memref<1x1x256xbf16, #tpu.memory_space<vmem>>, %arg2: memref<576x640xbf16, #tpu.memory_space<vmem>>, %arg3: memref<16x640xf32, #tpu.memory_space<vmem>>, %arg4: memref<1x1x128xf32, #tpu.memory_space<vmem>>) attributes {dimension_semantics = [#tpu.dimension_semantics<parallel>], iteration_bounds = array<i64: 2>, scalar_prefetch = 0 : i64, scratch_operands = 0 : i64, tpu.core_type = #tpu.core_type<tc>, window_params = [{transform_indices = @transform_0, window_bounds = array<i64: 1, 1, 256>}, {pipeline_mode = #tpu.pipeline_mode<synchronous>, transform_indices = @transform_1, window_bounds = array<i64: 576, 640>}, {pipeline_mode = #tpu.pipeline_mode<synchronous>, transform_indices = @transform_2, window_bounds = array<i64: 16, 640>}, {transform_indices = @transform_3, window_bounds = array<i64: 1, 1, 128>}]} {
    %c0 = arith.constant 0 : index
    %c0_0 = arith.constant 0 : index
    %c0_1 = arith.constant 0 : index
    %0 = vector.load %arg1[%c0, %c0_0, %c0_1] : memref<1x1x256xbf16, #tpu.memory_space<vmem>>, vector<1x1x256xbf16>
    %c0_2 = arith.constant 0 : index
    %c0_3 = arith.constant 0 : index
    %1 = vector.load %arg2[%c0_2, %c0_3] : memref<576x640xbf16, #tpu.memory_space<vmem>>, vector<256x640xbf16>
    "tpu.trace_start"() <{level = 10 : i32, message = "bti,io->bto"}> : () -> ()
    %cst = arith.constant dense<0.000000e+00> : vector<1x1x640xf32>
    %2 = tpu.matmul %0, %1, %cst {dimension_numbers = #tpu.dot_dimension_numbers<[2], [0], [0, 1], [1], [0, 0, 0, 1, 1, 1], [], []>} : vector<1x1x256xbf16>, vector<256x640xbf16>, vector<1x1x640xf32> -> vector<1x1x640xf32>
    "tpu.trace_stop"() : () -> ()
    %c0_4 = arith.constant 0 : index
    %c0_5 = arith.constant 0 : index
    %3 = vector.load %arg3[%c0_4, %c0_5] : memref<16x640xf32, #tpu.memory_space<vmem>>, vector<1x640xf32>
    %4 = vector.shape_cast %3 : vector<1x640xf32> to vector<1x1x640xf32>
    %5 = arith.addf %2, %4 : vector<1x1x640xf32>
    %cst_6 = arith.constant 0.000000e+00 : f32
    %6 = vector.broadcast %cst_6 : f32 to vector<1x1x640xf32>
    %7 = arith.maximumf %5, %6 : vector<1x1x640xf32>
    %8 = vector.extract_strided_slice %7 {offsets = [0, 0, 0], sizes = [1, 1, 128], strides = [1, 1, 1]} : vector<1x1x640xf32> to vector<1x1x128xf32>
    %9 = vector.extract_strided_slice %7 {offsets = [0, 0, 128], sizes = [1, 1, 128], strides = [1, 1, 1]} : vector<1x1x640xf32> to vector<1x1x128xf32>
    %10 = vector.extract_strided_slice %7 {offsets = [0, 0, 256], sizes = [1, 1, 128], strides = [1, 1, 1]} : vector<1x1x640xf32> to vector<1x1x128xf32>
    %11 = vector.extract_strided_slice %7 {offsets = [0, 0, 384], sizes = [1, 1, 128], strides = [1, 1, 1]} : vector<1x1x640xf32> to vector<1x1x128xf32>
    %12 = vector.extract_strided_slice %7 {offsets = [0, 0, 512], sizes = [1, 1, 128], strides = [1, 1, 1]} : vector<1x1x640xf32> to vector<1x1x128xf32>
    %13 = tpu.concatenate %8, %9, %10, %11, %12 in 1 : vector<1x1x128xf32>, vector<1x1x128xf32>, vector<1x1x128xf32>, vector<1x1x128xf32>, vector<1x1x128xf32> -> vector<1x5x128xf32>
    %c256 = arith.constant 256 : index
    %c0_7 = arith.constant 0 : index
    %14 = vector.load %arg2[%c256, %c0_7] : memref<576x640xbf16, #tpu.memory_space<vmem>>, vector<128x384xbf16>
    %c384 = arith.constant 384 : index
    %c0_8 = arith.constant 0 : index
    %15 = vector.load %arg2[%c384, %c0_8] : memref<576x640xbf16, #tpu.memory_space<vmem>>, vector<32x384xbf16>
    %c1 = arith.constant 1 : index
    %c0_9 = arith.constant 0 : index
    %16 = vector.load %arg3[%c1, %c0_9] : memref<16x640xf32, #tpu.memory_space<vmem>>, vector<1x384xf32>
    %c2 = arith.constant 2 : index
    %c0_10 = arith.constant 0 : index
    %17 = vector.load %arg3[%c2, %c0_10] : memref<16x640xf32, #tpu.memory_space<vmem>>, vector<1x384xf32>
    %18 = arith.truncf %13 : vector<1x5x128xf32> to vector<1x5x128xbf16>
    "tpu.trace_start"() <{level = 10 : i32, message = "bti,io->bto"}> : () -> ()
    %cst_11 = arith.constant dense<0.000000e+00> : vector<1x5x384xf32>
    %19 = tpu.matmul %18, %14, %cst_11 {dimension_numbers = #tpu.dot_dimension_numbers<[2], [0], [0, 1], [1], [0, 0, 0, 1, 1, 1], [], []>} : vector<1x5x128xbf16>, vector<128x384xbf16>, vector<1x5x384xf32> -> vector<1x5x384xf32>
    "tpu.trace_stop"() : () -> ()
    %20 = vector.shape_cast %16 : vector<1x384xf32> to vector<1x1x384xf32>
    %21 = vector.broadcast %20 : vector<1x1x384xf32> to vector<1x5x384xf32>
    %22 = arith.addf %19, %21 : vector<1x5x384xf32>
    %cst_12 = arith.constant 0.000000e+00 : f32
    %23 = vector.broadcast %cst_12 : f32 to vector<1x1x32xf32>
    %24 = arith.truncf %23 : vector<1x1x32xf32> to vector<1x1x32xbf16>
    "tpu.trace_start"() <{level = 10 : i32, message = "bti,io->bto"}> : () -> ()
    %cst_13 = arith.constant dense<0.000000e+00> : vector<1x1x384xf32>
    %25 = tpu.matmul %24, %15, %cst_13 {dimension_numbers = #tpu.dot_dimension_numbers<[2], [0], [0, 1], [1], [0, 0, 0, 1, 1, 1], [], []>} : vector<1x1x32xbf16>, vector<32x384xbf16>, vector<1x1x384xf32> -> vector<1x1x384xf32>
    "tpu.trace_stop"() : () -> ()
    %26 = vector.shape_cast %17 : vector<1x384xf32> to vector<1x1x384xf32>
    %27 = arith.addf %25, %26 : vector<1x1x384xf32>
    %28 = vector.extract_strided_slice %22 {offsets = [0, 0, 0], sizes = [1, 1, 384], strides = [1, 1, 1]} : vector<1x5x384xf32> to vector<1x1x384xf32>
    %29 = vector.extract_strided_slice %28 {offsets = [0, 0, 0], sizes = [1, 1, 32], strides = [1, 1, 1]} : vector<1x1x384xf32> to vector<1x1x32xf32>
    %30 = vector.extract_strided_slice %27 {offsets = [0, 0, 0], sizes = [1, 1, 32], strides = [1, 1, 1]} : vector<1x1x384xf32> to vector<1x1x32xf32>
    %31 = arith.addf %29, %30 : vector<1x1x32xf32>
    %32 = arith.negf %31 : vector<1x1x32xf32>
    %33 = math.exp %32 : vector<1x1x32xf32>
    %cst_14 = arith.constant 1.000000e+00 : f32
    %34 = vector.broadcast %cst_14 : f32 to vector<1x1x32xf32>
    %35 = arith.addf %34, %33 : vector<1x1x32xf32>
    %36 = arith.divf %34, %35 : vector<1x1x32xf32>
    %37 = vector.extract_strided_slice %28 {offsets = [0, 0, 128], sizes = [1, 1, 32], strides = [1, 1, 1]} : vector<1x1x384xf32> to vector<1x1x32xf32>
    %38 = vector.extract_strided_slice %27 {offsets = [0, 0, 128], sizes = [1, 1, 32], strides = [1, 1, 1]} : vector<1x1x384xf32> to vector<1x1x32xf32>
    %39 = arith.addf %37, %38 : vector<1x1x32xf32>
    %40 = arith.negf %39 : vector<1x1x32xf32>
    %41 = math.exp %40 : vector<1x1x32xf32>
    %cst_15 = arith.constant 1.000000e+00 : f32
    %42 = vector.broadcast %cst_15 : f32 to vector<1x1x32xf32>
    %43 = arith.addf %42, %41 : vector<1x1x32xf32>
    %44 = arith.divf %42, %43 : vector<1x1x32xf32>
    %45 = vector.extract_strided_slice %28 {offsets = [0, 0, 256], sizes = [1, 1, 32], strides = [1, 1, 1]} : vector<1x1x384xf32> to vector<1x1x32xf32>
    %46 = vector.extract_strided_slice %27 {offsets = [0, 0, 256], sizes = [1, 1, 32], strides = [1, 1, 1]} : vector<1x1x384xf32> to vector<1x1x32xf32>
    %47 = arith.mulf %36, %46 : vector<1x1x32xf32>
    %48 = arith.addf %45, %47 : vector<1x1x32xf32>
    %49 = math.tanh %48 : vector<1x1x32xf32>
    %cst_16 = arith.constant 1.000000e+00 : f32
    %50 = vector.broadcast %cst_16 : f32 to vector<1x1x32xf32>
    %51 = arith.subf %50, %44 : vector<1x1x32xf32>
    %52 = arith.mulf %51, %49 : vector<1x1x32xf32>
    %53 = arith.mulf %44, %23 : vector<1x1x32xf32>
    %54 = arith.addf %52, %53 : vector<1x1x32xf32>
    %55 = arith.truncf %54 : vector<1x1x32xf32> to vector<1x1x32xbf16>
    "tpu.trace_start"() <{level = 10 : i32, message = "bti,io->bto"}> : () -> ()
    %cst_17 = arith.constant dense<0.000000e+00> : vector<1x1x384xf32>
    %56 = tpu.matmul %55, %15, %cst_17 {dimension_numbers = #tpu.dot_dimension_numbers<[2], [0], [0, 1], [1], [0, 0, 0, 1, 1, 1], [], []>} : vector<1x1x32xbf16>, vector<32x384xbf16>, vector<1x1x384xf32> -> vector<1x1x384xf32>
    "tpu.trace_stop"() : () -> ()
    %57 = vector.shape_cast %17 : vector<1x384xf32> to vector<1x1x384xf32>
    %58 = arith.addf %56, %57 : vector<1x1x384xf32>
    %59 = vector.extract_strided_slice %22 {offsets = [0, 1, 0], sizes = [1, 1, 384], strides = [1, 1, 1]} : vector<1x5x384xf32> to vector<1x1x384xf32>
    %60 = vector.extract_strided_slice %59 {offsets = [0, 0, 0], sizes = [1, 1, 32], strides = [1, 1, 1]} : vector<1x1x384xf32> to vector<1x1x32xf32>
    %61 = vector.extract_strided_slice %58 {offsets = [0, 0, 0], sizes = [1, 1, 32], strides = [1, 1, 1]} : vector<1x1x384xf32> to vector<1x1x32xf32>
    %62 = arith.addf %60, %61 : vector<1x1x32xf32>
    %63 = arith.negf %62 : vector<1x1x32xf32>
    %64 = math.exp %63 : vector<1x1x32xf32>
    %cst_18 = arith.constant 1.000000e+00 : f32
    %65 = vector.broadcast %cst_18 : f32 to vector<1x1x32xf32>
    %66 = arith.addf %65, %64 : vector<1x1x32xf32>
    %67 = arith.divf %65, %66 : vector<1x1x32xf32>
    %68 = vector.extract_strided_slice %59 {offsets = [0, 0, 128], sizes = [1, 1, 32], strides = [1, 1, 1]} : vector<1x1x384xf32> to vector<1x1x32xf32>
    %69 = vector.extract_strided_slice %58 {offsets = [0, 0, 128], sizes = [1, 1, 32], strides = [1, 1, 1]} : vector<1x1x384xf32> to vector<1x1x32xf32>
    %70 = arith.addf %68, %69 : vector<1x1x32xf32>
    %71 = arith.negf %70 : vector<1x1x32xf32>
    %72 = math.exp %71 : vector<1x1x32xf32>
    %cst_19 = arith.constant 1.000000e+00 : f32
    %73 = vector.broadcast %cst_19 : f32 to vector<1x1x32xf32>
    %74 = arith.addf %73, %72 : vector<1x1x32xf32>
    %75 = arith.divf %73, %74 : vector<1x1x32xf32>
    %76 = vector.extract_strided_slice %59 {offsets = [0, 0, 256], sizes = [1, 1, 32], strides = [1, 1, 1]} : vector<1x1x384xf32> to vector<1x1x32xf32>
    %77 = vector.extract_strided_slice %58 {offsets = [0, 0, 256], sizes = [1, 1, 32], strides = [1, 1, 1]} : vector<1x1x384xf32> to vector<1x1x32xf32>
    %78 = arith.mulf %67, %77 : vector<1x1x32xf32>
    %79 = arith.addf %76, %78 : vector<1x1x32xf32>
    %80 = math.tanh %79 : vector<1x1x32xf32>
    %cst_20 = arith.constant 1.000000e+00 : f32
    %81 = vector.broadcast %cst_20 : f32 to vector<1x1x32xf32>
    %82 = arith.subf %81, %75 : vector<1x1x32xf32>
    %83 = arith.mulf %82, %80 : vector<1x1x32xf32>
    %84 = arith.mulf %75, %54 : vector<1x1x32xf32>
    %85 = arith.addf %83, %84 : vector<1x1x32xf32>
    %86 = arith.truncf %85 : vector<1x1x32xf32> to vector<1x1x32xbf16>
    "tpu.trace_start"() <{level = 10 : i32, message = "bti,io->bto"}> : () -> ()
    %cst_21 = arith.constant dense<0.000000e+00> : vector<1x1x384xf32>
    %87 = tpu.matmul %86, %15, %cst_21 {dimension_numbers = #tpu.dot_dimension_numbers<[2], [0], [0, 1], [1], [0, 0, 0, 1, 1, 1], [], []>} : vector<1x1x32xbf16>, vector<32x384xbf16>, vector<1x1x384xf32> -> vector<1x1x384xf32>
    "tpu.trace_stop"() : () -> ()
    %88 = vector.shape_cast %17 : vector<1x384xf32> to vector<1x1x384xf32>
    %89 = arith.addf %87, %88 : vector<1x1x384xf32>
    %90 = vector.extract_strided_slice %22 {offsets = [0, 2, 0], sizes = [1, 1, 384], strides = [1, 1, 1]} : vector<1x5x384xf32> to vector<1x1x384xf32>
    %91 = vector.extract_strided_slice %90 {offsets = [0, 0, 0], sizes = [1, 1, 32], strides = [1, 1, 1]} : vector<1x1x384xf32> to vector<1x1x32xf32>
    %92 = vector.extract_strided_slice %89 {offsets = [0, 0, 0], sizes = [1, 1, 32], strides = [1, 1, 1]} : vector<1x1x384xf32> to vector<1x1x32xf32>
    %93 = arith.addf %91, %92 : vector<1x1x32xf32>
    %94 = arith.negf %93 : vector<1x1x32xf32>
    %95 = math.exp %94 : vector<1x1x32xf32>
    %cst_22 = arith.constant 1.000000e+00 : f32
    %96 = vector.broadcast %cst_22 : f32 to vector<1x1x32xf32>
    %97 = arith.addf %96, %95 : vector<1x1x32xf32>
    %98 = arith.divf %96, %97 : vector<1x1x32xf32>
    %99 = vector.extract_strided_slice %90 {offsets = [0, 0, 128], sizes = [1, 1, 32], strides = [1, 1, 1]} : vector<1x1x384xf32> to vector<1x1x32xf32>
    %100 = vector.extract_strided_slice %89 {offsets = [0, 0, 128], sizes = [1, 1, 32], strides = [1, 1, 1]} : vector<1x1x384xf32> to vector<1x1x32xf32>
    %101 = arith.addf %99, %100 : vector<1x1x32xf32>
    %102 = arith.negf %101 : vector<1x1x32xf32>
    %103 = math.exp %102 : vector<1x1x32xf32>
    %cst_23 = arith.constant 1.000000e+00 : f32
    %104 = vector.broadcast %cst_23 : f32 to vector<1x1x32xf32>
    %105 = arith.addf %104, %103 : vector<1x1x32xf32>
    %106 = arith.divf %104, %105 : vector<1x1x32xf32>
    %107 = vector.extract_strided_slice %90 {offsets = [0, 0, 256], sizes = [1, 1, 32], strides = [1, 1, 1]} : vector<1x1x384xf32> to vector<1x1x32xf32>
    %108 = vector.extract_strided_slice %89 {offsets = [0, 0, 256], sizes = [1, 1, 32], strides = [1, 1, 1]} : vector<1x1x384xf32> to vector<1x1x32xf32>
    %109 = arith.mulf %98, %108 : vector<1x1x32xf32>
    %110 = arith.addf %107, %109 : vector<1x1x32xf32>
    %111 = math.tanh %110 : vector<1x1x32xf32>
    %cst_24 = arith.constant 1.000000e+00 : f32
    %112 = vector.broadcast %cst_24 : f32 to vector<1x1x32xf32>
    %113 = arith.subf %112, %106 : vector<1x1x32xf32>
    %114 = arith.mulf %113, %111 : vector<1x1x32xf32>
    %115 = arith.mulf %106, %85 : vector<1x1x32xf32>
    %116 = arith.addf %114, %115 : vector<1x1x32xf32>
    %117 = arith.truncf %116 : vector<1x1x32xf32> to vector<1x1x32xbf16>
    "tpu.trace_start"() <{level = 10 : i32, message = "bti,io->bto"}> : () -> ()
    %cst_25 = arith.constant dense<0.000000e+00> : vector<1x1x384xf32>
    %118 = tpu.matmul %117, %15, %cst_25 {dimension_numbers = #tpu.dot_dimension_numbers<[2], [0], [0, 1], [1], [0, 0, 0, 1, 1, 1], [], []>} : vector<1x1x32xbf16>, vector<32x384xbf16>, vector<1x1x384xf32> -> vector<1x1x384xf32>
    "tpu.trace_stop"() : () -> ()
    %119 = vector.shape_cast %17 : vector<1x384xf32> to vector<1x1x384xf32>
    %120 = arith.addf %118, %119 : vector<1x1x384xf32>
    %121 = vector.extract_strided_slice %22 {offsets = [0, 3, 0], sizes = [1, 1, 384], strides = [1, 1, 1]} : vector<1x5x384xf32> to vector<1x1x384xf32>
    %122 = vector.extract_strided_slice %121 {offsets = [0, 0, 0], sizes = [1, 1, 32], strides = [1, 1, 1]} : vector<1x1x384xf32> to vector<1x1x32xf32>
    %123 = vector.extract_strided_slice %120 {offsets = [0, 0, 0], sizes = [1, 1, 32], strides = [1, 1, 1]} : vector<1x1x384xf32> to vector<1x1x32xf32>
    %124 = arith.addf %122, %123 : vector<1x1x32xf32>
    %125 = arith.negf %124 : vector<1x1x32xf32>
    %126 = math.exp %125 : vector<1x1x32xf32>
    %cst_26 = arith.constant 1.000000e+00 : f32
    %127 = vector.broadcast %cst_26 : f32 to vector<1x1x32xf32>
    %128 = arith.addf %127, %126 : vector<1x1x32xf32>
    %129 = arith.divf %127, %128 : vector<1x1x32xf32>
    %130 = vector.extract_strided_slice %121 {offsets = [0, 0, 128], sizes = [1, 1, 32], strides = [1, 1, 1]} : vector<1x1x384xf32> to vector<1x1x32xf32>
    %131 = vector.extract_strided_slice %120 {offsets = [0, 0, 128], sizes = [1, 1, 32], strides = [1, 1, 1]} : vector<1x1x384xf32> to vector<1x1x32xf32>
    %132 = arith.addf %130, %131 : vector<1x1x32xf32>
    %133 = arith.negf %132 : vector<1x1x32xf32>
    %134 = math.exp %133 : vector<1x1x32xf32>
    %cst_27 = arith.constant 1.000000e+00 : f32
    %135 = vector.broadcast %cst_27 : f32 to vector<1x1x32xf32>
    %136 = arith.addf %135, %134 : vector<1x1x32xf32>
    %137 = arith.divf %135, %136 : vector<1x1x32xf32>
    %138 = vector.extract_strided_slice %121 {offsets = [0, 0, 256], sizes = [1, 1, 32], strides = [1, 1, 1]} : vector<1x1x384xf32> to vector<1x1x32xf32>
    %139 = vector.extract_strided_slice %120 {offsets = [0, 0, 256], sizes = [1, 1, 32], strides = [1, 1, 1]} : vector<1x1x384xf32> to vector<1x1x32xf32>
    %140 = arith.mulf %129, %139 : vector<1x1x32xf32>
    %141 = arith.addf %138, %140 : vector<1x1x32xf32>
    %142 = math.tanh %141 : vector<1x1x32xf32>
    %cst_28 = arith.constant 1.000000e+00 : f32
    %143 = vector.broadcast %cst_28 : f32 to vector<1x1x32xf32>
    %144 = arith.subf %143, %137 : vector<1x1x32xf32>
    %145 = arith.mulf %144, %142 : vector<1x1x32xf32>
    %146 = arith.mulf %137, %116 : vector<1x1x32xf32>
    %147 = arith.addf %145, %146 : vector<1x1x32xf32>
    %148 = arith.truncf %147 : vector<1x1x32xf32> to vector<1x1x32xbf16>
    "tpu.trace_start"() <{level = 10 : i32, message = "bti,io->bto"}> : () -> ()
    %cst_29 = arith.constant dense<0.000000e+00> : vector<1x1x384xf32>
    %149 = tpu.matmul %148, %15, %cst_29 {dimension_numbers = #tpu.dot_dimension_numbers<[2], [0], [0, 1], [1], [0, 0, 0, 1, 1, 1], [], []>} : vector<1x1x32xbf16>, vector<32x384xbf16>, vector<1x1x384xf32> -> vector<1x1x384xf32>
    "tpu.trace_stop"() : () -> ()
    %150 = vector.shape_cast %17 : vector<1x384xf32> to vector<1x1x384xf32>
    %151 = arith.addf %149, %150 : vector<1x1x384xf32>
    %152 = vector.extract_strided_slice %22 {offsets = [0, 4, 0], sizes = [1, 1, 384], strides = [1, 1, 1]} : vector<1x5x384xf32> to vector<1x1x384xf32>
    %153 = vector.extract_strided_slice %152 {offsets = [0, 0, 0], sizes = [1, 1, 32], strides = [1, 1, 1]} : vector<1x1x384xf32> to vector<1x1x32xf32>
    %154 = vector.extract_strided_slice %151 {offsets = [0, 0, 0], sizes = [1, 1, 32], strides = [1, 1, 1]} : vector<1x1x384xf32> to vector<1x1x32xf32>
    %155 = arith.addf %153, %154 : vector<1x1x32xf32>
    %156 = arith.negf %155 : vector<1x1x32xf32>
    %157 = math.exp %156 : vector<1x1x32xf32>
    %cst_30 = arith.constant 1.000000e+00 : f32
    %158 = vector.broadcast %cst_30 : f32 to vector<1x1x32xf32>
    %159 = arith.addf %158, %157 : vector<1x1x32xf32>
    %160 = arith.divf %158, %159 : vector<1x1x32xf32>
    %161 = vector.extract_strided_slice %152 {offsets = [0, 0, 128], sizes = [1, 1, 32], strides = [1, 1, 1]} : vector<1x1x384xf32> to vector<1x1x32xf32>
    %162 = vector.extract_strided_slice %151 {offsets = [0, 0, 128], sizes = [1, 1, 32], strides = [1, 1, 1]} : vector<1x1x384xf32> to vector<1x1x32xf32>
    %163 = arith.addf %161, %162 : vector<1x1x32xf32>
    %164 = arith.negf %163 : vector<1x1x32xf32>
    %165 = math.exp %164 : vector<1x1x32xf32>
    %cst_31 = arith.constant 1.000000e+00 : f32
    %166 = vector.broadcast %cst_31 : f32 to vector<1x1x32xf32>
    %167 = arith.addf %166, %165 : vector<1x1x32xf32>
    %168 = arith.divf %166, %167 : vector<1x1x32xf32>
    %169 = vector.extract_strided_slice %152 {offsets = [0, 0, 256], sizes = [1, 1, 32], strides = [1, 1, 1]} : vector<1x1x384xf32> to vector<1x1x32xf32>
    %170 = vector.extract_strided_slice %151 {offsets = [0, 0, 256], sizes = [1, 1, 32], strides = [1, 1, 1]} : vector<1x1x384xf32> to vector<1x1x32xf32>
    %171 = arith.mulf %160, %170 : vector<1x1x32xf32>
    %172 = arith.addf %169, %171 : vector<1x1x32xf32>
    %173 = math.tanh %172 : vector<1x1x32xf32>
    %cst_32 = arith.constant 1.000000e+00 : f32
    %174 = vector.broadcast %cst_32 : f32 to vector<1x1x32xf32>
    %175 = arith.subf %174, %168 : vector<1x1x32xf32>
    %176 = arith.mulf %175, %173 : vector<1x1x32xf32>
    %177 = arith.mulf %168, %147 : vector<1x1x32xf32>
    %178 = arith.addf %176, %177 : vector<1x1x32xf32>
    %179 = tpu.concatenate %54, %85, %116, %147, %178 in 1 : vector<1x1x32xf32>, vector<1x1x32xf32>, vector<1x1x32xf32>, vector<1x1x32xf32>, vector<1x1x32xf32> -> vector<1x5x32xf32>
    %c416 = arith.constant 416 : index
    %c0_33 = arith.constant 0 : index
    %180 = vector.load %arg2[%c416, %c0_33] : memref<576x640xbf16, #tpu.memory_space<vmem>>, vector<32x384xbf16>
    %c448 = arith.constant 448 : index
    %c0_34 = arith.constant 0 : index
    %181 = vector.load %arg2[%c448, %c0_34] : memref<576x640xbf16, #tpu.memory_space<vmem>>, vector<32x384xbf16>
    %c3 = arith.constant 3 : index
    %c0_35 = arith.constant 0 : index
    %182 = vector.load %arg3[%c3, %c0_35] : memref<16x640xf32, #tpu.memory_space<vmem>>, vector<1x384xf32>
    %c4 = arith.constant 4 : index
    %c0_36 = arith.constant 0 : index
    %183 = vector.load %arg3[%c4, %c0_36] : memref<16x640xf32, #tpu.memory_space<vmem>>, vector<1x384xf32>
    %184 = arith.truncf %179 : vector<1x5x32xf32> to vector<1x5x32xbf16>
    "tpu.trace_start"() <{level = 10 : i32, message = "bti,io->bto"}> : () -> ()
    %cst_37 = arith.constant dense<0.000000e+00> : vector<1x5x384xf32>
    %185 = tpu.matmul %184, %180, %cst_37 {dimension_numbers = #tpu.dot_dimension_numbers<[2], [0], [0, 1], [1], [0, 0, 0, 1, 1, 1], [], []>} : vector<1x5x32xbf16>, vector<32x384xbf16>, vector<1x5x384xf32> -> vector<1x5x384xf32>
    "tpu.trace_stop"() : () -> ()
    %186 = vector.shape_cast %182 : vector<1x384xf32> to vector<1x1x384xf32>
    %187 = vector.broadcast %186 : vector<1x1x384xf32> to vector<1x5x384xf32>
    %188 = arith.addf %185, %187 : vector<1x5x384xf32>
    %cst_38 = arith.constant 0.000000e+00 : f32
    %189 = vector.broadcast %cst_38 : f32 to vector<1x1x32xf32>
    %190 = arith.truncf %189 : vector<1x1x32xf32> to vector<1x1x32xbf16>
    "tpu.trace_start"() <{level = 10 : i32, message = "bti,io->bto"}> : () -> ()
    %cst_39 = arith.constant dense<0.000000e+00> : vector<1x1x384xf32>
    %191 = tpu.matmul %190, %181, %cst_39 {dimension_numbers = #tpu.dot_dimension_numbers<[2], [0], [0, 1], [1], [0, 0, 0, 1, 1, 1], [], []>} : vector<1x1x32xbf16>, vector<32x384xbf16>, vector<1x1x384xf32> -> vector<1x1x384xf32>
    "tpu.trace_stop"() : () -> ()
    %192 = vector.shape_cast %183 : vector<1x384xf32> to vector<1x1x384xf32>
    %193 = arith.addf %191, %192 : vector<1x1x384xf32>
    %194 = vector.extract_strided_slice %188 {offsets = [0, 0, 0], sizes = [1, 1, 384], strides = [1, 1, 1]} : vector<1x5x384xf32> to vector<1x1x384xf32>
    %195 = vector.extract_strided_slice %194 {offsets = [0, 0, 0], sizes = [1, 1, 32], strides = [1, 1, 1]} : vector<1x1x384xf32> to vector<1x1x32xf32>
    %196 = vector.extract_strided_slice %193 {offsets = [0, 0, 0], sizes = [1, 1, 32], strides = [1, 1, 1]} : vector<1x1x384xf32> to vector<1x1x32xf32>
    %197 = arith.addf %195, %196 : vector<1x1x32xf32>
    %198 = arith.negf %197 : vector<1x1x32xf32>
    %199 = math.exp %198 : vector<1x1x32xf32>
    %cst_40 = arith.constant 1.000000e+00 : f32
    %200 = vector.broadcast %cst_40 : f32 to vector<1x1x32xf32>
    %201 = arith.addf %200, %199 : vector<1x1x32xf32>
    %202 = arith.divf %200, %201 : vector<1x1x32xf32>
    %203 = vector.extract_strided_slice %194 {offsets = [0, 0, 128], sizes = [1, 1, 32], strides = [1, 1, 1]} : vector<1x1x384xf32> to vector<1x1x32xf32>
    %204 = vector.extract_strided_slice %193 {offsets = [0, 0, 128], sizes = [1, 1, 32], strides = [1, 1, 1]} : vector<1x1x384xf32> to vector<1x1x32xf32>
    %205 = arith.addf %203, %204 : vector<1x1x32xf32>
    %206 = arith.negf %205 : vector<1x1x32xf32>
    %207 = math.exp %206 : vector<1x1x32xf32>
    %cst_41 = arith.constant 1.000000e+00 : f32
    %208 = vector.broadcast %cst_41 : f32 to vector<1x1x32xf32>
    %209 = arith.addf %208, %207 : vector<1x1x32xf32>
    %210 = arith.divf %208, %209 : vector<1x1x32xf32>
    %211 = vector.extract_strided_slice %194 {offsets = [0, 0, 256], sizes = [1, 1, 32], strides = [1, 1, 1]} : vector<1x1x384xf32> to vector<1x1x32xf32>
    %212 = vector.extract_strided_slice %193 {offsets = [0, 0, 256], sizes = [1, 1, 32], strides = [1, 1, 1]} : vector<1x1x384xf32> to vector<1x1x32xf32>
    %213 = arith.mulf %202, %212 : vector<1x1x32xf32>
    %214 = arith.addf %211, %213 : vector<1x1x32xf32>
    %215 = math.tanh %214 : vector<1x1x32xf32>
    %cst_42 = arith.constant 1.000000e+00 : f32
    %216 = vector.broadcast %cst_42 : f32 to vector<1x1x32xf32>
    %217 = arith.subf %216, %210 : vector<1x1x32xf32>
    %218 = arith.mulf %217, %215 : vector<1x1x32xf32>
    %219 = arith.mulf %210, %189 : vector<1x1x32xf32>
    %220 = arith.addf %218, %219 : vector<1x1x32xf32>
    %221 = arith.truncf %220 : vector<1x1x32xf32> to vector<1x1x32xbf16>
    "tpu.trace_start"() <{level = 10 : i32, message = "bti,io->bto"}> : () -> ()
    %cst_43 = arith.constant dense<0.000000e+00> : vector<1x1x384xf32>
    %222 = tpu.matmul %221, %181, %cst_43 {dimension_numbers = #tpu.dot_dimension_numbers<[2], [0], [0, 1], [1], [0, 0, 0, 1, 1, 1], [], []>} : vector<1x1x32xbf16>, vector<32x384xbf16>, vector<1x1x384xf32> -> vector<1x1x384xf32>
    "tpu.trace_stop"() : () -> ()
    %223 = vector.shape_cast %183 : vector<1x384xf32> to vector<1x1x384xf32>
    %224 = arith.addf %222, %223 : vector<1x1x384xf32>
    %225 = vector.extract_strided_slice %188 {offsets = [0, 1, 0], sizes = [1, 1, 384], strides = [1, 1, 1]} : vector<1x5x384xf32> to vector<1x1x384xf32>
    %226 = vector.extract_strided_slice %225 {offsets = [0, 0, 0], sizes = [1, 1, 32], strides = [1, 1, 1]} : vector<1x1x384xf32> to vector<1x1x32xf32>
    %227 = vector.extract_strided_slice %224 {offsets = [0, 0, 0], sizes = [1, 1, 32], strides = [1, 1, 1]} : vector<1x1x384xf32> to vector<1x1x32xf32>
    %228 = arith.addf %226, %227 : vector<1x1x32xf32>
    %229 = arith.negf %228 : vector<1x1x32xf32>
    %230 = math.exp %229 : vector<1x1x32xf32>
    %cst_44 = arith.constant 1.000000e+00 : f32
    %231 = vector.broadcast %cst_44 : f32 to vector<1x1x32xf32>
    %232 = arith.addf %231, %230 : vector<1x1x32xf32>
    %233 = arith.divf %231, %232 : vector<1x1x32xf32>
    %234 = vector.extract_strided_slice %225 {offsets = [0, 0, 128], sizes = [1, 1, 32], strides = [1, 1, 1]} : vector<1x1x384xf32> to vector<1x1x32xf32>
    %235 = vector.extract_strided_slice %224 {offsets = [0, 0, 128], sizes = [1, 1, 32], strides = [1, 1, 1]} : vector<1x1x384xf32> to vector<1x1x32xf32>
    %236 = arith.addf %234, %235 : vector<1x1x32xf32>
    %237 = arith.negf %236 : vector<1x1x32xf32>
    %238 = math.exp %237 : vector<1x1x32xf32>
    %cst_45 = arith.constant 1.000000e+00 : f32
    %239 = vector.broadcast %cst_45 : f32 to vector<1x1x32xf32>
    %240 = arith.addf %239, %238 : vector<1x1x32xf32>
    %241 = arith.divf %239, %240 : vector<1x1x32xf32>
    %242 = vector.extract_strided_slice %225 {offsets = [0, 0, 256], sizes = [1, 1, 32], strides = [1, 1, 1]} : vector<1x1x384xf32> to vector<1x1x32xf32>
    %243 = vector.extract_strided_slice %224 {offsets = [0, 0, 256], sizes = [1, 1, 32], strides = [1, 1, 1]} : vector<1x1x384xf32> to vector<1x1x32xf32>
    %244 = arith.mulf %233, %243 : vector<1x1x32xf32>
    %245 = arith.addf %242, %244 : vector<1x1x32xf32>
    %246 = math.tanh %245 : vector<1x1x32xf32>
    %cst_46 = arith.constant 1.000000e+00 : f32
    %247 = vector.broadcast %cst_46 : f32 to vector<1x1x32xf32>
    %248 = arith.subf %247, %241 : vector<1x1x32xf32>
    %249 = arith.mulf %248, %246 : vector<1x1x32xf32>
    %250 = arith.mulf %241, %220 : vector<1x1x32xf32>
    %251 = arith.addf %249, %250 : vector<1x1x32xf32>
    %252 = arith.truncf %251 : vector<1x1x32xf32> to vector<1x1x32xbf16>
    "tpu.trace_start"() <{level = 10 : i32, message = "bti,io->bto"}> : () -> ()
    %cst_47 = arith.constant dense<0.000000e+00> : vector<1x1x384xf32>
    %253 = tpu.matmul %252, %181, %cst_47 {dimension_numbers = #tpu.dot_dimension_numbers<[2], [0], [0, 1], [1], [0, 0, 0, 1, 1, 1], [], []>} : vector<1x1x32xbf16>, vector<32x384xbf16>, vector<1x1x384xf32> -> vector<1x1x384xf32>
    "tpu.trace_stop"() : () -> ()
    %254 = vector.shape_cast %183 : vector<1x384xf32> to vector<1x1x384xf32>
    %255 = arith.addf %253, %254 : vector<1x1x384xf32>
    %256 = vector.extract_strided_slice %188 {offsets = [0, 2, 0], sizes = [1, 1, 384], strides = [1, 1, 1]} : vector<1x5x384xf32> to vector<1x1x384xf32>
    %257 = vector.extract_strided_slice %256 {offsets = [0, 0, 0], sizes = [1, 1, 32], strides = [1, 1, 1]} : vector<1x1x384xf32> to vector<1x1x32xf32>
    %258 = vector.extract_strided_slice %255 {offsets = [0, 0, 0], sizes = [1, 1, 32], strides = [1, 1, 1]} : vector<1x1x384xf32> to vector<1x1x32xf32>
    %259 = arith.addf %257, %258 : vector<1x1x32xf32>
    %260 = arith.negf %259 : vector<1x1x32xf32>
    %261 = math.exp %260 : vector<1x1x32xf32>
    %cst_48 = arith.constant 1.000000e+00 : f32
    %262 = vector.broadcast %cst_48 : f32 to vector<1x1x32xf32>
    %263 = arith.addf %262, %261 : vector<1x1x32xf32>
    %264 = arith.divf %262, %263 : vector<1x1x32xf32>
    %265 = vector.extract_strided_slice %256 {offsets = [0, 0, 128], sizes = [1, 1, 32], strides = [1, 1, 1]} : vector<1x1x384xf32> to vector<1x1x32xf32>
    %266 = vector.extract_strided_slice %255 {offsets = [0, 0, 128], sizes = [1, 1, 32], strides = [1, 1, 1]} : vector<1x1x384xf32> to vector<1x1x32xf32>
    %267 = arith.addf %265, %266 : vector<1x1x32xf32>
    %268 = arith.negf %267 : vector<1x1x32xf32>
    %269 = math.exp %268 : vector<1x1x32xf32>
    %cst_49 = arith.constant 1.000000e+00 : f32
    %270 = vector.broadcast %cst_49 : f32 to vector<1x1x32xf32>
    %271 = arith.addf %270, %269 : vector<1x1x32xf32>
    %272 = arith.divf %270, %271 : vector<1x1x32xf32>
    %273 = vector.extract_strided_slice %256 {offsets = [0, 0, 256], sizes = [1, 1, 32], strides = [1, 1, 1]} : vector<1x1x384xf32> to vector<1x1x32xf32>
    %274 = vector.extract_strided_slice %255 {offsets = [0, 0, 256], sizes = [1, 1, 32], strides = [1, 1, 1]} : vector<1x1x384xf32> to vector<1x1x32xf32>
    %275 = arith.mulf %264, %274 : vector<1x1x32xf32>
    %276 = arith.addf %273, %275 : vector<1x1x32xf32>
    %277 = math.tanh %276 : vector<1x1x32xf32>
    %cst_50 = arith.constant 1.000000e+00 : f32
    %278 = vector.broadcast %cst_50 : f32 to vector<1x1x32xf32>
    %279 = arith.subf %278, %272 : vector<1x1x32xf32>
    %280 = arith.mulf %279, %277 : vector<1x1x32xf32>
    %281 = arith.mulf %272, %251 : vector<1x1x32xf32>
    %282 = arith.addf %280, %281 : vector<1x1x32xf32>
    %283 = arith.truncf %282 : vector<1x1x32xf32> to vector<1x1x32xbf16>
    "tpu.trace_start"() <{level = 10 : i32, message = "bti,io->bto"}> : () -> ()
    %cst_51 = arith.constant dense<0.000000e+00> : vector<1x1x384xf32>
    %284 = tpu.matmul %283, %181, %cst_51 {dimension_numbers = #tpu.dot_dimension_numbers<[2], [0], [0, 1], [1], [0, 0, 0, 1, 1, 1], [], []>} : vector<1x1x32xbf16>, vector<32x384xbf16>, vector<1x1x384xf32> -> vector<1x1x384xf32>
    "tpu.trace_stop"() : () -> ()
    %285 = vector.shape_cast %183 : vector<1x384xf32> to vector<1x1x384xf32>
    %286 = arith.addf %284, %285 : vector<1x1x384xf32>
    %287 = vector.extract_strided_slice %188 {offsets = [0, 3, 0], sizes = [1, 1, 384], strides = [1, 1, 1]} : vector<1x5x384xf32> to vector<1x1x384xf32>
    %288 = vector.extract_strided_slice %287 {offsets = [0, 0, 0], sizes = [1, 1, 32], strides = [1, 1, 1]} : vector<1x1x384xf32> to vector<1x1x32xf32>
    %289 = vector.extract_strided_slice %286 {offsets = [0, 0, 0], sizes = [1, 1, 32], strides = [1, 1, 1]} : vector<1x1x384xf32> to vector<1x1x32xf32>
    %290 = arith.addf %288, %289 : vector<1x1x32xf32>
    %291 = arith.negf %290 : vector<1x1x32xf32>
    %292 = math.exp %291 : vector<1x1x32xf32>
    %cst_52 = arith.constant 1.000000e+00 : f32
    %293 = vector.broadcast %cst_52 : f32 to vector<1x1x32xf32>
    %294 = arith.addf %293, %292 : vector<1x1x32xf32>
    %295 = arith.divf %293, %294 : vector<1x1x32xf32>
    %296 = vector.extract_strided_slice %287 {offsets = [0, 0, 128], sizes = [1, 1, 32], strides = [1, 1, 1]} : vector<1x1x384xf32> to vector<1x1x32xf32>
    %297 = vector.extract_strided_slice %286 {offsets = [0, 0, 128], sizes = [1, 1, 32], strides = [1, 1, 1]} : vector<1x1x384xf32> to vector<1x1x32xf32>
    %298 = arith.addf %296, %297 : vector<1x1x32xf32>
    %299 = arith.negf %298 : vector<1x1x32xf32>
    %300 = math.exp %299 : vector<1x1x32xf32>
    %cst_53 = arith.constant 1.000000e+00 : f32
    %301 = vector.broadcast %cst_53 : f32 to vector<1x1x32xf32>
    %302 = arith.addf %301, %300 : vector<1x1x32xf32>
    %303 = arith.divf %301, %302 : vector<1x1x32xf32>
    %304 = vector.extract_strided_slice %287 {offsets = [0, 0, 256], sizes = [1, 1, 32], strides = [1, 1, 1]} : vector<1x1x384xf32> to vector<1x1x32xf32>
    %305 = vector.extract_strided_slice %286 {offsets = [0, 0, 256], sizes = [1, 1, 32], strides = [1, 1, 1]} : vector<1x1x384xf32> to vector<1x1x32xf32>
    %306 = arith.mulf %295, %305 : vector<1x1x32xf32>
    %307 = arith.addf %304, %306 : vector<1x1x32xf32>
    %308 = math.tanh %307 : vector<1x1x32xf32>
    %cst_54 = arith.constant 1.000000e+00 : f32
    %309 = vector.broadcast %cst_54 : f32 to vector<1x1x32xf32>
    %310 = arith.subf %309, %303 : vector<1x1x32xf32>
    %311 = arith.mulf %310, %308 : vector<1x1x32xf32>
    %312 = arith.mulf %303, %282 : vector<1x1x32xf32>
    %313 = arith.addf %311, %312 : vector<1x1x32xf32>
    %314 = arith.truncf %313 : vector<1x1x32xf32> to vector<1x1x32xbf16>
    "tpu.trace_start"() <{level = 10 : i32, message = "bti,io->bto"}> : () -> ()
    %cst_55 = arith.constant dense<0.000000e+00> : vector<1x1x384xf32>
    %315 = tpu.matmul %314, %181, %cst_55 {dimension_numbers = #tpu.dot_dimension_numbers<[2], [0], [0, 1], [1], [0, 0, 0, 1, 1, 1], [], []>} : vector<1x1x32xbf16>, vector<32x384xbf16>, vector<1x1x384xf32> -> vector<1x1x384xf32>
    "tpu.trace_stop"() : () -> ()
    %316 = vector.shape_cast %183 : vector<1x384xf32> to vector<1x1x384xf32>
    %317 = arith.addf %315, %316 : vector<1x1x384xf32>
    %318 = vector.extract_strided_slice %188 {offsets = [0, 4, 0], sizes = [1, 1, 384], strides = [1, 1, 1]} : vector<1x5x384xf32> to vector<1x1x384xf32>
    %319 = vector.extract_strided_slice %318 {offsets = [0, 0, 0], sizes = [1, 1, 32], strides = [1, 1, 1]} : vector<1x1x384xf32> to vector<1x1x32xf32>
    %320 = vector.extract_strided_slice %317 {offsets = [0, 0, 0], sizes = [1, 1, 32], strides = [1, 1, 1]} : vector<1x1x384xf32> to vector<1x1x32xf32>
    %321 = arith.addf %319, %320 : vector<1x1x32xf32>
    %322 = arith.negf %321 : vector<1x1x32xf32>
    %323 = math.exp %322 : vector<1x1x32xf32>
    %cst_56 = arith.constant 1.000000e+00 : f32
    %324 = vector.broadcast %cst_56 : f32 to vector<1x1x32xf32>
    %325 = arith.addf %324, %323 : vector<1x1x32xf32>
    %326 = arith.divf %324, %325 : vector<1x1x32xf32>
    %327 = vector.extract_strided_slice %318 {offsets = [0, 0, 128], sizes = [1, 1, 32], strides = [1, 1, 1]} : vector<1x1x384xf32> to vector<1x1x32xf32>
    %328 = vector.extract_strided_slice %317 {offsets = [0, 0, 128], sizes = [1, 1, 32], strides = [1, 1, 1]} : vector<1x1x384xf32> to vector<1x1x32xf32>
    %329 = arith.addf %327, %328 : vector<1x1x32xf32>
    %330 = arith.negf %329 : vector<1x1x32xf32>
    %331 = math.exp %330 : vector<1x1x32xf32>
    %cst_57 = arith.constant 1.000000e+00 : f32
    %332 = vector.broadcast %cst_57 : f32 to vector<1x1x32xf32>
    %333 = arith.addf %332, %331 : vector<1x1x32xf32>
    %334 = arith.divf %332, %333 : vector<1x1x32xf32>
    %335 = vector.extract_strided_slice %318 {offsets = [0, 0, 256], sizes = [1, 1, 32], strides = [1, 1, 1]} : vector<1x1x384xf32> to vector<1x1x32xf32>
    %336 = vector.extract_strided_slice %317 {offsets = [0, 0, 256], sizes = [1, 1, 32], strides = [1, 1, 1]} : vector<1x1x384xf32> to vector<1x1x32xf32>
    %337 = arith.mulf %326, %336 : vector<1x1x32xf32>
    %338 = arith.addf %335, %337 : vector<1x1x32xf32>
    %339 = math.tanh %338 : vector<1x1x32xf32>
    %cst_58 = arith.constant 1.000000e+00 : f32
    %340 = vector.broadcast %cst_58 : f32 to vector<1x1x32xf32>
    %341 = arith.subf %340, %334 : vector<1x1x32xf32>
    %342 = arith.mulf %341, %339 : vector<1x1x32xf32>
    %343 = arith.mulf %334, %313 : vector<1x1x32xf32>
    %344 = arith.addf %342, %343 : vector<1x1x32xf32>
    %345 = tpu.concatenate %220, %251, %282, %313, %344 in 1 : vector<1x1x32xf32>, vector<1x1x32xf32>, vector<1x1x32xf32>, vector<1x1x32xf32>, vector<1x1x32xf32> -> vector<1x5x32xf32>
    %c5 = arith.constant 5 : index
    %c0_59 = arith.constant 0 : index
    %346 = vector.load %arg3[%c5, %c0_59] : memref<16x640xf32, #tpu.memory_space<vmem>>, vector<1x32xf32>
    %c6 = arith.constant 6 : index
    %c0_60 = arith.constant 0 : index
    %347 = vector.load %arg3[%c6, %c0_60] : memref<16x640xf32, #tpu.memory_space<vmem>>, vector<1x32xf32>
    %cst_61 = arith.constant dense<0.000000e+00> : vector<1x5xf32>
    %348 = vector.multi_reduction <add>, %345, %cst_61 [2] : vector<1x5x32xf32> to vector<1x5xf32>
    %349 = vector.shape_cast %348 : vector<1x5xf32> to vector<1x5x1xf32>
    %cst_62 = arith.constant 3.200000e+01 : f32
    %350 = vector.broadcast %cst_62 : f32 to vector<1x5x1xf32>
    %351 = arith.divf %349, %350 : vector<1x5x1xf32>
    %352 = vector.broadcast %351 : vector<1x5x1xf32> to vector<1x5x32xf32>
    %353 = arith.subf %345, %352 : vector<1x5x32xf32>
    %354 = arith.mulf %353, %353 : vector<1x5x32xf32>
    %cst_63 = arith.constant dense<0.000000e+00> : vector<1x5xf32>
    %355 = vector.multi_reduction <add>, %354, %cst_63 [2] : vector<1x5x32xf32> to vector<1x5xf32>
    %356 = vector.shape_cast %355 : vector<1x5xf32> to vector<1x5x1xf32>
    %cst_64 = arith.constant 3.200000e+01 : f32
    %357 = vector.broadcast %cst_64 : f32 to vector<1x5x1xf32>
    %358 = arith.divf %356, %357 : vector<1x5x1xf32>
    %359 = vector.broadcast %351 : vector<1x5x1xf32> to vector<1x5x32xf32>
    %360 = arith.subf %345, %359 : vector<1x5x32xf32>
    %cst_65 = arith.constant 9.99999974E-6 : f32
    %361 = vector.broadcast %cst_65 : f32 to vector<1x5x1xf32>
    %362 = arith.addf %358, %361 : vector<1x5x1xf32>
    %363 = math.rsqrt %362 : vector<1x5x1xf32>
    %364 = vector.broadcast %363 : vector<1x5x1xf32> to vector<1x5x32xf32>
    %365 = arith.mulf %360, %364 : vector<1x5x32xf32>
    %366 = vector.shape_cast %346 : vector<1x32xf32> to vector<1x1x32xf32>
    %367 = vector.broadcast %366 : vector<1x1x32xf32> to vector<1x5x32xf32>
    %368 = arith.mulf %365, %367 : vector<1x5x32xf32>
    %369 = vector.shape_cast %347 : vector<1x32xf32> to vector<1x1x32xf32>
    %370 = vector.broadcast %369 : vector<1x1x32xf32> to vector<1x5x32xf32>
    %371 = arith.addf %368, %370 : vector<1x5x32xf32>
    %372 = arith.truncf %371 : vector<1x5x32xf32> to vector<1x5x32xbf16>
    %c480 = arith.constant 480 : index
    %c0_66 = arith.constant 0 : index
    %373 = vector.load %arg2[%c480, %c0_66] : memref<576x640xbf16, #tpu.memory_space<vmem>>, vector<32x512xbf16>
    "tpu.trace_start"() <{level = 10 : i32, message = "bti,io->bto"}> : () -> ()
    %cst_67 = arith.constant dense<0.000000e+00> : vector<1x5x512xf32>
    %374 = tpu.matmul %372, %373, %cst_67 {dimension_numbers = #tpu.dot_dimension_numbers<[2], [0], [0, 1], [1], [0, 0, 0, 1, 1, 1], [], []>} : vector<1x5x32xbf16>, vector<32x512xbf16>, vector<1x5x512xf32> -> vector<1x5x512xf32>
    "tpu.trace_stop"() : () -> ()
    %c7 = arith.constant 7 : index
    %c0_68 = arith.constant 0 : index
    %375 = vector.load %arg3[%c7, %c0_68] : memref<16x640xf32, #tpu.memory_space<vmem>>, vector<1x512xf32>
    %376 = vector.shape_cast %375 : vector<1x512xf32> to vector<1x1x512xf32>
    %377 = vector.broadcast %376 : vector<1x1x512xf32> to vector<1x5x512xf32>
    %378 = arith.addf %374, %377 : vector<1x5x512xf32>
    %c512 = arith.constant 512 : index
    %c0_69 = arith.constant 0 : index
    %379 = vector.load %arg2[%c512, %c0_69] : memref<576x640xbf16, #tpu.memory_space<vmem>>, vector<32x512xbf16>
    "tpu.trace_start"() <{level = 10 : i32, message = "bti,io->bto"}> : () -> ()
    %cst_70 = arith.constant dense<0.000000e+00> : vector<1x5x512xf32>
    %380 = tpu.matmul %372, %379, %cst_70 {dimension_numbers = #tpu.dot_dimension_numbers<[2], [0], [0, 1], [1], [0, 0, 0, 1, 1, 1], [], []>} : vector<1x5x32xbf16>, vector<32x512xbf16>, vector<1x5x512xf32> -> vector<1x5x512xf32>
    "tpu.trace_stop"() : () -> ()
    %381 = arith.truncf %380 : vector<1x5x512xf32> to vector<1x5x512xbf16>
    %cst_71 = arith.constant 0.000000e+00 : f32
    %382 = vector.broadcast %cst_71 : f32 to vector<1x5x32xf32>
    %383 = vector.extract_strided_slice %378 {offsets = [0, 0, 0], sizes = [1, 5, 32], strides = [1, 1, 1]} : vector<1x5x512xf32> to vector<1x5x32xf32>
    %384 = arith.truncf %383 : vector<1x5x32xf32> to vector<1x5x32xbf16>
    "tpu.trace_start"() <{level = 10 : i32, message = "bqd,bkd->bqk"}> : () -> ()
    %cst_72 = arith.constant dense<0.000000e+00> : vector<1x5x5xf32>
    %385 = tpu.matmul %384, %372, %cst_72 {dimension_numbers = #tpu.dot_dimension_numbers<[2], [2], [1], [1], [0, 0, 0, 1, 1, 1], [0], [0]>} : vector<1x5x32xbf16>, vector<1x5x32xbf16>, vector<1x5x5xf32> -> vector<1x5x5xf32>
    "tpu.trace_stop"() : () -> ()
    %cst_73 = arith.constant dense<0xFF800000> : vector<1x5xf32>
    %386 = vector.multi_reduction <maximumf>, %385, %cst_73 [2] : vector<1x5x5xf32> to vector<1x5xf32>
    %387 = vector.shape_cast %386 : vector<1x5xf32> to vector<1x5x1xf32>
    %388 = vector.broadcast %387 : vector<1x5x1xf32> to vector<1x5x5xf32>
    %389 = arith.subf %385, %388 : vector<1x5x5xf32>
    %390 = math.exp %389 : vector<1x5x5xf32>
    %cst_74 = arith.constant dense<0.000000e+00> : vector<1x5xf32>
    %391 = vector.multi_reduction <add>, %390, %cst_74 [2] : vector<1x5x5xf32> to vector<1x5xf32>
    %392 = vector.shape_cast %391 : vector<1x5xf32> to vector<1x5x1xf32>
    %393 = tpu.reciprocal %392 {approx = true} : vector<1x5x1xf32> -> vector<1x5x1xf32>
    %394 = vector.broadcast %393 : vector<1x5x1xf32> to vector<1x5x5xf32>
    %395 = arith.mulf %390, %394 : vector<1x5x5xf32>
    %396 = arith.truncf %395 : vector<1x5x5xf32> to vector<1x5x5xbf16>
    %397 = vector.extract_strided_slice %381 {offsets = [0, 0, 0], sizes = [1, 5, 32], strides = [1, 1, 1]} : vector<1x5x512xbf16> to vector<1x5x32xbf16>
    "tpu.trace_start"() <{level = 10 : i32, message = "bqk,bkd->bqd"}> : () -> ()
    %cst_75 = arith.constant dense<0.000000e+00> : vector<1x5x32xf32>
    %398 = tpu.matmul %396, %397, %cst_75 {dimension_numbers = #tpu.dot_dimension_numbers<[2], [1], [1], [2], [0, 0, 0, 1, 1, 2], [0], [0]>} : vector<1x5x5xbf16>, vector<1x5x32xbf16>, vector<1x5x32xf32> -> vector<1x5x32xf32>
    "tpu.trace_stop"() : () -> ()
    %399 = arith.addf %382, %398 : vector<1x5x32xf32>
    %400 = vector.extract_strided_slice %378 {offsets = [0, 0, 128], sizes = [1, 5, 32], strides = [1, 1, 1]} : vector<1x5x512xf32> to vector<1x5x32xf32>
    %401 = arith.truncf %400 : vector<1x5x32xf32> to vector<1x5x32xbf16>
    "tpu.trace_start"() <{level = 10 : i32, message = "bqd,bkd->bqk"}> : () -> ()
    %cst_76 = arith.constant dense<0.000000e+00> : vector<1x5x5xf32>
    %402 = tpu.matmul %401, %372, %cst_76 {dimension_numbers = #tpu.dot_dimension_numbers<[2], [2], [1], [1], [0, 0, 0, 1, 1, 1], [0], [0]>} : vector<1x5x32xbf16>, vector<1x5x32xbf16>, vector<1x5x5xf32> -> vector<1x5x5xf32>
    "tpu.trace_stop"() : () -> ()
    %cst_77 = arith.constant dense<0xFF800000> : vector<1x5xf32>
    %403 = vector.multi_reduction <maximumf>, %402, %cst_77 [2] : vector<1x5x5xf32> to vector<1x5xf32>
    %404 = vector.shape_cast %403 : vector<1x5xf32> to vector<1x5x1xf32>
    %405 = vector.broadcast %404 : vector<1x5x1xf32> to vector<1x5x5xf32>
    %406 = arith.subf %402, %405 : vector<1x5x5xf32>
    %407 = math.exp %406 : vector<1x5x5xf32>
    %cst_78 = arith.constant dense<0.000000e+00> : vector<1x5xf32>
    %408 = vector.multi_reduction <add>, %407, %cst_78 [2] : vector<1x5x5xf32> to vector<1x5xf32>
    %409 = vector.shape_cast %408 : vector<1x5xf32> to vector<1x5x1xf32>
    %410 = tpu.reciprocal %409 {approx = true} : vector<1x5x1xf32> -> vector<1x5x1xf32>
    %411 = vector.broadcast %410 : vector<1x5x1xf32> to vector<1x5x5xf32>
    %412 = arith.mulf %407, %411 : vector<1x5x5xf32>
    %413 = arith.truncf %412 : vector<1x5x5xf32> to vector<1x5x5xbf16>
    %414 = vector.extract_strided_slice %381 {offsets = [0, 0, 128], sizes = [1, 5, 32], strides = [1, 1, 1]} : vector<1x5x512xbf16> to vector<1x5x32xbf16>
    "tpu.trace_start"() <{level = 10 : i32, message = "bqk,bkd->bqd"}> : () -> ()
    %cst_79 = arith.constant dense<0.000000e+00> : vector<1x5x32xf32>
    %415 = tpu.matmul %413, %414, %cst_79 {dimension_numbers = #tpu.dot_dimension_numbers<[2], [1], [1], [2], [0, 0, 0, 1, 1, 2], [0], [0]>} : vector<1x5x5xbf16>, vector<1x5x32xbf16>, vector<1x5x32xf32> -> vector<1x5x32xf32>
    "tpu.trace_stop"() : () -> ()
    %416 = arith.addf %399, %415 : vector<1x5x32xf32>
    %417 = vector.extract_strided_slice %378 {offsets = [0, 0, 256], sizes = [1, 5, 32], strides = [1, 1, 1]} : vector<1x5x512xf32> to vector<1x5x32xf32>
    %418 = arith.truncf %417 : vector<1x5x32xf32> to vector<1x5x32xbf16>
    "tpu.trace_start"() <{level = 10 : i32, message = "bqd,bkd->bqk"}> : () -> ()
    %cst_80 = arith.constant dense<0.000000e+00> : vector<1x5x5xf32>
    %419 = tpu.matmul %418, %372, %cst_80 {dimension_numbers = #tpu.dot_dimension_numbers<[2], [2], [1], [1], [0, 0, 0, 1, 1, 1], [0], [0]>} : vector<1x5x32xbf16>, vector<1x5x32xbf16>, vector<1x5x5xf32> -> vector<1x5x5xf32>
    "tpu.trace_stop"() : () -> ()
    %cst_81 = arith.constant dense<0xFF800000> : vector<1x5xf32>
    %420 = vector.multi_reduction <maximumf>, %419, %cst_81 [2] : vector<1x5x5xf32> to vector<1x5xf32>
    %421 = vector.shape_cast %420 : vector<1x5xf32> to vector<1x5x1xf32>
    %422 = vector.broadcast %421 : vector<1x5x1xf32> to vector<1x5x5xf32>
    %423 = arith.subf %419, %422 : vector<1x5x5xf32>
    %424 = math.exp %423 : vector<1x5x5xf32>
    %cst_82 = arith.constant dense<0.000000e+00> : vector<1x5xf32>
    %425 = vector.multi_reduction <add>, %424, %cst_82 [2] : vector<1x5x5xf32> to vector<1x5xf32>
    %426 = vector.shape_cast %425 : vector<1x5xf32> to vector<1x5x1xf32>
    %427 = tpu.reciprocal %426 {approx = true} : vector<1x5x1xf32> -> vector<1x5x1xf32>
    %428 = vector.broadcast %427 : vector<1x5x1xf32> to vector<1x5x5xf32>
    %429 = arith.mulf %424, %428 : vector<1x5x5xf32>
    %430 = arith.truncf %429 : vector<1x5x5xf32> to vector<1x5x5xbf16>
    %431 = vector.extract_strided_slice %381 {offsets = [0, 0, 256], sizes = [1, 5, 32], strides = [1, 1, 1]} : vector<1x5x512xbf16> to vector<1x5x32xbf16>
    "tpu.trace_start"() <{level = 10 : i32, message = "bqk,bkd->bqd"}> : () -> ()
    %cst_83 = arith.constant dense<0.000000e+00> : vector<1x5x32xf32>
    %432 = tpu.matmul %430, %431, %cst_83 {dimension_numbers = #tpu.dot_dimension_numbers<[2], [1], [1], [2], [0, 0, 0, 1, 1, 2], [0], [0]>} : vector<1x5x5xbf16>, vector<1x5x32xbf16>, vector<1x5x32xf32> -> vector<1x5x32xf32>
    "tpu.trace_stop"() : () -> ()
    %433 = arith.addf %416, %432 : vector<1x5x32xf32>
    %434 = vector.extract_strided_slice %378 {offsets = [0, 0, 384], sizes = [1, 5, 32], strides = [1, 1, 1]} : vector<1x5x512xf32> to vector<1x5x32xf32>
    %435 = arith.truncf %434 : vector<1x5x32xf32> to vector<1x5x32xbf16>
    "tpu.trace_start"() <{level = 10 : i32, message = "bqd,bkd->bqk"}> : () -> ()
    %cst_84 = arith.constant dense<0.000000e+00> : vector<1x5x5xf32>
    %436 = tpu.matmul %435, %372, %cst_84 {dimension_numbers = #tpu.dot_dimension_numbers<[2], [2], [1], [1], [0, 0, 0, 1, 1, 1], [0], [0]>} : vector<1x5x32xbf16>, vector<1x5x32xbf16>, vector<1x5x5xf32> -> vector<1x5x5xf32>
    "tpu.trace_stop"() : () -> ()
    %cst_85 = arith.constant dense<0xFF800000> : vector<1x5xf32>
    %437 = vector.multi_reduction <maximumf>, %436, %cst_85 [2] : vector<1x5x5xf32> to vector<1x5xf32>
    %438 = vector.shape_cast %437 : vector<1x5xf32> to vector<1x5x1xf32>
    %439 = vector.broadcast %438 : vector<1x5x1xf32> to vector<1x5x5xf32>
    %440 = arith.subf %436, %439 : vector<1x5x5xf32>
    %441 = math.exp %440 : vector<1x5x5xf32>
    %cst_86 = arith.constant dense<0.000000e+00> : vector<1x5xf32>
    %442 = vector.multi_reduction <add>, %441, %cst_86 [2] : vector<1x5x5xf32> to vector<1x5xf32>
    %443 = vector.shape_cast %442 : vector<1x5xf32> to vector<1x5x1xf32>
    %444 = tpu.reciprocal %443 {approx = true} : vector<1x5x1xf32> -> vector<1x5x1xf32>
    %445 = vector.broadcast %444 : vector<1x5x1xf32> to vector<1x5x5xf32>
    %446 = arith.mulf %441, %445 : vector<1x5x5xf32>
    %447 = arith.truncf %446 : vector<1x5x5xf32> to vector<1x5x5xbf16>
    %448 = vector.extract_strided_slice %381 {offsets = [0, 0, 384], sizes = [1, 5, 32], strides = [1, 1, 1]} : vector<1x5x512xbf16> to vector<1x5x32xbf16>
    "tpu.trace_start"() <{level = 10 : i32, message = "bqk,bkd->bqd"}> : () -> ()
    %cst_87 = arith.constant dense<0.000000e+00> : vector<1x5x32xf32>
    %449 = tpu.matmul %447, %448, %cst_87 {dimension_numbers = #tpu.dot_dimension_numbers<[2], [1], [1], [2], [0, 0, 0, 1, 1, 2], [0], [0]>} : vector<1x5x5xbf16>, vector<1x5x32xbf16>, vector<1x5x32xf32> -> vector<1x5x32xf32>
    "tpu.trace_stop"() : () -> ()
    %450 = arith.addf %433, %449 : vector<1x5x32xf32>
    %c8 = arith.constant 8 : index
    %c0_88 = arith.constant 0 : index
    %451 = vector.load %arg3[%c8, %c0_88] : memref<16x640xf32, #tpu.memory_space<vmem>>, vector<1x32xf32>
    %452 = vector.shape_cast %451 : vector<1x32xf32> to vector<1x1x32xf32>
    %453 = vector.broadcast %452 : vector<1x1x32xf32> to vector<1x5x32xf32>
    %454 = arith.addf %450, %453 : vector<1x5x32xf32>
    %455 = arith.truncf %454 : vector<1x5x32xf32> to vector<1x5x32xbf16>
    %c544 = arith.constant 544 : index
    %c0_89 = arith.constant 0 : index
    %456 = vector.load %arg2[%c544, %c0_89] : memref<576x640xbf16, #tpu.memory_space<vmem>>, vector<32x640xbf16>
    "tpu.trace_start"() <{level = 10 : i32, message = "bti,io->bto"}> : () -> ()
    %cst_90 = arith.constant dense<0.000000e+00> : vector<1x5x640xf32>
    %457 = tpu.matmul %455, %456, %cst_90 {dimension_numbers = #tpu.dot_dimension_numbers<[2], [0], [0, 1], [1], [0, 0, 0, 1, 1, 1], [], []>} : vector<1x5x32xbf16>, vector<32x640xbf16>, vector<1x5x640xf32> -> vector<1x5x640xf32>
    %cst_91 = arith.constant 0.000000e+00 : f32
    "tpu.trace_stop"() : () -> ()
    %458 = vector.broadcast %cst_91 : f32 to vector<1x1x128xf32>
    %c9 = arith.constant 9 : index
    %c0_92 = arith.constant 0 : index
    %459 = vector.load %arg3[%c9, %c0_92] : memref<16x640xf32, #tpu.memory_space<vmem>>, vector<1x128xf32>
    %460 = vector.shape_cast %459 : vector<1x128xf32> to vector<1x1x128xf32>
    %461 = arith.addf %458, %460 : vector<1x1x128xf32>
    %462 = vector.extract_strided_slice %457 {offsets = [0, 0, 0], sizes = [1, 1, 128], strides = [1, 1, 1]} : vector<1x5x640xf32> to vector<1x1x128xf32>
    %463 = arith.addf %461, %462 : vector<1x1x128xf32>
    %464 = vector.extract_strided_slice %457 {offsets = [0, 1, 128], sizes = [1, 1, 128], strides = [1, 1, 1]} : vector<1x5x640xf32> to vector<1x1x128xf32>
    %465 = arith.addf %463, %464 : vector<1x1x128xf32>
    %466 = vector.extract_strided_slice %457 {offsets = [0, 2, 256], sizes = [1, 1, 128], strides = [1, 1, 1]} : vector<1x5x640xf32> to vector<1x1x128xf32>
    %467 = arith.addf %465, %466 : vector<1x1x128xf32>
    %468 = vector.extract_strided_slice %457 {offsets = [0, 3, 384], sizes = [1, 1, 128], strides = [1, 1, 1]} : vector<1x5x640xf32> to vector<1x1x128xf32>
    %469 = arith.addf %467, %468 : vector<1x1x128xf32>
    %470 = vector.extract_strided_slice %457 {offsets = [0, 4, 512], sizes = [1, 1, 128], strides = [1, 1, 1]} : vector<1x5x640xf32> to vector<1x1x128xf32>
    %471 = arith.addf %469, %470 : vector<1x1x128xf32>
    %c0_93 = arith.constant 0 : index
    %c0_94 = arith.constant 0 : index
    %c0_95 = arith.constant 0 : index
    %472 = vector.load %arg4[%c0_93, %c0_94, %c0_95] : memref<1x1x128xf32, #tpu.memory_space<vmem>>, vector<1x1x128xf32>
    tpu.vector_store %arg4[%c0_93, %c0_94, %c0_95], %471 {strides = array<i32>} : memref<1x1x128xf32, #tpu.memory_space<vmem>>, vector<1x1x128xf32>,
    return
  }
  func.func @transform_0(%arg0: i32) -> (i32, i32, i32) {
    %c0_i32 = arith.constant 0 : i32
    %c0_i32_0 = arith.constant 0 : i32
    %c0_i32_1 = arith.constant 0 : i32
    return %arg0, %c0_i32, %c0_i32_0 : i32, i32, i32
  }
  func.func @transform_1(%arg0: i32) -> (i32, i32) {
    %c0_i32 = arith.constant 0 : i32
    %c0_i32_0 = arith.constant 0 : i32
    %c0_i32_1 = arith.constant 0 : i32
    return %c0_i32, %c0_i32_0 : i32, i32
  }
  func.func @transform_2(%arg0: i32) -> (i32, i32) {
    %c0_i32 = arith.constant 0 : i32
    %c0_i32_0 = arith.constant 0 : i32
    %c0_i32_1 = arith.constant 0 : i32
    return %c0_i32, %c0_i32_0 : i32, i32
  }
  func.func @transform_3(%arg0: i32) -> (i32, i32, i32) {
    %c0_i32 = arith.constant 0 : i32
    %c0_i32_0 = arith.constant 0 : i32
    %c0_i32_1 = arith.constant 0 : i32
    return %arg0, %c0_i32, %c0_i32_0 : i32, i32, i32
  }
}

</mosaic_0001>

<llo_original>
// kernel: treasure_net_forward.1
$region0: #{treasure_net_forward.1}
  #allocation0 [shape = 'u32[]', space=smem, size = 0x4, offset = 0x4, fixed_abs, tag = 'smem constant byte address 0x4 - core index']
  #allocation1 [shape = 'u32[144,128]{1,0:T(1,128)}', space=vmem, size = 0x12000, scoped, tag = 'internal scratch']
  %s0 = inlined_call_operand.vmem [shape: bf16[2,1,256], index: 0, kind: input, shape index: {}]
  %s1 = inlined_call_operand.hbm [shape: bf16[576,640], index: 1, kind: input, shape index: {}]
  %s2 = inlined_call_operand.vmem [shape: f32[16,640], index: 2, kind: input, shape index: {}]
  %s3 = inlined_call_operand.hbm [shape: f32[2,1,128], index: 3, kind: output, shape index: {}]
  %s4 = sld [smem:[#allocation0]]
  $region49: #{treasure_net_forward.1} parent=0
    _
  %s6 = ssub.s32 1, %s4
  %s7 = scalar_select 0, %s6, %s4
  $region1: #{treasure_net_forward.1} parent=0
    #allocation2 [shape = 'u8[737280]{0}', space=vmem, size = 0xb4000, scoped, tag = 'input window, operand 1, single buffered']
    #allocation3 [shape = 's32[2]{0}', space=sflag, size = 0x8, scoped, tag = 'scoped memory for treasure_net_forward.1']
    #allocation4 [shape = 's32[2]{0}', space=sflag, size = 0x8, scoped, tag = 'scoped memory for treasure_net_forward.1']
    #allocation5 [shape = 'u8[1024]{0}', space=vmem, size = 0x400, scoped, tag = 'output window, operand 0']
    %8 = vsyncpa [#allocation3], 0
    %9 = vsyncpa [#allocation4], 0
    %s10 = scalar_lea.sflag [#allocation4], 1
    %11 = vsyncpa %s10, 0
    loop: start=0, step=1, limit=4
    $region2: #{treasure_net_forward.1} parent=1 // loop_pre_header
      _
    $region3: #{treasure_net_forward.1} parent=1 // loop_header
      %s13 = sphi 0, %s17
      %p14 = scmp.ge.s32.totalorder %s13, 4
      %s23 = sphi 0, %s25
      %s26 = sphi 0, %s23
      %s27 = sphi 0, %s26
      %s43 = sphi 0, %s27
      %s47 = sphi 0, %s47
      %s49 = sphi 0, %s47
      %s50 = sphi 0, %s49
      %s64 = sphi 0, %s50
      %s68 = sphi 0, %s68
      %s70 = sphi 0, %s68
      %s71 = sphi 0, %s70
      %s85 = sphi 0, %s71
      %s91 = sphi 0, %s93
      %s94 = sphi 0, %s91
      %s95 = sphi 0, %s94
      %s111 = sphi 0, %s95
    $region4: #{treasure_net_forward.1} parent=1 // loop_header_branch
      %16 = sbr.rel (%p14) target = $region8
    $region5: #{treasure_net_forward.1} parent=1 // loop_body
      %s18 = ssub.s32 %s13, 1
      %s19 = ssub.s32 %s13, 2
      %s20 = sadd.s32 %s13, 1
      %s21 = ssub.s32 %s13, %s20
      %p22 = scmp.eq.s32.totalorder %s21, 0
      %s24 = sadd.s32 %s23, 1
      %s25 = scalar_select %p22, %s23, %s24
      %p28 = pneg %p22
      %p29 = scmp.eq.s32.totalorder %s13, 1
      %p30 = por %p28, %p29
      %p31 = scmp.ne.s32.totalorder %s23, %s26
      %p32 = scmp.eq.s32.totalorder %s13, 0
      %p33 = por %p31, %p32
      %p34 = scmp.ne.s32.totalorder %s23, %s26
      %p35 = scmp.eq.s32.totalorder %s18, 1
      %p36 = por %p34, %p35
      %p37 = scmp.ne.s32.totalorder %s26, %s27
      %p38 = scmp.eq.s32.totalorder %s18, 0
      %p39 = por %p37, %p38
      %p40 = scmp.ne.s32.totalorder %s26, %s27
      %p41 = scmp.eq.s32.totalorder %s19, 1
      %p42 = por %p40, %p41
      %p44 = scmp.ne.s32.totalorder %s27, %s43
      %p45 = scmp.eq.s32.totalorder %s19, 0
      %p46 = por %p44, %p45
      %s48 = sadd.s32 %s47, 1
      %p51 = scmp.eq.s32.totalorder %s13, 1
      %p52 = scmp.ne.s32.totalorder %s47, %s49
      %p53 = scmp.eq.s32.totalorder %s13, 0
      %p54 = por %p52, %p53
      %p55 = scmp.ne.s32.totalorder %s47, %s49
      %p56 = scmp.eq.s32.totalorder %s18, 1
      %p57 = por %p55, %p56
      %p58 = scmp.ne.s32.totalorder %s49, %s50
      %p59 = scmp.eq.s32.totalorder %s18, 0
      %p60 = por %p58, %p59
      %p61 = scmp.ne.s32.totalorder %s49, %s50
      %p62 = scmp.eq.s32.totalorder %s19, 1
      %p63 = por %p61, %p62
      %p65 = scmp.ne.s32.totalorder %s50, %s64
      %p66 = scmp.eq.s32.totalorder %s19, 0
      %p67 = por %p65, %p66
      %s69 = sadd.s32 %s68, 1
      %p72 = scmp.eq.s32.totalorder %s13, 1
      %p73 = scmp.ne.s32.totalorder %s68, %s70
      %p74 = scmp.eq.s32.totalorder %s13, 0
      %p75 = por %p73, %p74
      %p76 = scmp.ne.s32.totalorder %s68, %s70
      %p77 = scmp.eq.s32.totalorder %s18, 1
      %p78 = por %p76, %p77
      %p79 = scmp.ne.s32.totalorder %s70, %s71
      %p80 = scmp.eq.s32.totalorder %s18, 0
      %p81 = por %p79, %p80
      %p82 = scmp.ne.s32.totalorder %s70, %s71
      %p83 = scmp.eq.s32.totalorder %s19, 1
      %p84 = por %p82, %p83
      %p86 = scmp.ne.s32.totalorder %s71, %s85
      %p87 = scmp.eq.s32.totalorder %s19, 0
      %p88 = por %p86, %p87
      %s89 = ssub.s32 %s13, %s20
      %p90 = scmp.eq.s32.totalorder %s89, 0
      %s92 = sadd.s32 %s91, 1
      %s93 = scalar_select %p90, %s91, %s92
      %p96 = pneg %p90
      %p97 = scmp.eq.s32.totalorder %s13, 1
      %p98 = por %p96, %p97
      %p99 = scmp.ne.s32.totalorder %s91, %s94
      %p100 = scmp.eq.s32.totalorder %s13, 0
      %p101 = por %p99, %p100
      %p102 = scmp.ne.s32.totalorder %s91, %s94
      %p103 = scmp.eq.s32.totalorder %s18, 1
      %p104 = por %p102, %p103
      %p105 = scmp.ne.s32.totalorder %s94, %s95
      %p106 = scmp.eq.s32.totalorder %s18, 0
      %p107 = por %p105, %p106
      %p108 = scmp.ne.s32.totalorder %s94, %s95
      %p109 = scmp.eq.s32.totalorder %s19, 1
      %p110 = por %p108, %p109
      %p112 = scmp.ne.s32.totalorder %s95, %s111
      %p113 = scmp.eq.s32.totalorder %s19, 0
      %p114 = por %p112, %p113
      %p115 = scmp.le.s32.totalorder 1, %s13
      %p116 = scmp.lt.s32.totalorder %s13, 3
      %p117 = pnand %p115, %p116
      %p118 = pneg %p117
      // Predicated region
      $region9: #{treasure_net_forward.1} parent=5 // pred_check
        _
      $region10: #{treasure_net_forward.1} parent=5 // pred_check_branch
        %120 = sbr.rel (%p117) target = $region12
      $region11: #{treasure_net_forward.1} parent=5 // pred_region
        %s121 = ssub.s32 %s13, 1
        // Predicated region
        $region13: #{treasure_net_forward.1} parent=11 // pred_check
          %p122 = pneg %p60
        $region14: #{treasure_net_forward.1} parent=11 // pred_check_branch
          %124 = sbr.rel (%p122) target = $region16
        $region15: #{treasure_net_forward.1} parent=11 // pred_region
          %s126 = ssub.s32 23040, 23040
          %127 = vsyncadd [#allocation3], %s126
          %s128 = sshll.u32 [#allocation2], 4
          %s129 = int_to_ptr.vmem [resolvable:$true] %s128
          %134 = dma.hbm_to_vmem [thread:$0]  %s1, 23040, %s129, [#allocation3], 320, 320, 20
        $region16: #{treasure_net_forward.1} parent=11 // pred_fallthru
          _
        // Predicated region
        $region17: #{treasure_net_forward.1} parent=11 // pred_check
          %p135 = pneg %p81
        $region18: #{treasure_net_forward.1} parent=11 // pred_check_branch
          %137 = sbr.rel (%p135) target = $region20
        $region19: #{treasure_net_forward.1} parent=11 // pred_region
          _
        $region20: #{treasure_net_forward.1} parent=11 // pred_fallthru
          _
      $region12: #{treasure_net_forward.1} parent=5 // pred_fallthru
        _
      %p138 = scmp.lt.s32.totalorder %s13, 2
      // Predicated region
      $region21: #{treasure_net_forward.1} parent=5 // pred_check
        %p139 = pneg %p138
      $region22: #{treasure_net_forward.1} parent=5 // pred_check_branch
        %141 = sbr.rel (%p139) target = $region24
      $region23: #{treasure_net_forward.1} parent=5 // pred_region
        // Predicated region
        $region25: #{treasure_net_forward.1} parent=23 // pred_check
          %p142 = pneg %p33
        $region26: #{treasure_net_forward.1} parent=23 // pred_check_branch
          %144 = sbr.rel (%p142) target = $region28
        $region27: #{treasure_net_forward.1} parent=23 // pred_region
          %p145 = scmp.lt.s32.totalorder %s13, 1
          %s146 = scalar_select %p145, %s13, 1
          %s147 = smul.addr %s146, 2
          %s148 = scalar_lea.vmem %s0, %s147
        $region28: #{treasure_net_forward.1} parent=23 // pred_fallthru
          _
      $region24: #{treasure_net_forward.1} parent=5 // pred_fallthru
        _
      %p149 = scmp.le.s32.totalorder 1, %s13
      %p150 = scmp.lt.s32.totalorder %s13, 3
      %p151 = pnand %p149, %p150
      %p152 = pneg %p151
      // Predicated region
      $region29: #{treasure_net_forward.1} parent=5 // pred_check
        _
      $region30: #{treasure_net_forward.1} parent=5 // pred_check_branch
        %154 = sbr.rel (%p151) target = $region32
      $region31: #{treasure_net_forward.1} parent=5 // pred_region
        %s155 = ssub.s32 %s13, 1
        // Predicated region
        $region33: #{treasure_net_forward.1} parent=31 // pred_check
          %p156 = pneg %p60
        $region34: #{treasure_net_forward.1} parent=31 // pred_check_branch
          %158 = sbr.rel (%p156) target = $region36
        $region35: #{treasure_net_forward.1} parent=31 // pred_region
          %159 = dma.done [#allocation3], 23040
        $region36: #{treasure_net_forward.1} parent=31 // pred_fallthru
          _
        %p160 = scmp.lt.s32.totalorder %s18, 1
        %s161 = scalar_select %p160, %s18, 1
        %s162 = smul.addr %s161, 2
        %s163 = scalar_lea.vmem %s0, %s162
        %p164 = pneg %p39
        %p165 = pneg %p36
        %p166 = pneg %p60
        %p167 = pneg %p57
        %p168 = pneg %p81
        %p169 = pneg %p78
        %p170 = pneg %p107
        %p171 = pneg %p104
        %s172 = sand.u32 %s94, 1
        %s173 = scalar_lea.sflag [#allocation4], %s172
        %s174 = sand.u32 %s94, 1
        %s175 = scalar_lea.vmem [#allocation5], %s174
        %p176 = scmp.lt.s32.totalorder %s18, 1
        %s177 = scalar_select %p176, %s18, 1
        %s178 = smul.addr %s177, 2
        %s179 = scalar_lea.vmem %s0, %s178
        %v181 = vld [vmem:[%s179] sm:$0x3]
        %v182 = vld [vmem:[#allocation2] sm:$0xff]
        %v183 = vld [vmem:[#allocation2 + $0x8] sm:$0xff]
        %v184 = vld [vmem:[#allocation2 + $0x10] sm:$0xf]
        %v185 = vld [vmem:[#allocation2 + $0x14] sm:$0xff]
        %v186 = vld [vmem:[#allocation2 + $0x1c] sm:$0xff]
        %v187 = vld [vmem:[#allocation2 + $0x24] sm:$0xf]
        %v188 = vld [vmem:[#allocation2 + $0x28] sm:$0xff]
        %v189 = vld [vmem:[#allocation2 + $0x30] sm:$0xff]
        %v190 = vld [vmem:[#allocation2 + $0x38] sm:$0xf]
        %v191 = vld [vmem:[#allocation2 + $0x3c] sm:$0xff]
        %v192 = vld [vmem:[#allocation2 + $0x44] sm:$0xff]
        %v193 = vld [vmem:[#allocation2 + $0x4c] sm:$0xf]
        %v194 = vld [vmem:[#allocation2 + $0x50] sm:$0xff]
        %v195 = vld [vmem:[#allocation2 + $0x58] sm:$0xff]
        %v196 = vld [vmem:[#allocation2 + $0x60] sm:$0xf]
        %v197 = vld [vmem:[#allocation2 + $0x64] sm:$0xff]
        %v198 = vld [vmem:[#allocation2 + $0x6c] sm:$0xff]
        %v199 = vld [vmem:[#allocation2 + $0x74] sm:$0xf]
        %v200 = vld [vmem:[#allocation2 + $0x78] sm:$0xff]
        %v201 = vld [vmem:[#allocation2 + $0x80] sm:$0xff]
        %v202 = vld [vmem:[#allocation2 + $0x88] sm:$0xf]
        %v203 = vld [vmem:[#allocation2 + $0x8c] sm:$0xff]
        %v204 = vld [vmem:[#allocation2 + $0x94] sm:$0xff]
        %v205 = vld [vmem:[#allocation2 + $0x9c] sm:$0xf]
        %v206 = vld [vmem:[#allocation2 + $0xa0] sm:$0xff]
        %v207 = vld [vmem:[#allocation2 + $0xa8] sm:$0xff]
        %v208 = vld [vmem:[#allocation2 + $0xb0] sm:$0xf]
        %v209 = vld [vmem:[#allocation2 + $0xb4] sm:$0xff]
        %v210 = vld [vmem:[#allocation2 + $0xbc] sm:$0xff]
        %v211 = vld [vmem:[#allocation2 + $0xc4] sm:$0xf]
        %v212 = vld [vmem:[#allocation2 + $0xc8] sm:$0xff]
        %v213 = vld [vmem:[#allocation2 + $0xd0] sm:$0xff]
        %v214 = vld [vmem:[#allocation2 + $0xd8] sm:$0xf]
        %v215 = vld [vmem:[#allocation2 + $0xdc] sm:$0xff]
        %v216 = vld [vmem:[#allocation2 + $0xe4] sm:$0xff]
        %v217 = vld [vmem:[#allocation2 + $0xec] sm:$0xf]
        %v218 = vld [vmem:[#allocation2 + $0xf0] sm:$0xff]
        %v219 = vld [vmem:[#allocation2 + $0xf8] sm:$0xff]
        %v220 = vld [vmem:[#allocation2 + $0x100] sm:$0xf]
        %v221 = vld [vmem:[#allocation2 + $0x104] sm:$0xff]
        %v222 = vld [vmem:[#allocation2 + $0x10c] sm:$0xff]
        %v223 = vld [vmem:[#allocation2 + $0x114] sm:$0xf]
        %v224 = vld [vmem:[#allocation2 + $0x118] sm:$0xff]
        %v225 = vld [vmem:[#allocation2 + $0x120] sm:$0xff]
        %v226 = vld [vmem:[#allocation2 + $0x128] sm:$0xf]
        %v227 = vld [vmem:[#allocation2 + $0x12c] sm:$0xff]
        %v228 = vld [vmem:[#allocation2 + $0x134] sm:$0xff]
        %v229 = vld [vmem:[#allocation2 + $0x13c] sm:$0xf]
        %v230 = vld [vmem:[#allocation2 + $0x140] sm:$0xff]
        %v231 = vld [vmem:[#allocation2 + $0x148] sm:$0xff]
        %v232 = vld [vmem:[#allocation2 + $0x150] sm:$0xf]
        %v233 = vld [vmem:[#allocation2 + $0x154] sm:$0xff]
        %v234 = vld [vmem:[#allocation2 + $0x15c] sm:$0xff]
        %v235 = vld [vmem:[#allocation2 + $0x164] sm:$0xf]
        %v236 = vld [vmem:[#allocation2 + $0x168] sm:$0xff]
        %v237 = vld [vmem:[#allocation2 + $0x170] sm:$0xff]
        %v238 = vld [vmem:[#allocation2 + $0x178] sm:$0xf]
        %v239 = vld [vmem:[#allocation2 + $0x17c] sm:$0xff]
        %v240 = vld [vmem:[#allocation2 + $0x184] sm:$0xff]
        %v241 = vld [vmem:[#allocation2 + $0x18c] sm:$0xf]
        %v242 = vld [vmem:[#allocation2 + $0x190] sm:$0xff]
        %v243 = vld [vmem:[#allocation2 + $0x198] sm:$0xff]
        %v244 = vld [vmem:[#allocation2 + $0x1a0] sm:$0xf]
        %v245 = vld [vmem:[#allocation2 + $0x1a4] sm:$0xff]
        %v246 = vld [vmem:[#allocation2 + $0x1ac] sm:$0xff]
        %v247 = vld [vmem:[#allocation2 + $0x1b4] sm:$0xf]
        %v248 = vld [vmem:[#allocation2 + $0x1b8] sm:$0xff]
        %v249 = vld [vmem:[#allocation2 + $0x1c0] sm:$0xff]
        %v250 = vld [vmem:[#allocation2 + $0x1c8] sm:$0xf]
        %v251 = vld [vmem:[#allocation2 + $0x1cc] sm:$0xff]
        %v252 = vld [vmem:[#allocation2 + $0x1d4] sm:$0xff]
        %v253 = vld [vmem:[#allocation2 + $0x1dc] sm:$0xf]
        %v254 = vld [vmem:[#allocation2 + $0x1e0] sm:$0xff]
        %v255 = vld [vmem:[#allocation2 + $0x1e8] sm:$0xff]
        %v256 = vld [vmem:[#allocation2 + $0x1f0] sm:$0xf]
        %v257 = vld [vmem:[#allocation2 + $0x1f4] sm:$0xff]
        %v258 = vld [vmem:[#allocation2 + $0x1fc] sm:$0xff]
        %v259 = vld [vmem:[#allocation2 + $0x204] sm:$0xf]
        %v260 = vld [vmem:[#allocation2 + $0x208] sm:$0xff]
        %v261 = vld [vmem:[#allocation2 + $0x210] sm:$0xff]
        %v262 = vld [vmem:[#allocation2 + $0x218] sm:$0xf]
        %v263 = vld [vmem:[#allocation2 + $0x21c] sm:$0xff]
        %v264 = vld [vmem:[#allocation2 + $0x224] sm:$0xff]
        %v265 = vld [vmem:[#allocation2 + $0x22c] sm:$0xf]
        %v266 = vld [vmem:[#allocation2 + $0x230] sm:$0xff]
        %v267 = vld [vmem:[#allocation2 + $0x238] sm:$0xff]
        %v268 = vld [vmem:[#allocation2 + $0x240] sm:$0xf]
        %v269 = vld [vmem:[#allocation2 + $0x244] sm:$0xff]
        %v270 = vld [vmem:[#allocation2 + $0x24c] sm:$0xff]
        %v271 = vld [vmem:[#allocation2 + $0x254] sm:$0xf]
        %v272 = vld [vmem:[#allocation2 + $0x258] sm:$0xff]
        %v273 = vld [vmem:[#allocation2 + $0x260] sm:$0xff]
        %v274 = vld [vmem:[#allocation2 + $0x268] sm:$0xf]
        %v275 = vld [vmem:[#allocation2 + $0x26c] sm:$0xff]
        %v276 = vld [vmem:[#allocation2 + $0x274] sm:$0xff]
        %v277 = vld [vmem:[#allocation2 + $0x27c] sm:$0xf]
        %v278 = vld [vmem:[%s2] ss:$8 sm:$0xf]
        %v279 = vld [vmem:[%s2] ss:$8 sm:$0x10]
        %v280 = vor.u32 %v278, %v279
        %v283 = vunpack.c.l.s4 1966171168
        %v284 = vunpack.c.0.s8 %v283
        %v285 = vlaneseq
        %v286 = vshrl.u32 %v285, 7
        %v287 = vsub.s32 %v284, %v286
        %v288 = vrot.slane %v181, %v287
        %v289 = vcombine.high %v288, %v288
        %v291 = vunpack.c.l.s4 1966171168
        %v292 = vunpack.c.0.s8 %v291
        %v293 = vlaneseq
        %v294 = vshrl.u32 %v293, 7
        %v295 = vsub.s32 %v292, %v294
        %v296 = vrot.slane %v288, %v295
        %v298 = vunpack.c.l.s4 1966171168
        %v299 = vunpack.c.0.s8 %v298
        %v300 = vlaneseq
        %v301 = vshrl.u32 %v300, 7
        %v302 = vsub.s32 %v299, %v301
        %v303 = vrot.slane %v289, %v302
        %v402 = vunpack.c.l.b16 %v182
        %v403 = vunpack.c.h.b16 %v182
        %v404 = vunpack.c.l.b16 %v183
        %v405 = vunpack.c.h.b16 %v183
        %v406 = vunpack.c.l.b16 %v184
        %v407 = vunpack.c.l.b16 %v185
        %v408 = vunpack.c.h.b16 %v185
        %v409 = vunpack.c.l.b16 %v186
        %v410 = vunpack.c.h.b16 %v186
        %v411 = vunpack.c.l.b16 %v187
        %v412 = vunpack.c.l.b16 %v188
        %v413 = vunpack.c.h.b16 %v188
        %v414 = vunpack.c.l.b16 %v189
        %v415 = vunpack.c.h.b16 %v189
        %v416 = vunpack.c.l.b16 %v190
        %v417 = vunpack.c.l.b16 %v191
        %v418 = vunpack.c.h.b16 %v191
        %v419 = vunpack.c.l.b16 %v192
        %v420 = vunpack.c.h.b16 %v192
        %v421 = vunpack.c.l.b16 %v193
        %v422 = vunpack.c.l.b16 %v194
        %v423 = vunpack.c.h.b16 %v194
        %v424 = vunpack.c.l.b16 %v195
        %v425 = vunpack.c.h.b16 %v195
        %v426 = vunpack.c.l.b16 %v196
        %v427 = vunpack.c.l.b16 %v197
        %v428 = vunpack.c.h.b16 %v197
        %v429 = vunpack.c.l.b16 %v198
        %v430 = vunpack.c.h.b16 %v198
        %v431 = vunpack.c.l.b16 %v199
        %v432 = vunpack.c.l.b16 %v200
        %v433 = vunpack.c.h.b16 %v200
        %v434 = vunpack.c.l.b16 %v201
        %v435 = vunpack.c.h.b16 %v201
        %v436 = vunpack.c.l.b16 %v202
        %v437 = vunpack.c.l.b16 %v203
        %v438 = vunpack.c.h.b16 %v203
        %v439 = vunpack.c.l.b16 %v204
        %v440 = vunpack.c.h.b16 %v204
        %v441 = vunpack.c.l.b16 %v205
        %v442 = vunpack.c.l.b16 %v206
        %v443 = vunpack.c.h.b16 %v206
        %v444 = vunpack.c.l.b16 %v207
        %v445 = vunpack.c.h.b16 %v207
        %v446 = vunpack.c.l.b16 %v208
        %v447 = vunpack.c.l.b16 %v209
        %v448 = vunpack.c.h.b16 %v209
        %v449 = vunpack.c.l.b16 %v210
        %v450 = vunpack.c.h.b16 %v210
        %v451 = vunpack.c.l.b16 %v211
        %v452 = vunpack.c.l.b16 %v212
        %v453 = vunpack.c.h.b16 %v212
        %v454 = vunpack.c.l.b16 %v213
        %v455 = vunpack.c.h.b16 %v213
        %v456 = vunpack.c.l.b16 %v214
        %v457 = vunpack.c.l.b16 %v215
        %v458 = vunpack.c.h.b16 %v215
        %v459 = vunpack.c.l.b16 %v216
        %v460 = vunpack.c.h.b16 %v216
        %v461 = vunpack.c.l.b16 %v217
        %v462 = vunpack.c.l.b16 %v218
        %v463 = vunpack.c.h.b16 %v218
        %v464 = vunpack.c.l.b16 %v219
        %v465 = vunpack.c.h.b16 %v219
        %v466 = vunpack.c.l.b16 %v220
        %v467 = vunpack.c.l.b16 %v221
        %v468 = vunpack.c.h.b16 %v221
        %v469 = vunpack.c.l.b16 %v222
        %v470 = vunpack.c.h.b16 %v222
        %v471 = vunpack.c.l.b16 %v223
        %v472 = vunpack.c.l.b16 %v224
        %v473 = vunpack.c.h.b16 %v224
        %v474 = vunpack.c.l.b16 %v225
        %v475 = vunpack.c.h.b16 %v225
        %v476 = vunpack.c.l.b16 %v226
        %v477 = vunpack.c.l.b16 %v227
        %v478 = vunpack.c.h.b16 %v227
        %v479 = vunpack.c.l.b16 %v228
        %v480 = vunpack.c.h.b16 %v228
        %v481 = vunpack.c.l.b16 %v229
        %v482 = vunpack.c.l.b16 %v230
        %v483 = vunpack.c.h.b16 %v230
        %v484 = vunpack.c.l.b16 %v231
        %v485 = vunpack.c.h.b16 %v231
        %v486 = vunpack.c.l.b16 %v232
        %v487 = vunpack.c.l.b16 %v233
        %v488 = vunpack.c.h.b16 %v233
        %v489 = vunpack.c.l.b16 %v234
        %v490 = vunpack.c.h.b16 %v234
        %v491 = vunpack.c.l.b16 %v235
        %v492 = vunpack.c.l.b16 %v236
        %v493 = vunpack.c.h.b16 %v236
        %v494 = vunpack.c.l.b16 %v237
        %v495 = vunpack.c.h.b16 %v237
        %v496 = vunpack.c.l.b16 %v238
        %v497 = vunpack.c.l.b16 %v239
        %v498 = vunpack.c.h.b16 %v239
        %v499 = vunpack.c.l.b16 %v240
        %v500 = vunpack.c.h.b16 %v240
        %v501 = vunpack.c.l.b16 %v241
        %v502 = vunpack.c.l.b16 %v242
        %v503 = vunpack.c.h.b16 %v242
        %v504 = vunpack.c.l.b16 %v243
        %v505 = vunpack.c.h.b16 %v243
        %v506 = vunpack.c.l.b16 %v244
        %v507 = vunpack.c.l.b16 %v245
        %v508 = vunpack.c.h.b16 %v245
        %v509 = vunpack.c.l.b16 %v246
        %v510 = vunpack.c.h.b16 %v246
        %v511 = vunpack.c.l.b16 %v247
        %v512 = vunpack.c.l.b16 %v248
        %v513 = vunpack.c.h.b16 %v248
        %v514 = vunpack.c.l.b16 %v249
        %v515 = vunpack.c.h.b16 %v249
        %v516 = vunpack.c.l.b16 %v250
        %v517 = vunpack.c.l.b16 %v251
        %v518 = vunpack.c.h.b16 %v251
        %v519 = vunpack.c.l.b16 %v252
        %v520 = vunpack.c.h.b16 %v252
        %v521 = vunpack.c.l.b16 %v253
        %v522 = vunpack.c.l.b16 %v254
        %v523 = vunpack.c.h.b16 %v254
        %v524 = vunpack.c.l.b16 %v255
        %v525 = vunpack.c.h.b16 %v255
        %v526 = vunpack.c.l.b16 %v256
        %v527 = vunpack.c.l.b16 %v257
        %v528 = vunpack.c.h.b16 %v257
        %v529 = vunpack.c.l.b16 %v258
        %v530 = vunpack.c.h.b16 %v258
        %v531 = vunpack.c.l.b16 %v259
        %v532 = vunpack.c.l.b16 %v260
        %v533 = vunpack.c.h.b16 %v260
        %v534 = vunpack.c.l.b16 %v261
        %v535 = vunpack.c.h.b16 %v261
        %v536 = vunpack.c.l.b16 %v262
        %v537 = vunpack.c.l.b16 %v263
        %v538 = vunpack.c.h.b16 %v263
        %v539 = vunpack.c.l.b16 %v264
        %v540 = vunpack.c.h.b16 %v264
        %v541 = vunpack.c.l.b16 %v265
        %v542 = vunpack.c.l.b16 %v266
        %v543 = vunpack.c.h.b16 %v266
        %v544 = vunpack.c.l.b16 %v267
        %v545 = vunpack.c.h.b16 %v267
        %v546 = vunpack.c.l.b16 %v268
        %v547 = vunpack.c.l.b16 %v269
        %v548 = vunpack.c.h.b16 %v269
        %v549 = vunpack.c.l.b16 %v270
        %v550 = vunpack.c.h.b16 %v270
        %v551 = vunpack.c.l.b16 %v271
        %v552 = vunpack.c.l.b16 %v272
        %v553 = vunpack.c.h.b16 %v272
        %v554 = vunpack.c.l.b16 %v273
        %v555 = vunpack.c.h.b16 %v273
        %v556 = vunpack.c.l.b16 %v274
        %v557 = vunpack.c.l.b16 %v275
        %v558 = vunpack.c.h.b16 %v275
        %v559 = vunpack.c.l.b16 %v276
        %v560 = vunpack.c.h.b16 %v276
        %v561 = vunpack.c.l.b16 %v277
        %v562 = vpack.c.b16 %v407, %v402
        %v563 = vpack.c.b16 %v408, %v403
        %v564 = vpack.c.b16 %v409, %v404
        %v565 = vpack.c.b16 %v410, %v405
        %v566 = vpack.c.b16 %v411, %v406
        %v567 = vpack.c.b16 %v417, %v412
        %v568 = vpack.c.b16 %v418, %v413
        %v569 = vpack.c.b16 %v419, %v414
        %v570 = vpack.c.b16 %v420, %v415
        %v571 = vpack.c.b16 %v421, %v416
        %v572 = vpack.c.b16 %v427, %v422
        %v573 = vpack.c.b16 %v428, %v423
        %v574 = vpack.c.b16 %v429, %v424
        %v575 = vpack.c.b16 %v430, %v425
        %v576 = vpack.c.b16 %v431, %v426
        %v577 = vpack.c.b16 %v437, %v432
        %v578 = vpack.c.b16 %v438, %v433
        %v579 = vpack.c.b16 %v439, %v434
        %v580 = vpack.c.b16 %v440, %v435
        %v581 = vpack.c.b16 %v441, %v436
        %v582 = vpack.c.b16 %v447, %v442
        %v583 = vpack.c.b16 %v448, %v443
        %v584 = vpack.c.b16 %v449, %v444
        %v585 = vpack.c.b16 %v450, %v445
        %v586 = vpack.c.b16 %v451, %v446
        %v587 = vpack.c.b16 %v457, %v452
        %v588 = vpack.c.b16 %v458, %v453
        %v589 = vpack.c.b16 %v459, %v454
        %v590 = vpack.c.b16 %v460, %v455
        %v591 = vpack.c.b16 %v461, %v456
        %v592 = vpack.c.b16 %v467, %v462
        %v593 = vpack.c.b16 %v468, %v463
        %v594 = vpack.c.b16 %v469, %v464
        %v595 = vpack.c.b16 %v470, %v465
        %v596 = vpack.c.b16 %v471, %v466
        %v597 = vpack.c.b16 %v477, %v472
        %v598 = vpack.c.b16 %v478, %v473
        %v599 = vpack.c.b16 %v479, %v474
        %v600 = vpack.c.b16 %v480, %v475
        %v601 = vpack.c.b16 %v481, %v476
        %v602 = vpack.c.b16 %v487, %v482
        %v603 = vpack.c.b16 %v488, %v483
        %v604 = vpack.c.b16 %v489, %v484
        %v605 = vpack.c.b16 %v490, %v485
        %v606 = vpack.c.b16 %v491, %v486
        %v607 = vpack.c.b16 %v497, %v492
        %v608 = vpack.c.b16 %v498, %v493
        %v609 = vpack.c.b16 %v499, %v494
        %v610 = vpack.c.b16 %v500, %v495
        %v611 = vpack.c.b16 %v501, %v496
        %v612 = vpack.c.b16 %v507, %v502
        %v613 = vpack.c.b16 %v508, %v503
        %v614 = vpack.c.b16 %v509, %v504
        %v615 = vpack.c.b16 %v510, %v505
        %v616 = vpack.c.b16 %v511, %v506
        %v617 = vpack.c.b16 %v517, %v512
        %v618 = vpack.c.b16 %v518, %v513
        %v619 = vpack.c.b16 %v519, %v514
        %v620 = vpack.c.b16 %v520, %v515
        %v621 = vpack.c.b16 %v521, %v516
        %v622 = vpack.c.b16 %v527, %v522
        %v623 = vpack.c.b16 %v528, %v523
        %v624 = vpack.c.b16 %v529, %v524
        %v625 = vpack.c.b16 %v530, %v525
        %v626 = vpack.c.b16 %v531, %v526
        %v627 = vpack.c.b16 %v537, %v532
        %v628 = vpack.c.b16 %v538, %v533
        %v629 = vpack.c.b16 %v539, %v534
        %v630 = vpack.c.b16 %v540, %v535
        %v631 = vpack.c.b16 %v541, %v536
        %v632 = vpack.c.b16 %v547, %v542
        %v633 = vpack.c.b16 %v548, %v543
        %v634 = vpack.c.b16 %v549, %v544
        %v635 = vpack.c.b16 %v550, %v545
        %v636 = vpack.c.b16 %v551, %v546
        %v637 = vpack.c.b16 %v557, %v552
        %v638 = vpack.c.b16 %v558, %v553
        %v639 = vpack.c.b16 %v559, %v554
        %v640 = vpack.c.b16 %v560, %v555
        %v641 = vpack.c.b16 %v561, %v556
        %v723 = vlaneseq
        %v724 = vshrl.u32 %v723, 7
        %v725 = vsub.s32 0, %v724
        %v726 = vrot.slane %v280, %v725
        %v727 = vlaneseq
        %v728 = vshrl.u32 %v727, 7
        %v729 = vsub.s32 1, %v728
        %v730 = vrot.slane %v280, %v729
        %v731 = vlaneseq
        %v732 = vshrl.u32 %v731, 7
        %v733 = vsub.s32 2, %v732
        %v734 = vrot.slane %v280, %v733
        %v735 = vlaneseq
        %v736 = vshrl.u32 %v735, 7
        %v737 = vsub.s32 3, %v736
        %v738 = vrot.slane %v280, %v737
        %v739 = vlaneseq
        %v740 = vshrl.u32 %v739, 7
        %v741 = vsub.s32 4, %v740
        %v742 = vrot.slane %v280, %v741
        %748 = vmatprep.subr.bf16.mxu0 %v563
        %749 = vmatpush1.bf16.msra.mxu0 %v562
        %750 = vmatprep.subr.bf16.mxu0 %v568
        %751 = vmatpush1.bf16.msra.mxu0 %v567
        %752 = vmatprep.subr.bf16.mxu0 %v573
        %753 = vmatpush1.bf16.msra.mxu0 %v572
        %754 = vmatprep.subr.bf16.mxu0 %v578
        %755 = vmatpush1.bf16.msra.mxu0 %v577
        %756 = vmatprep.subr.bf16.mxu0 %v583
        %757 = vmatpush1.bf16.msra.mxu0 %v582
        %758 = vmatprep.subr.bf16.mxu0 %v588
        %759 = vmatpush1.bf16.msra.mxu0 %v587
        %760 = vmatprep.subr.bf16.mxu0 %v593
        %761 = vmatpush1.bf16.msra.mxu0 %v592
        %762 = vmatprep.subr.bf16.mxu0 %v598
        %763 = vmatpush1.bf16.msra.mxu0 %v597
        %764 = vmatprep.subr.bf16.mxu0 %v603
        %765 = vmatpush1.bf16.msra.mxu0 %v602
        %766 = vmatprep.subr.bf16.mxu0 %v608
        %767 = vmatpush1.bf16.msra.mxu0 %v607
        %768 = vmatprep.subr.bf16.mxu0 %v613
        %769 = vmatpush1.bf16.msra.mxu0 %v612
        %770 = vmatprep.subr.bf16.mxu0 %v618
        %771 = vmatpush1.bf16.msra.mxu0 %v617
        %772 = vmatprep.subr.bf16.mxu0 %v623
        %773 = vmatpush1.bf16.msra.mxu0 %v622
        %774 = vmatprep.subr.bf16.mxu0 %v628
        %775 = vmatpush1.bf16.msra.mxu0 %v627
        %776 = vmatprep.subr.bf16.mxu0 %v633
        %777 = vmatpush1.bf16.msra.mxu0 %v632
        %778 = vmatprep.subr.bf16.mxu0 %v638
        %779 = vmatpush1.bf16.msra.mxu0 %v637
        %780 = vmatprep.mubr.bf16.mxu0 %v303
        %781 = vmatmul.mubr.bf16.gmra.mrb[0].mxu0 %v296
        %v782 = vpop.f32.mrb[0].mxu0
        %v783 = vadd.f32 %v726, %v782
        %v784 = vpop.f32.mrb[0].mxu0
        %v785 = vadd.f32 %v730, %v784
        %v786 = vpop.f32.mrb[0].mxu0
        %v787 = vpop.f32.mrb[0].mxu0
        %788 = vdwg.mxu0
        %789 = vmatprep.subr.bf16.mxu0 %v565
        %790 = vmatpush1.bf16.msra.mxu0 %v564
        %791 = vmatprep.subr.bf16.mxu0 %v570
        %792 = vmatpush1.bf16.msra.mxu0 %v569
        %793 = vmatprep.subr.bf16.mxu0 %v575
        %794 = vmatpush1.bf16.msra.mxu0 %v574
        %795 = vmatprep.subr.bf16.mxu0 %v580
        %796 = vmatpush1.bf16.msra.mxu0 %v579
        %797 = vmatprep.subr.bf16.mxu0 %v585
        %798 = vmatpush1.bf16.msra.mxu0 %v584
        %799 = vmatprep.subr.bf16.mxu0 %v590
        %800 = vmatpush1.bf16.msra.mxu0 %v589
        %801 = vmatprep.subr.bf16.mxu0 %v595
        %802 = vmatpush1.bf16.msra.mxu0 %v594
        %803 = vmatprep.subr.bf16.mxu0 %v600
        %804 = vmatpush1.bf16.msra.mxu0 %v599
        %805 = vmatprep.subr.bf16.mxu0 %v605
        %806 = vmatpush1.bf16.msra.mxu0 %v604
        %807 = vmatprep.subr.bf16.mxu0 %v610
        %808 = vmatpush1.bf16.msra.mxu0 %v609
        %809 = vmatprep.subr.bf16.mxu0 %v615
        %810 = vmatpush1.bf16.msra.mxu0 %v614
        %811 = vmatprep.subr.bf16.mxu0 %v620
        %812 = vmatpush1.bf16.msra.mxu0 %v619
        %813 = vmatprep.subr.bf16.mxu0 %v625
        %814 = vmatpush1.bf16.msra.mxu0 %v624
        %815 = vmatprep.subr.bf16.mxu0 %v630
        %816 = vmatpush1.bf16.msra.mxu0 %v629
        %817 = vmatprep.subr.bf16.mxu0 %v635
        %818 = vmatpush1.bf16.msra.mxu0 %v634
        %819 = vmatprep.subr.bf16.mxu0 %v640
        %820 = vmatpush1.bf16.msra.mxu0 %v639
        %821 = vmatprep.mubr.bf16.mxu0 %v303
        %822 = vmatmul.mubr.bf16.gmra.mrb[0].mxu0 %v296
        %v823 = vpop.f32.mrb[0].mxu0
        %v824 = vadd.f32 %v734, %v823
        %v825 = vpop.f32.mrb[0].mxu0
        %v826 = vadd.f32 %v738, %v825
        %v827 = vpop.f32.mrb[0].mxu0
        %v828 = vpop.f32.mrb[0].mxu0
        %829 = vdwg.mxu0
        %830 = vmatprep.subr.bf16.mxu0 0
        %831 = vmatpush1.bf16.msra.mxu0 %v566
        %832 = vmatprep.subr.bf16.mxu0 0
        %833 = vmatpush1.bf16.msra.mxu0 %v571
        %834 = vmatprep.subr.bf16.mxu0 0
        %835 = vmatpush1.bf16.msra.mxu0 %v576
        %836 = vmatprep.subr.bf16.mxu0 0
        %837 = vmatpush1.bf16.msra.mxu0 %v581
        %838 = vmatprep.subr.bf16.mxu0 0
        %839 = vmatpush1.bf16.msra.mxu0 %v586
        %840 = vmatprep.subr.bf16.mxu0 0
        %841 = vmatpush1.bf16.msra.mxu0 %v591
        %842 = vmatprep.subr.bf16.mxu0 0
        %843 = vmatpush1.bf16.msra.mxu0 %v596
        %844 = vmatprep.subr.bf16.mxu0 0
        %845 = vmatpush1.bf16.msra.mxu0 %v601
        %846 = vmatprep.subr.bf16.mxu0 0
        %847 = vmatpush1.bf16.msra.mxu0 %v606
        %848 = vmatprep.subr.bf16.mxu0 0
        %849 = vmatpush1.bf16.msra.mxu0 %v611
        %850 = vmatprep.subr.bf16.mxu0 0
        %851 = vmatpush1.bf16.msra.mxu0 %v616
        %852 = vmatprep.subr.bf16.mxu0 0
        %853 = vmatpush1.bf16.msra.mxu0 %v621
        %854 = vmatprep.subr.bf16.mxu0 0
        %855 = vmatpush1.bf16.msra.mxu0 %v626
        %856 = vmatprep.subr.bf16.mxu0 0
        %857 = vmatpush1.bf16.msra.mxu0 %v631
        %858 = vmatprep.subr.bf16.mxu0 0
        %859 = vmatpush1.bf16.msra.mxu0 %v636
        %860 = vmatprep.subr.bf16.mxu0 0
        %861 = vmatpush1.bf16.msra.mxu0 %v641
        %862 = vmatprep.mubr.bf16.mxu0 %v303
        %863 = vmatmul.mubr.bf16.gmra.mrb[0].mxu0 %v296
        %v864 = vpop.f32.mrb[0].mxu0
        %v865 = vadd.f32 %v742, %v864
        %v866 = vpop.f32.mrb[0].mxu0
        %v867 = vpop.f32.mrb[0].mxu0
        %v868 = vpop.f32.mrb[0].mxu0
        %869 = vdwg.mxu0
        %v870 = vmax.f32 %v783, 0.0
        %v871 = vmax.f32 %v785, 0.0
        %v872 = vmax.f32 %v824, 0.0
        %v873 = vmax.f32 %v826, 0.0
        %v874 = vmax.f32 %v865, 0.0
        %v876 = vrot.slane %v871, 7
        %v879 = vrot.slane %v872, 6
        %v882 = vrot.slane %v873, 5
        %v885 = vrot.slane %v874, 4
        %vm887 = vcmask 1040384
        %v888 = vsel %vm887, %v870, %v876
        %vm889 = vcmask 1041408
        %v890 = vsel %vm889, %v888, %v879
        %vm891 = vcmask 1042432
        %v892 = vsel %vm891, %v890, %v882
        %vm893 = vcmask 1043456
        %v894 = vsel %vm893, %v892, %v885
        %v895 = vld [vmem:[#allocation2 + $0x280] sm:$0xff]
        %v896 = vld [vmem:[#allocation2 + $0x288] sm:$0xf]
        %v897 = vld [vmem:[#allocation2 + $0x294] sm:$0xff]
        %v898 = vld [vmem:[#allocation2 + $0x29c] sm:$0xf]
        %v899 = vld [vmem:[#allocation2 + $0x2a8] sm:$0xff]
        %v900 = vld [vmem:[#allocation2 + $0x2b0] sm:$0xf]
        %v901 = vld [vmem:[#allocation2 + $0x2bc] sm:$0xff]
        %v902 = vld [vmem:[#allocation2 + $0x2c4] sm:$0xf]
        %v903 = vld [vmem:[#allocation2 + $0x2d0] sm:$0xff]
        %v904 = vld [vmem:[#allocation2 + $0x2d8] sm:$0xf]
        %v905 = vld [vmem:[#allocation2 + $0x2e4] sm:$0xff]
        %v906 = vld [vmem:[#allocation2 + $0x2ec] sm:$0xf]
        %v907 = vld [vmem:[#allocation2 + $0x2f8] sm:$0xff]
        %v908 = vld [vmem:[#allocation2 + $0x300] sm:$0xf]
        %v909 = vld [vmem:[#allocation2 + $0x30c] sm:$0xff]
        %v910 = vld [vmem:[#allocation2 + $0x314] sm:$0xf]
        %v911 = vld [vmem:[#allocation2 + $0x320] sm:$0xff]
        %v912 = vld [vmem:[#allocation2 + $0x328] sm:$0xf]
        %v913 = vld [vmem:[#allocation2 + $0x334] sm:$0xff]
        %v914 = vld [vmem:[#allocation2 + $0x33c] sm:$0xf]
        %v915 = vld [vmem:[#allocation2 + $0x348] sm:$0xff]
        %v916 = vld [vmem:[#allocation2 + $0x350] sm:$0xf]
        %v917 = vld [vmem:[#allocation2 + $0x35c] sm:$0xff]
        %v918 = vld [vmem:[#allocation2 + $0x364] sm:$0xf]
        %v919 = vld [vmem:[#allocation2 + $0x370] sm:$0xff]
        %v920 = vld [vmem:[#allocation2 + $0x378] sm:$0xf]
        %v921 = vld [vmem:[#allocation2 + $0x384] sm:$0xff]
        %v922 = vld [vmem:[#allocation2 + $0x38c] sm:$0xf]
        %v923 = vld [vmem:[#allocation2 + $0x398] sm:$0xff]
        %v924 = vld [vmem:[#allocation2 + $0x3a0] sm:$0xf]
        %v925 = vld [vmem:[#allocation2 + $0x3ac] sm:$0xff]
        %v926 = vld [vmem:[#allocation2 + $0x3b4] sm:$0xf]
        %v927 = vld [vmem:[#allocation2 + $0x3c0] sm:$0xff]
        %v928 = vld [vmem:[#allocation2 + $0x3c8] sm:$0xf]
        %v929 = vld [vmem:[#allocation2 + $0x3d4] sm:$0xff]
        %v930 = vld [vmem:[#allocation2 + $0x3dc] sm:$0xf]
        %v931 = vld [vmem:[#allocation2 + $0x3e8] sm:$0xff]
        %v932 = vld [vmem:[#allocation2 + $0x3f0] sm:$0xf]
        %v933 = vld [vmem:[#allocation2 + $0x3fc] sm:$0xff]
        %v934 = vld [vmem:[#allocation2 + $0x404] sm:$0xf]
        %s935 = scalar_lea.vmem %s2, 1
        %v936 = vld [vmem:[%s935] ss:$8 sm:$0x7]
        %s937 = scalar_lea.vmem %s2, 2
        %v938 = vld [vmem:[%s937] ss:$8 sm:$0x7]
        %v939 = vpack.c.bf16 %v894, %v894
        %v941 = vlaneseq
        %v942 = vshrl.u32 %v941, 7
        %v943 = vsub.s32 0, %v942
        %v944 = vrot.slane %v936, %v943
        %v945 = vlaneseq
        %v946 = vshrl.u32 %v945, 7
        %v947 = vsub.s32 1, %v946
        %v948 = vrot.slane %v936, %v947
        %v949 = vlaneseq
        %v950 = vshrl.u32 %v949, 7
        %v951 = vsub.s32 2, %v950
        %v952 = vrot.slane %v936, %v951
        %v988 = vunpack.c.l.b16 %v895
        %v989 = vunpack.c.h.b16 %v895
        %v990 = vunpack.c.l.b16 %v896
        %v991 = vunpack.c.l.b16 %v897
        %v992 = vunpack.c.h.b16 %v897
        %v993 = vunpack.c.l.b16 %v898
        %v994 = vunpack.c.l.b16 %v899
        %v995 = vunpack.c.h.b16 %v899
        %v996 = vunpack.c.l.b16 %v900
        %v997 = vunpack.c.l.b16 %v901
        %v998 = vunpack.c.h.b16 %v901
        %v999 = vunpack.c.l.b16 %v902
        %v1000 = vunpack.c.l.b16 %v903
        %v1001 = vunpack.c.h.b16 %v903
        %v1002 = vunpack.c.l.b16 %v904
        %v1003 = vunpack.c.l.b16 %v905
        %v1004 = vunpack.c.h.b16 %v905
        %v1005 = vunpack.c.l.b16 %v906
        %v1006 = vunpack.c.l.b16 %v907
        %v1007 = vunpack.c.h.b16 %v907
        %v1008 = vunpack.c.l.b16 %v908
        %v1009 = vunpack.c.l.b16 %v909
        %v1010 = vunpack.c.h.b16 %v909
        %v1011 = vunpack.c.l.b16 %v910
        %v1012 = vunpack.c.l.b16 %v911
        %v1013 = vunpack.c.h.b16 %v911
        %v1014 = vunpack.c.l.b16 %v912
        %v1015 = vunpack.c.l.b16 %v913
        %v1016 = vunpack.c.h.b16 %v913
        %v1017 = vunpack.c.l.b16 %v914
        %v1018 = vunpack.c.l.b16 %v915
        %v1019 = vunpack.c.h.b16 %v915
        %v1020 = vunpack.c.l.b16 %v916
        %v1021 = vunpack.c.l.b16 %v917
        %v1022 = vunpack.c.h.b16 %v917
        %v1023 = vunpack.c.l.b16 %v918
        %v1024 = vunpack.c.l.b16 %v919
        %v1025 = vunpack.c.h.b16 %v919
        %v1026 = vunpack.c.l.b16 %v920
        %v1027 = vunpack.c.l.b16 %v921
        %v1028 = vunpack.c.h.b16 %v921
        %v1029 = vunpack.c.l.b16 %v922
        %v1030 = vunpack.c.l.b16 %v923
        %v1031 = vunpack.c.h.b16 %v923
        %v1032 = vunpack.c.l.b16 %v924
        %v1033 = vunpack.c.l.b16 %v925
        %v1034 = vunpack.c.h.b16 %v925
        %v1035 = vunpack.c.l.b16 %v926
        %v1036 = vpack.c.b16 %v991, %v988
        %v1037 = vpack.c.b16 %v992, %v989
        %v1038 = vpack.c.b16 %v993, %v990
        %v1039 = vpack.c.b16 %v997, %v994
        %v1040 = vpack.c.b16 %v998, %v995
        %v1041 = vpack.c.b16 %v999, %v996
        %v1042 = vpack.c.b16 %v1003, %v1000
        %v1043 = vpack.c.b16 %v1004, %v1001
        %v1044 = vpack.c.b16 %v1005, %v1002
        %v1045 = vpack.c.b16 %v1009, %v1006
        %v1046 = vpack.c.b16 %v1010, %v1007
        %v1047 = vpack.c.b16 %v1011, %v1008
        %v1048 = vpack.c.b16 %v1015, %v1012
        %v1049 = vpack.c.b16 %v1016, %v1013
        %v1050 = vpack.c.b16 %v1017, %v1014
        %v1051 = vpack.c.b16 %v1021, %v1018
        %v1052 = vpack.c.b16 %v1022, %v1019
        %v1053 = vpack.c.b16 %v1023, %v1020
        %v1054 = vpack.c.b16 %v1027, %v1024
        %v1055 = vpack.c.b16 %v1028, %v1025
        %v1056 = vpack.c.b16 %v1029, %v1026
        %v1057 = vpack.c.b16 %v1033, %v1030
        %v1058 = vpack.c.b16 %v1034, %v1031
        %v1059 = vpack.c.b16 %v1035, %v1032
        %1084 = vmatprep.subr.bf16.mxu0 %v1037
        %1085 = vmatpush1.bf16.msra.mxu0 %v1036
        %1086 = vmatprep.subr.bf16.mxu0 %v1040
        %1087 = vmatpush1.bf16.msra.mxu0 %v1039
        %1088 = vmatprep.subr.bf16.mxu0 %v1043
        %1089 = vmatpush1.bf16.msra.mxu0 %v1042
        %1090 = vmatprep.subr.bf16.mxu0 %v1046
        %1091 = vmatpush1.bf16.msra.mxu0 %v1045
        %1092 = vmatprep.subr.bf16.mxu0 %v1049
        %1093 = vmatpush1.bf16.msra.mxu0 %v1048
        %1094 = vmatprep.subr.bf16.mxu0 %v1052
        %1095 = vmatpush1.bf16.msra.mxu0 %v1051
        %1096 = vmatprep.subr.bf16.mxu0 %v1055
        %1097 = vmatpush1.bf16.msra.mxu0 %v1054
        %1098 = vmatprep.subr.bf16.mxu0 %v1058
        %1099 = vmatpush1.bf16.msra.mxu0 %v1057
        %1100 = vmatprep.subr.bf16.mxu0 0
        %1101 = vmatpush1.bf16.msra.mxu0 0
        %1102 = vmatprep.subr.bf16.mxu0 0
        %1103 = vmatpush1.bf16.msra.mxu0 0
        %1104 = vmatprep.subr.bf16.mxu0 0
        %1105 = vmatpush1.bf16.msra.mxu0 0
        %1106 = vmatprep.subr.bf16.mxu0 0
        %1107 = vmatpush1.bf16.msra.mxu0 0
        %1108 = vmatprep.subr.bf16.mxu0 0
        %1109 = vmatpush1.bf16.msra.mxu0 0
        %1110 = vmatprep.subr.bf16.mxu0 0
        %1111 = vmatpush1.bf16.msra.mxu0 0
        %1112 = vmatprep.subr.bf16.mxu0 0
        %1113 = vmatpush1.bf16.msra.mxu0 0
        %1114 = vmatprep.subr.bf16.mxu0 0
        %1115 = vmatpush1.bf16.msra.mxu0 0
        %1116 = vmatprep.mubr.bf16.mxu0 0
        %1117 = vmatmul.mubr.bf16.gmra.mrb[0].mxu0 %v939
        %v1118 = vpop.f32.mrb[0].mxu0
        %v1119 = vadd.f32 %v944, %v1118
        %v1120 = vpop.f32.mrb[0].mxu0
        %v1121 = vadd.f32 %v948, %v1120
        %v1122 = vpop.f32.mrb[0].mxu0
        %v1123 = vpop.f32.mrb[0].mxu0
        %1124 = vdwg.mxu0
        %1125 = vmatprep.subr.bf16.mxu0 0
        %1126 = vmatpush1.bf16.msra.mxu0 %v1038
        %1127 = vmatprep.subr.bf16.mxu0 0
        %1128 = vmatpush1.bf16.msra.mxu0 %v1041
        %1129 = vmatprep.subr.bf16.mxu0 0
        %1130 = vmatpush1.bf16.msra.mxu0 %v1044
        %1131 = vmatprep.subr.bf16.mxu0 0
        %1132 = vmatpush1.bf16.msra.mxu0 %v1047
        %1133 = vmatprep.subr.bf16.mxu0 0
        %1134 = vmatpush1.bf16.msra.mxu0 %v1050
        %1135 = vmatprep.subr.bf16.mxu0 0
        %1136 = vmatpush1.bf16.msra.mxu0 %v1053
        %1137 = vmatprep.subr.bf16.mxu0 0
        %1138 = vmatpush1.bf16.msra.mxu0 %v1056
        %1139 = vmatprep.subr.bf16.mxu0 0
        %1140 = vmatpush1.bf16.msra.mxu0 %v1059
        %1141 = vmatprep.subr.bf16.mxu0 0
        %1142 = vmatpush1.bf16.msra.mxu0 0
        %1143 = vmatprep.subr.bf16.mxu0 0
        %1144 = vmatpush1.bf16.msra.mxu0 0
        %1145 = vmatprep.subr.bf16.mxu0 0
        %1146 = vmatpush1.bf16.msra.mxu0 0
        %1147 = vmatprep.subr.bf16.mxu0 0
        %1148 = vmatpush1.bf16.msra.mxu0 0
        %1149 = vmatprep.subr.bf16.mxu0 0
        %1150 = vmatpush1.bf16.msra.mxu0 0
        %1151 = vmatprep.subr.bf16.mxu0 0
        %1152 = vmatpush1.bf16.msra.mxu0 0
        %1153 = vmatprep.subr.bf16.mxu0 0
        %1154 = vmatpush1.bf16.msra.mxu0 0
        %1155 = vmatprep.subr.bf16.mxu0 0
        %1156 = vmatpush1.bf16.msra.mxu0 0
        %1157 = vmatprep.mubr.bf16.mxu0 0
        %1158 = vmatmul.mubr.bf16.gmra.mrb[0].mxu0 %v939
        %v1159 = vpop.f32.mrb[0].mxu0
        %v1160 = vadd.f32 %v952, %v1159
        %v1161 = vpop.f32.mrb[0].mxu0
        %v1162 = vpop.f32.mrb[0].mxu0
        %v1163 = vpop.f32.mrb[0].mxu0
        %1164 = vdwg.mxu0
        %v1173 = vunpack.c.l.b16 %v927
        %v1174 = vunpack.c.h.b16 %v927
        %v1175 = vunpack.c.l.b16 %v928
        %v1176 = vunpack.c.l.b16 %v929
        %v1177 = vunpack.c.h.b16 %v929
        %v1178 = vunpack.c.l.b16 %v930
        %v1179 = vunpack.c.l.b16 %v931
        %v1180 = vunpack.c.h.b16 %v931
        %v1181 = vunpack.c.l.b16 %v932
        %v1182 = vunpack.c.l.b16 %v933
        %v1183 = vunpack.c.h.b16 %v933
        %v1184 = vunpack.c.l.b16 %v934
        %v1185 = vpack.c.b16 %v1176, %v1173
        %v1186 = vpack.c.b16 %v1177, %v1174
        %v1187 = vpack.c.b16 %v1178, %v1175
        %v1188 = vpack.c.b16 %v1182, %v1179
        %v1189 = vpack.c.b16 %v1183, %v1180
        %v1190 = vpack.c.b16 %v1184, %v1181
        %v1198 = vlaneseq
        %v1199 = vshrl.u32 %v1198, 7
        %v1200 = vsub.s32 0, %v1199
        %v1201 = vrot.slane %v938, %v1200
        %v1202 = vlaneseq
        %v1203 = vshrl.u32 %v1202, 7
        %v1204 = vsub.s32 1, %v1203
        %v1205 = vrot.slane %v938, %v1204
        %v1206 = vlaneseq
        %v1207 = vshrl.u32 %v1206, 7
        %v1208 = vsub.s32 2, %v1207
        %v1209 = vrot.slane %v938, %v1208
        %vm1213 = vcmask 261120
        %v1215 = vsel %vm1213, 0, 0
        %1217 = vmatprep.subr.bf16.mxu0 %v1186
        %1218 = vmatpush1.bf16.msra.mxu0 %v1185
        %1219 = vmatprep.subr.bf16.mxu0 %v1189
        %1220 = vmatpush1.bf16.msra.mxu0 %v1188
        %1221 = vmatprep.subr.bf16.mxu0 0
        %1222 = vmatpush1.bf16.msra.mxu0 0
        %1223 = vmatprep.subr.bf16.mxu0 0
        %1224 = vmatpush1.bf16.msra.mxu0 0
        %1225 = vmatprep.subr.bf16.mxu0 0
        %1226 = vmatpush1.bf16.msra.mxu0 0
        %1227 = vmatprep.subr.bf16.mxu0 0
        %1228 = vmatpush1.bf16.msra.mxu0 0
        %1229 = vmatprep.subr.bf16.mxu0 0
        %1230 = vmatpush1.bf16.msra.mxu0 0
        %1231 = vmatprep.subr.bf16.mxu0 0
        %1232 = vmatpush1.bf16.msra.mxu0 0
        %1233 = vmatprep.subr.bf16.mxu0 0
        %1234 = vmatpush1.bf16.msra.mxu0 0
        %1235 = vmatprep.subr.bf16.mxu0 0
        %1236 = vmatpush1.bf16.msra.mxu0 0
        %1237 = vmatprep.subr.bf16.mxu0 0
        %1238 = vmatpush1.bf16.msra.mxu0 0
        %1239 = vmatprep.subr.bf16.mxu0 0
        %1240 = vmatpush1.bf16.msra.mxu0 0
        %1241 = vmatprep.subr.bf16.mxu0 0
        %1242 = vmatpush1.bf16.msra.mxu0 0
        %1243 = vmatprep.subr.bf16.mxu0 0
        %1244 = vmatpush1.bf16.msra.mxu0 0
        %1245 = vmatprep.subr.bf16.mxu0 0
        %1246 = vmatpush1.bf16.msra.mxu0 0
        %1247 = vmatprep.subr.bf16.mxu0 0
        %1248 = vmatpush1.bf16.msra.mxu0 0
        %1249 = vmatprep.mubr.bf16.mxu0 0
        %1250 = vmatmul.mubr.bf16.gmra.mrb[0].mxu0 %v1215
        %v1251 = vpop.f32.mrb[0].mxu0
        %v1252 = vadd.f32 %v1201, %v1251
        %v1253 = vpop.f32.mrb[0].mxu0
        %v1254 = vadd.f32 %v1205, %v1253
        %v1255 = vpop.f32.mrb[0].mxu0
        %v1256 = vpop.f32.mrb[0].mxu0
        %1257 = vdwg.mxu0
        %1258 = vmatprep.subr.bf16.mxu0 0
        %1259 = vmatpush1.bf16.msra.mxu0 %v1187
        %1260 = vmatprep.subr.bf16.mxu0 0
        %1261 = vmatpush1.bf16.msra.mxu0 %v1190
        %1262 = vmatprep.subr.bf16.mxu0 0
        %1263 = vmatpush1.bf16.msra.mxu0 0
        %1264 = vmatprep.subr.bf16.mxu0 0
        %1265 = vmatpush1.bf16.msra.mxu0 0
        %1266 = vmatprep.subr.bf16.mxu0 0
        %1267 = vmatpush1.bf16.msra.mxu0 0
        %1268 = vmatprep.subr.bf16.mxu0 0
        %1269 = vmatpush1.bf16.msra.mxu0 0
        %1270 = vmatprep.subr.bf16.mxu0 0
        %1271 = vmatpush1.bf16.msra.mxu0 0
        %1272 = vmatprep.subr.bf16.mxu0 0
        %1273 = vmatpush1.bf16.msra.mxu0 0
        %1274 = vmatprep.subr.bf16.mxu0 0
        %1275 = vmatpush1.bf16.msra.mxu0 0
        %1276 = vmatprep.subr.bf16.mxu0 0
        %1277 = vmatpush1.bf16.msra.mxu0 0
        %1278 = vmatprep.subr.bf16.mxu0 0
        %1279 = vmatpush1.bf16.msra.mxu0 0
        %1280 = vmatprep.subr.bf16.mxu0 0
        %1281 = vmatpush1.bf16.msra.mxu0 0
        %1282 = vmatprep.subr.bf16.mxu0 0
        %1283 = vmatpush1.bf16.msra.mxu0 0
        %1284 = vmatprep.subr.bf16.mxu0 0
        %1285 = vmatpush1.bf16.msra.mxu0 0
        %1286 = vmatprep.subr.bf16.mxu0 0
        %1287 = vmatpush1.bf16.msra.mxu0 0
        %1288 = vmatprep.subr.bf16.mxu0 0
        %1289 = vmatpush1.bf16.msra.mxu0 0
        %1290 = vmatprep.mubr.bf16.mxu0 0
        %1291 = vmatmul.mubr.bf16.gmra.mrb[0].mxu0 %v1215
        %v1292 = vpop.f32.mrb[0].mxu0
        %v1293 = vadd.f32 %v1209, %v1292
        %v1294 = vpop.f32.mrb[0].mxu0
        %v1295 = vpop.f32.mrb[0].mxu0
        %v1296 = vpop.f32.mrb[0].mxu0
        %1297 = vdwg.mxu0
        %v1298 = vadd.f32 %v1119, %v1252
        %v1299 = vxor.u32 %v1298, 2147483648
        %v1300 = vmul.f32 %v1299, 1.442695
        %v1301 = vpow.pop %v1300
        %v1302 = vadd.f32 %v1301, 1.0
        %v1303 = vrcp.pop %v1302
        %v1304 = vmul.f32 1.0, %v1303
        %v1305 = vadd.f32 %v1121, %v1254
        %v1306 = vxor.u32 %v1305, 2147483648
        %v1307 = vmul.f32 %v1306, 1.442695
        %v1308 = vpow.pop %v1307
        %v1309 = vadd.f32 %v1308, 1.0
        %v1310 = vrcp.pop %v1309
        %v1311 = vmul.f32 1.0, %v1310
        %v1312 = vmul.f32 %v1304, %v1293
        %v1313 = vadd.f32 %v1160, %v1312
        %v1314 = vtanh.pop %v1313
        %v1315 = vsub.f32 1.0, %v1311
        %v1316 = vmul.f32 %v1315, %v1314
        %v1317 = vmul.f32 %v1311, 0.0
        %v1318 = vadd.f32 %v1316, %v1317
        %v1319 = vpack.c.bf16 %v1318, %v1318
        %v1321 = vsel %vm1213, %v1319, 0
        %1323 = vmatprep.subr.bf16.mxu0 %v1186
        %1324 = vmatpush1.bf16.msra.mxu0 %v1185
        %1325 = vmatprep.subr.bf16.mxu0 %v1189
        %1326 = vmatpush1.bf16.msra.mxu0 %v1188
        %1327 = vmatprep.subr.bf16.mxu0 0
        %1328 = vmatpush1.bf16.msra.mxu0 0
        %1329 = vmatprep.subr.bf16.mxu0 0
        %1330 = vmatpush1.bf16.msra.mxu0 0
        %1331 = vmatprep.subr.bf16.mxu0 0
        %1332 = vmatpush1.bf16.msra.mxu0 0
        %1333 = vmatprep.subr.bf16.mxu0 0
        %1334 = vmatpush1.bf16.msra.mxu0 0
        %1335 = vmatprep.subr.bf16.mxu0 0
        %1336 = vmatpush1.bf16.msra.mxu0 0
        %1337 = vmatprep.subr.bf16.mxu0 0
        %1338 = vmatpush1.bf16.msra.mxu0 0
        %1339 = vmatprep.subr.bf16.mxu0 0
        %1340 = vmatpush1.bf16.msra.mxu0 0
        %1341 = vmatprep.subr.bf16.mxu0 0
        %1342 = vmatpush1.bf16.msra.mxu0 0
        %1343 = vmatprep.subr.bf16.mxu0 0
        %1344 = vmatpush1.bf16.msra.mxu0 0
        %1345 = vmatprep.subr.bf16.mxu0 0
        %1346 = vmatpush1.bf16.msra.mxu0 0
        %1347 = vmatprep.subr.bf16.mxu0 0
        %1348 = vmatpush1.bf16.msra.mxu0 0
        %1349 = vmatprep.subr.bf16.mxu0 0
        %1350 = vmatpush1.bf16.msra.mxu0 0
        %1351 = vmatprep.subr.bf16.mxu0 0
        %1352 = vmatpush1.bf16.msra.mxu0 0
        %1353 = vmatprep.subr.bf16.mxu0 0
        %1354 = vmatpush1.bf16.msra.mxu0 0
        %1355 = vmatprep.mubr.bf16.mxu0 0
        %1356 = vmatmul.mubr.bf16.gmra.mrb[0].mxu0 %v1321
        %v1357 = vpop.f32.mrb[0].mxu0
        %v1358 = vadd.f32 %v1201, %v1357
        %v1359 = vpop.f32.mrb[0].mxu0
        %v1360 = vadd.f32 %v1205, %v1359
        %v1361 = vpop.f32.mrb[0].mxu0
        %v1362 = vpop.f32.mrb[0].mxu0
        %1363 = vdwg.mxu0
        %1364 = vmatprep.subr.bf16.mxu0 0
        %1365 = vmatpush1.bf16.msra.mxu0 %v1187
        %1366 = vmatprep.subr.bf16.mxu0 0
        %1367 = vmatpush1.bf16.msra.mxu0 %v1190
        %1368 = vmatprep.subr.bf16.mxu0 0
        %1369 = vmatpush1.bf16.msra.mxu0 0
        %1370 = vmatprep.subr.bf16.mxu0 0
        %1371 = vmatpush1.bf16.msra.mxu0 0
        %1372 = vmatprep.subr.bf16.mxu0 0
        %1373 = vmatpush1.bf16.msra.mxu0 0
        %1374 = vmatprep.subr.bf16.mxu0 0
        %1375 = vmatpush1.bf16.msra.mxu0 0
        %1376 = vmatprep.subr.bf16.mxu0 0
        %1377 = vmatpush1.bf16.msra.mxu0 0
        %1378 = vmatprep.subr.bf16.mxu0 0
        %1379 = vmatpush1.bf16.msra.mxu0 0
        %1380 = vmatprep.subr.bf16.mxu0 0
        %1381 = vmatpush1.bf16.msra.mxu0 0
        %1382 = vmatprep.subr.bf16.mxu0 0
        %1383 = vmatpush1.bf16.msra.mxu0 0
        %1384 = vmatprep.subr.bf16.mxu0 0
        %1385 = vmatpush1.bf16.msra.mxu0 0
        %1386 = vmatprep.subr.bf16.mxu0 0
        %1387 = vmatpush1.bf16.msra.mxu0 0
        %1388 = vmatprep.subr.bf16.mxu0 0
        %1389 = vmatpush1.bf16.msra.mxu0 0
        %1390 = vmatprep.subr.bf16.mxu0 0
        %1391 = vmatpush1.bf16.msra.mxu0 0
        %1392 = vmatprep.subr.bf16.mxu0 0
        %1393 = vmatpush1.bf16.msra.mxu0 0
        %1394 = vmatprep.subr.bf16.mxu0 0
        %1395 = vmatpush1.bf16.msra.mxu0 0
        %1396 = vmatprep.mubr.bf16.mxu0 0
        %1397 = vmatmul.mubr.bf16.gmra.mrb[0].mxu0 %v1321
        %v1398 = vpop.f32.mrb[0].mxu0
        %v1399 = vadd.f32 %v1209, %v1398
        %v1400 = vpop.f32.mrb[0].mxu0
        %v1401 = vpop.f32.mrb[0].mxu0
        %v1402 = vpop.f32.mrb[0].mxu0
        %1403 = vdwg.mxu0
        %v1405 = vrot.slane %v1358, 7
        %v1407 = vadd.f32 %v1119, %v1405
        %v1408 = vxor.u32 %v1407, 2147483648
        %v1409 = vmul.f32 %v1408, 1.442695
        %v1410 = vpow.pop %v1409
        %v1411 = vadd.f32 %v1410, 1.0
        %v1412 = vrcp.pop %v1411
        %v1413 = vmul.f32 1.0, %v1412
        %v1415 = vrot.slane %v1360, 7
        %v1417 = vadd.f32 %v1121, %v1415
        %v1418 = vxor.u32 %v1417, 2147483648
        %v1419 = vmul.f32 %v1418, 1.442695
        %v1420 = vpow.pop %v1419
        %v1421 = vadd.f32 %v1420, 1.0
        %v1422 = vrcp.pop %v1421
        %v1423 = vmul.f32 1.0, %v1422
        %v1425 = vrot.slane %v1399, 7
        %v1427 = vmul.f32 %v1413, %v1425
        %v1428 = vadd.f32 %v1160, %v1427
        %v1429 = vtanh.pop %v1428
        %v1430 = vsub.f32 1.0, %v1423
        %v1431 = vmul.f32 %v1430, %v1429
        %v1433 = vrot.slane %v1318, 7
        %v1435 = vmul.f32 %v1423, %v1433
        %v1436 = vadd.f32 %v1431, %v1435
        %v1437 = vpack.c.bf16 %v1436, %v1436
        %v1439 = vshrl.u32 %v1437, 16
        %v1442 = vsel %vm1213, %v1439, 0
        %1444 = vmatprep.subr.bf16.mxu0 %v1186
        %1445 = vmatpush1.bf16.msra.mxu0 %v1185
        %1446 = vmatprep.subr.bf16.mxu0 %v1189
        %1447 = vmatpush1.bf16.msra.mxu0 %v1188
        %1448 = vmatprep.subr.bf16.mxu0 0
        %1449 = vmatpush1.bf16.msra.mxu0 0
        %1450 = vmatprep.subr.bf16.mxu0 0
        %1451 = vmatpush1.bf16.msra.mxu0 0
        %1452 = vmatprep.subr.bf16.mxu0 0
        %1453 = vmatpush1.bf16.msra.mxu0 0
        %1454 = vmatprep.subr.bf16.mxu0 0
        %1455 = vmatpush1.bf16.msra.mxu0 0
        %1456 = vmatprep.subr.bf16.mxu0 0
        %1457 = vmatpush1.bf16.msra.mxu0 0
        %1458 = vmatprep.subr.bf16.mxu0 0
        %1459 = vmatpush1.bf16.msra.mxu0 0
        %1460 = vmatprep.subr.bf16.mxu0 0
        %1461 = vmatpush1.bf16.msra.mxu0 0
        %1462 = vmatprep.subr.bf16.mxu0 0
        %1463 = vmatpush1.bf16.msra.mxu0 0
        %1464 = vmatprep.subr.bf16.mxu0 0
        %1465 = vmatpush1.bf16.msra.mxu0 0
        %1466 = vmatprep.subr.bf16.mxu0 0
        %1467 = vmatpush1.bf16.msra.mxu0 0
        %1468 = vmatprep.subr.bf16.mxu0 0
        %1469 = vmatpush1.bf16.msra.mxu0 0
        %1470 = vmatprep.subr.bf16.mxu0 0
        %1471 = vmatpush1.bf16.msra.mxu0 0
        %1472 = vmatprep.subr.bf16.mxu0 0
        %1473 = vmatpush1.bf16.msra.mxu0 0
        %1474 = vmatprep.subr.bf16.mxu0 0
        %1475 = vmatpush1.bf16.msra.mxu0 0
        %1476 = vmatprep.mubr.bf16.mxu0 0
        %1477 = vmatmul.mubr.bf16.gmra.mrb[0].mxu0 %v1442
        %v1478 = vpop.f32.mrb[0].mxu0
        %v1479 = vadd.f32 %v1201, %v1478
        %v1480 = vpop.f32.mrb[0].mxu0
        %v1481 = vadd.f32 %v1205, %v1480
        %v1482 = vpop.f32.mrb[0].mxu0
        %v1483 = vpop.f32.mrb[0].mxu0
        %1484 = vdwg.mxu0
        %1485 = vmatprep.subr.bf16.mxu0 0
        %1486 = vmatpush1.bf16.msra.mxu0 %v1187
        %1487 = vmatprep.subr.bf16.mxu0 0
        %1488 = vmatpush1.bf16.msra.mxu0 %v1190
        %1489 = vmatprep.subr.bf16.mxu0 0
        %1490 = vmatpush1.bf16.msra.mxu0 0
        %1491 = vmatprep.subr.bf16.mxu0 0
        %1492 = vmatpush1.bf16.msra.mxu0 0
        %1493 = vmatprep.subr.bf16.mxu0 0
        %1494 = vmatpush1.bf16.msra.mxu0 0
        %1495 = vmatprep.subr.bf16.mxu0 0
        %1496 = vmatpush1.bf16.msra.mxu0 0
        %1497 = vmatprep.subr.bf16.mxu0 0
        %1498 = vmatpush1.bf16.msra.mxu0 0
        %1499 = vmatprep.subr.bf16.mxu0 0
        %1500 = vmatpush1.bf16.msra.mxu0 0
        %1501 = vmatprep.subr.bf16.mxu0 0
        %1502 = vmatpush1.bf16.msra.mxu0 0
        %1503 = vmatprep.subr.bf16.mxu0 0
        %1504 = vmatpush1.bf16.msra.mxu0 0
        %1505 = vmatprep.subr.bf16.mxu0 0
        %1506 = vmatpush1.bf16.msra.mxu0 0
        %1507 = vmatprep.subr.bf16.mxu0 0
        %1508 = vmatpush1.bf16.msra.mxu0 0
        %1509 = vmatprep.subr.bf16.mxu0 0
        %1510 = vmatpush1.bf16.msra.mxu0 0
        %1511 = vmatprep.subr.bf16.mxu0 0
        %1512 = vmatpush1.bf16.msra.mxu0 0
        %1513 = vmatprep.subr.bf16.mxu0 0
        %1514 = vmatpush1.bf16.msra.mxu0 0
        %1515 = vmatprep.subr.bf16.mxu0 0
        %1516 = vmatpush1.bf16.msra.mxu0 0
        %1517 = vmatprep.mubr.bf16.mxu0 0
        %1518 = vmatmul.mubr.bf16.gmra.mrb[0].mxu0 %v1442
        %v1519 = vpop.f32.mrb[0].mxu0
        %v1520 = vadd.f32 %v1209, %v1519
        %v1521 = vpop.f32.mrb[0].mxu0
        %v1522 = vpop.f32.mrb[0].mxu0
        %v1523 = vpop.f32.mrb[0].mxu0
        %1524 = vdwg.mxu0
        %v1526 = vrot.slane %v1479, 6
        %v1528 = vadd.f32 %v1119, %v1526
        %v1529 = vxor.u32 %v1528, 2147483648
        %v1530 = vmul.f32 %v1529, 1.442695
        %v1531 = vpow.pop %v1530
        %v1532 = vadd.f32 %v1531, 1.0
        %v1533 = vrcp.pop %v1532
        %v1534 = vmul.f32 1.0, %v1533
        %v1536 = vrot.slane %v1481, 6
        %v1538 = vadd.f32 %v1121, %v1536
        %v1539 = vxor.u32 %v1538, 2147483648
        %v1540 = vmul.f32 %v1539, 1.442695
        %v1541 = vpow.pop %v1540
        %v1542 = vadd.f32 %v1541, 1.0
        %v1543 = vrcp.pop %v1542
        %v1544 = vmul.f32 1.0, %v1543
        %v1546 = vrot.slane %v1520, 6
        %v1548 = vmul.f32 %v1534, %v1546
        %v1549 = vadd.f32 %v1160, %v1548
        %v1550 = vtanh.pop %v1549
        %v1551 = vsub.f32 1.0, %v1544
        %v1552 = vmul.f32 %v1551, %v1550
        %v1554 = vrot.slane %v1436, 7
        %v1556 = vmul.f32 %v1544, %v1554
        %v1557 = vadd.f32 %v1552, %v1556
        %v1558 = vpack.c.bf16 %v1557, %v1557
        %v1560 = vrot.slane %v1558, 1
        %v1562 = vsel %vm1213, %v1560, 0
        %1564 = vmatprep.subr.bf16.mxu0 %v1186
        %1565 = vmatpush1.bf16.msra.mxu0 %v1185
        %1566 = vmatprep.subr.bf16.mxu0 %v1189
        %1567 = vmatpush1.bf16.msra.mxu0 %v1188
        %1568 = vmatprep.subr.bf16.mxu0 0
        %1569 = vmatpush1.bf16.msra.mxu0 0
        %1570 = vmatprep.subr.bf16.mxu0 0
        %1571 = vmatpush1.bf16.msra.mxu0 0
        %1572 = vmatprep.subr.bf16.mxu0 0
        %1573 = vmatpush1.bf16.msra.mxu0 0
        %1574 = vmatprep.subr.bf16.mxu0 0
        %1575 = vmatpush1.bf16.msra.mxu0 0
        %1576 = vmatprep.subr.bf16.mxu0 0
        %1577 = vmatpush1.bf16.msra.mxu0 0
        %1578 = vmatprep.subr.bf16.mxu0 0
        %1579 = vmatpush1.bf16.msra.mxu0 0
        %1580 = vmatprep.subr.bf16.mxu0 0
        %1581 = vmatpush1.bf16.msra.mxu0 0
        %1582 = vmatprep.subr.bf16.mxu0 0
        %1583 = vmatpush1.bf16.msra.mxu0 0
        %1584 = vmatprep.subr.bf16.mxu0 0
        %1585 = vmatpush1.bf16.msra.mxu0 0
        %1586 = vmatprep.subr.bf16.mxu0 0
        %1587 = vmatpush1.bf16.msra.mxu0 0
        %1588 = vmatprep.subr.bf16.mxu0 0
        %1589 = vmatpush1.bf16.msra.mxu0 0
        %1590 = vmatprep.subr.bf16.mxu0 0
        %1591 = vmatpush1.bf16.msra.mxu0 0
        %1592 = vmatprep.subr.bf16.mxu0 0
        %1593 = vmatpush1.bf16.msra.mxu0 0
        %1594 = vmatprep.subr.bf16.mxu0 0
        %1595 = vmatpush1.bf16.msra.mxu0 0
        %1596 = vmatprep.mubr.bf16.mxu0 0
        %1597 = vmatmul.mubr.bf16.gmra.mrb[0].mxu0 %v1562
        %v1598 = vpop.f32.mrb[0].mxu0
        %v1599 = vadd.f32 %v1201, %v1598
        %v1600 = vpop.f32.mrb[0].mxu0
        %v1601 = vadd.f32 %v1205, %v1600
        %v1602 = vpop.f32.mrb[0].mxu0
        %v1603 = vpop.f32.mrb[0].mxu0
        %1604 = vdwg.mxu0
        %1605 = vmatprep.subr.bf16.mxu0 0
        %1606 = vmatpush1.bf16.msra.mxu0 %v1187
        %1607 = vmatprep.subr.bf16.mxu0 0
        %1608 = vmatpush1.bf16.msra.mxu0 %v1190
        %1609 = vmatprep.subr.bf16.mxu0 0
        %1610 = vmatpush1.bf16.msra.mxu0 0
        %1611 = vmatprep.subr.bf16.mxu0 0
        %1612 = vmatpush1.bf16.msra.mxu0 0
        %1613 = vmatprep.subr.bf16.mxu0 0
        %1614 = vmatpush1.bf16.msra.mxu0 0
        %1615 = vmatprep.subr.bf16.mxu0 0
        %1616 = vmatpush1.bf16.msra.mxu0 0
        %1617 = vmatprep.subr.bf16.mxu0 0
        %1618 = vmatpush1.bf16.msra.mxu0 0
        %1619 = vmatprep.subr.bf16.mxu0 0
        %1620 = vmatpush1.bf16.msra.mxu0 0
        %1621 = vmatprep.subr.bf16.mxu0 0
        %1622 = vmatpush1.bf16.msra.mxu0 0
        %1623 = vmatprep.subr.bf16.mxu0 0
        %1624 = vmatpush1.bf16.msra.mxu0 0
        %1625 = vmatprep.subr.bf16.mxu0 0
        %1626 = vmatpush1.bf16.msra.mxu0 0
        %1627 = vmatprep.subr.bf16.mxu0 0
        %1628 = vmatpush1.bf16.msra.mxu0 0
        %1629 = vmatprep.subr.bf16.mxu0 0
        %1630 = vmatpush1.bf16.msra.mxu0 0
        %1631 = vmatprep.subr.bf16.mxu0 0
        %1632 = vmatpush1.bf16.msra.mxu0 0
        %1633 = vmatprep.subr.bf16.mxu0 0
        %1634 = vmatpush1.bf16.msra.mxu0 0
        %1635 = vmatprep.subr.bf16.mxu0 0
        %1636 = vmatpush1.bf16.msra.mxu0 0
        %1637 = vmatprep.mubr.bf16.mxu0 0
        %1638 = vmatmul.mubr.bf16.gmra.mrb[0].mxu0 %v1562
        %v1639 = vpop.f32.mrb[0].mxu0
        %v1640 = vadd.f32 %v1209, %v1639
        %v1641 = vpop.f32.mrb[0].mxu0
        %v1642 = vpop.f32.mrb[0].mxu0
        %v1643 = vpop.f32.mrb[0].mxu0
        %1644 = vdwg.mxu0
        %v1646 = vrot.slane %v1599, 5
        %v1648 = vadd.f32 %v1119, %v1646
        %v1649 = vxor.u32 %v1648, 2147483648
        %v1650 = vmul.f32 %v1649, 1.442695
        %v1651 = vpow.pop %v1650
        %v1652 = vadd.f32 %v1651, 1.0
        %v1653 = vrcp.pop %v1652
        %v1654 = vmul.f32 1.0, %v1653
        %v1656 = vrot.slane %v1601, 5
        %v1658 = vadd.f32 %v1121, %v1656
        %v1659 = vxor.u32 %v1658, 2147483648
        %v1660 = vmul.f32 %v1659, 1.442695
        %v1661 = vpow.pop %v1660
        %v1662 = vadd.f32 %v1661, 1.0
        %v1663 = vrcp.pop %v1662
        %v1664 = vmul.f32 1.0, %v1663
        %v1666 = vrot.slane %v1640, 5
        %v1668 = vmul.f32 %v1654, %v1666
        %v1669 = vadd.f32 %v1160, %v1668
        %v1670 = vtanh.pop %v1669
        %v1671 = vsub.f32 1.0, %v1664
        %v1672 = vmul.f32 %v1671, %v1670
        %v1674 = vrot.slane %v1557, 7
        %v1676 = vmul.f32 %v1664, %v1674
        %v1677 = vadd.f32 %v1672, %v1676
        %v1678 = vpack.c.bf16 %v1677, %v1677
        %v1680 = vshrl.u32 %v1678, 16
        %v1682 = vrot.slane %v1680, 1
        %v1684 = vsel %vm1213, %v1682, 0
        %1686 = vmatprep.subr.bf16.mxu0 %v1186
        %1687 = vmatpush1.bf16.msra.mxu0 %v1185
        %1688 = vmatprep.subr.bf16.mxu0 %v1189
        %1689 = vmatpush1.bf16.msra.mxu0 %v1188
        %1690 = vmatprep.subr.bf16.mxu0 0
        %1691 = vmatpush1.bf16.msra.mxu0 0
        %1692 = vmatprep.subr.bf16.mxu0 0
        %1693 = vmatpush1.bf16.msra.mxu0 0
        %1694 = vmatprep.subr.bf16.mxu0 0
        %1695 = vmatpush1.bf16.msra.mxu0 0
        %1696 = vmatprep.subr.bf16.mxu0 0
        %1697 = vmatpush1.bf16.msra.mxu0 0
        %1698 = vmatprep.subr.bf16.mxu0 0
        %1699 = vmatpush1.bf16.msra.mxu0 0
        %1700 = vmatprep.subr.bf16.mxu0 0
        %1701 = vmatpush1.bf16.msra.mxu0 0
        %1702 = vmatprep.subr.bf16.mxu0 0
        %1703 = vmatpush1.bf16.msra.mxu0 0
        %1704 = vmatprep.subr.bf16.mxu0 0
        %1705 = vmatpush1.bf16.msra.mxu0 0
        %1706 = vmatprep.subr.bf16.mxu0 0
        %1707 = vmatpush1.bf16.msra.mxu0 0
        %1708 = vmatprep.subr.bf16.mxu0 0
        %1709 = vmatpush1.bf16.msra.mxu0 0
        %1710 = vmatprep.subr.bf16.mxu0 0
        %1711 = vmatpush1.bf16.msra.mxu0 0
        %1712 = vmatprep.subr.bf16.mxu0 0
        %1713 = vmatpush1.bf16.msra.mxu0 0
        %1714 = vmatprep.subr.bf16.mxu0 0
        %1715 = vmatpush1.bf16.msra.mxu0 0
        %1716 = vmatprep.subr.bf16.mxu0 0
        %1717 = vmatpush1.bf16.msra.mxu0 0
        %1718 = vmatprep.mubr.bf16.mxu0 0
        %1719 = vmatmul.mubr.bf16.gmra.mrb[0].mxu0 %v1684
        %v1720 = vpop.f32.mrb[0].mxu0
        %v1721 = vadd.f32 %v1201, %v1720
        %v1722 = vpop.f32.mrb[0].mxu0
        %v1723 = vadd.f32 %v1205, %v1722
        %v1724 = vpop.f32.mrb[0].mxu0
        %v1725 = vpop.f32.mrb[0].mxu0
        %1726 = vdwg.mxu0
        %1727 = vmatprep.subr.bf16.mxu0 0
        %1728 = vmatpush1.bf16.msra.mxu0 %v1187
        %1729 = vmatprep.subr.bf16.mxu0 0
        %1730 = vmatpush1.bf16.msra.mxu0 %v1190
        %1731 = vmatprep.subr.bf16.mxu0 0
        %1732 = vmatpush1.bf16.msra.mxu0 0
        %1733 = vmatprep.subr.bf16.mxu0 0
        %1734 = vmatpush1.bf16.msra.mxu0 0
        %1735 = vmatprep.subr.bf16.mxu0 0
        %1736 = vmatpush1.bf16.msra.mxu0 0
        %1737 = vmatprep.subr.bf16.mxu0 0
        %1738 = vmatpush1.bf16.msra.mxu0 0
        %1739 = vmatprep.subr.bf16.mxu0 0
        %1740 = vmatpush1.bf16.msra.mxu0 0
        %1741 = vmatprep.subr.bf16.mxu0 0
        %1742 = vmatpush1.bf16.msra.mxu0 0
        %1743 = vmatprep.subr.bf16.mxu0 0
        %1744 = vmatpush1.bf16.msra.mxu0 0
        %1745 = vmatprep.subr.bf16.mxu0 0
        %1746 = vmatpush1.bf16.msra.mxu0 0
        %1747 = vmatprep.subr.bf16.mxu0 0
        %1748 = vmatpush1.bf16.msra.mxu0 0
        %1749 = vmatprep.subr.bf16.mxu0 0
        %1750 = vmatpush1.bf16.msra.mxu0 0
        %1751 = vmatprep.subr.bf16.mxu0 0
        %1752 = vmatpush1.bf16.msra.mxu0 0
        %1753 = vmatprep.subr.bf16.mxu0 0
        %1754 = vmatpush1.bf16.msra.mxu0 0
        %1755 = vmatprep.subr.bf16.mxu0 0
        %1756 = vmatpush1.bf16.msra.mxu0 0
        %1757 = vmatprep.subr.bf16.mxu0 0
        %1758 = vmatpush1.bf16.msra.mxu0 0
        %1759 = vmatprep.mubr.bf16.mxu0 0
        %1760 = vmatmul.mubr.bf16.gmra.mrb[0].mxu0 %v1684
        %v1761 = vpop.f32.mrb[0].mxu0
        %v1762 = vadd.f32 %v1209, %v1761
        %v1763 = vpop.f32.mrb[0].mxu0
        %v1764 = vpop.f32.mrb[0].mxu0
        %v1765 = vpop.f32.mrb[0].mxu0
        %1766 = vdwg.mxu0
        %v1768 = vrot.slane %v1721, 4
        %v1770 = vadd.f32 %v1119, %v1768
        %v1771 = vxor.u32 %v1770, 2147483648
        %v1772 = vmul.f32 %v1771, 1.442695
        %v1773 = vpow.pop %v1772
        %v1774 = vadd.f32 %v1773, 1.0
        %v1775 = vrcp.pop %v1774
        %v1776 = vmul.f32 1.0, %v1775
        %v1778 = vrot.slane %v1723, 4
        %v1780 = vadd.f32 %v1121, %v1778
        %v1781 = vxor.u32 %v1780, 2147483648
        %v1782 = vmul.f32 %v1781, 1.442695
        %v1783 = vpow.pop %v1782
        %v1784 = vadd.f32 %v1783, 1.0
        %v1785 = vrcp.pop %v1784
        %v1786 = vmul.f32 1.0, %v1785
        %v1788 = vrot.slane %v1762, 4
        %v1790 = vmul.f32 %v1776, %v1788
        %v1791 = vadd.f32 %v1160, %v1790
        %v1792 = vtanh.pop %v1791
        %v1793 = vsub.f32 1.0, %v1786
        %v1794 = vmul.f32 %v1793, %v1792
        %v1796 = vrot.slane %v1677, 7
        %v1798 = vmul.f32 %v1786, %v1796
        %v1799 = vadd.f32 %v1794, %v1798
        %v1800 = vsel %vm887, %v1318, %v1436
        %v1801 = vsel %vm889, %v1800, %v1557
        %v1802 = vsel %vm891, %v1801, %v1677
        %v1803 = vsel %vm893, %v1802, %v1799
        %v1804 = vld [vmem:[#allocation2 + $0x410] sm:$0xff]
        %v1805 = vld [vmem:[#allocation2 + $0x418] sm:$0xf]
        %v1806 = vld [vmem:[#allocation2 + $0x424] sm:$0xff]
        %v1807 = vld [vmem:[#allocation2 + $0x42c] sm:$0xf]
        %v1808 = vld [vmem:[#allocation2 + $0x438] sm:$0xff]
        %v1809 = vld [vmem:[#allocation2 + $0x440] sm:$0xf]
        %v1810 = vld [vmem:[#allocation2 + $0x44c] sm:$0xff]
        %v1811 = vld [vmem:[#allocation2 + $0x454] sm:$0xf]
        %v1812 = vld [vmem:[#allocation2 + $0x460] sm:$0xff]
        %v1813 = vld [vmem:[#allocation2 + $0x468] sm:$0xf]
        %v1814 = vld [vmem:[#allocation2 + $0x474] sm:$0xff]
        %v1815 = vld [vmem:[#allocation2 + $0x47c] sm:$0xf]
        %v1816 = vld [vmem:[#allocation2 + $0x488] sm:$0xff]
        %v1817 = vld [vmem:[#allocation2 + $0x490] sm:$0xf]
        %v1818 = vld [vmem:[#allocation2 + $0x49c] sm:$0xff]
        %v1819 = vld [vmem:[#allocation2 + $0x4a4] sm:$0xf]
        %s1820 = scalar_lea.vmem %s2, 3
        %v1821 = vld [vmem:[%s1820] ss:$8 sm:$0x7]
        %s1822 = scalar_lea.vmem %s2, 4
        %v1823 = vld [vmem:[%s1822] ss:$8 sm:$0x7]
        %v1824 = vpack.c.bf16 %v1803, %v1803
        %v1826 = vlaneseq
        %v1827 = vshrl.u32 %v1826, 7
        %v1828 = vsub.s32 0, %v1827
        %v1829 = vrot.slane %v1821, %v1828
        %v1830 = vlaneseq
        %v1831 = vshrl.u32 %v1830, 7
        %v1832 = vsub.s32 1, %v1831
        %v1833 = vrot.slane %v1821, %v1832
        %v1834 = vlaneseq
        %v1835 = vshrl.u32 %v1834, 7
        %v1836 = vsub.s32 2, %v1835
        %v1837 = vrot.slane %v1821, %v1836
        %v1849 = vunpack.c.l.b16 %v1804
        %v1850 = vunpack.c.h.b16 %v1804
        %v1851 = vunpack.c.l.b16 %v1805
        %v1852 = vunpack.c.l.b16 %v1806
        %v1853 = vunpack.c.h.b16 %v1806
        %v1854 = vunpack.c.l.b16 %v1807
        %v1855 = vunpack.c.l.b16 %v1808
        %v1856 = vunpack.c.h.b16 %v1808
        %v1857 = vunpack.c.l.b16 %v1809
        %v1858 = vunpack.c.l.b16 %v1810
        %v1859 = vunpack.c.h.b16 %v1810
        %v1860 = vunpack.c.l.b16 %v1811
        %v1861 = vpack.c.b16 %v1852, %v1849
        %v1862 = vpack.c.b16 %v1853, %v1850
        %v1863 = vpack.c.b16 %v1854, %v1851
        %v1864 = vpack.c.b16 %v1858, %v1855
        %v1865 = vpack.c.b16 %v1859, %v1856
        %v1866 = vpack.c.b16 %v1860, %v1857
        %v1874 = vsel %vm1213, %v1824, 0
        %1876 = vmatprep.subr.bf16.mxu0 %v1862
        %1877 = vmatpush1.bf16.msra.mxu0 %v1861
        %1878 = vmatprep.subr.bf16.mxu0 %v1865
        %1879 = vmatpush1.bf16.msra.mxu0 %v1864
        %1880 = vmatprep.subr.bf16.mxu0 0
        %1881 = vmatpush1.bf16.msra.mxu0 0
        %1882 = vmatprep.subr.bf16.mxu0 0
        %1883 = vmatpush1.bf16.msra.mxu0 0
        %1884 = vmatprep.subr.bf16.mxu0 0
        %1885 = vmatpush1.bf16.msra.mxu0 0
        %1886 = vmatprep.subr.bf16.mxu0 0
        %1887 = vmatpush1.bf16.msra.mxu0 0
        %1888 = vmatprep.subr.bf16.mxu0 0
        %1889 = vmatpush1.bf16.msra.mxu0 0
        %1890 = vmatprep.subr.bf16.mxu0 0
        %1891 = vmatpush1.bf16.msra.mxu0 0
        %1892 = vmatprep.subr.bf16.mxu0 0
        %1893 = vmatpush1.bf16.msra.mxu0 0
        %1894 = vmatprep.subr.bf16.mxu0 0
        %1895 = vmatpush1.bf16.msra.mxu0 0
        %1896 = vmatprep.subr.bf16.mxu0 0
        %1897 = vmatpush1.bf16.msra.mxu0 0
        %1898 = vmatprep.subr.bf16.mxu0 0
        %1899 = vmatpush1.bf16.msra.mxu0 0
        %1900 = vmatprep.subr.bf16.mxu0 0
        %1901 = vmatpush1.bf16.msra.mxu0 0
        %1902 = vmatprep.subr.bf16.mxu0 0
        %1903 = vmatpush1.bf16.msra.mxu0 0
        %1904 = vmatprep.subr.bf16.mxu0 0
        %1905 = vmatpush1.bf16.msra.mxu0 0
        %1906 = vmatprep.subr.bf16.mxu0 0
        %1907 = vmatpush1.bf16.msra.mxu0 0
        %1908 = vmatprep.mubr.bf16.mxu0 0
        %1909 = vmatmul.mubr.bf16.gmra.mrb[0].mxu0 %v1874
        %v1910 = vpop.f32.mrb[0].mxu0
        %v1911 = vadd.f32 %v1829, %v1910
        %v1912 = vpop.f32.mrb[0].mxu0
        %v1913 = vadd.f32 %v1833, %v1912
        %v1914 = vpop.f32.mrb[0].mxu0
        %v1915 = vpop.f32.mrb[0].mxu0
        %1916 = vdwg.mxu0
        %1917 = vmatprep.subr.bf16.mxu0 0
        %1918 = vmatpush1.bf16.msra.mxu0 %v1863
        %1919 = vmatprep.subr.bf16.mxu0 0
        %1920 = vmatpush1.bf16.msra.mxu0 %v1866
        %1921 = vmatprep.subr.bf16.mxu0 0
        %1922 = vmatpush1.bf16.msra.mxu0 0
        %1923 = vmatprep.subr.bf16.mxu0 0
        %1924 = vmatpush1.bf16.msra.mxu0 0
        %1925 = vmatprep.subr.bf16.mxu0 0
        %1926 = vmatpush1.bf16.msra.mxu0 0
        %1927 = vmatprep.subr.bf16.mxu0 0
        %1928 = vmatpush1.bf16.msra.mxu0 0
        %1929 = vmatprep.subr.bf16.mxu0 0
        %1930 = vmatpush1.bf16.msra.mxu0 0
        %1931 = vmatprep.subr.bf16.mxu0 0
        %1932 = vmatpush1.bf16.msra.mxu0 0
        %1933 = vmatprep.subr.bf16.mxu0 0
        %1934 = vmatpush1.bf16.msra.mxu0 0
        %1935 = vmatprep.subr.bf16.mxu0 0
        %1936 = vmatpush1.bf16.msra.mxu0 0
        %1937 = vmatprep.subr.bf16.mxu0 0
        %1938 = vmatpush1.bf16.msra.mxu0 0
        %1939 = vmatprep.subr.bf16.mxu0 0
        %1940 = vmatpush1.bf16.msra.mxu0 0
        %1941 = vmatprep.subr.bf16.mxu0 0
        %1942 = vmatpush1.bf16.msra.mxu0 0
        %1943 = vmatprep.subr.bf16.mxu0 0
        %1944 = vmatpush1.bf16.msra.mxu0 0
        %1945 = vmatprep.subr.bf16.mxu0 0
        %1946 = vmatpush1.bf16.msra.mxu0 0
        %1947 = vmatprep.subr.bf16.mxu0 0
        %1948 = vmatpush1.bf16.msra.mxu0 0
        %1949 = vmatprep.mubr.bf16.mxu0 0
        %1950 = vmatmul.mubr.bf16.gmra.mrb[0].mxu0 %v1874
        %v1951 = vpop.f32.mrb[0].mxu0
        %v1952 = vadd.f32 %v1837, %v1951
        %v1953 = vpop.f32.mrb[0].mxu0
        %v1954 = vpop.f32.mrb[0].mxu0
        %v1955 = vpop.f32.mrb[0].mxu0
        %1956 = vdwg.mxu0
        %v1965 = vunpack.c.l.b16 %v1812
        %v1966 = vunpack.c.h.b16 %v1812
        %v1967 = vunpack.c.l.b16 %v1813
        %v1968 = vunpack.c.l.b16 %v1814
        %v1969 = vunpack.c.h.b16 %v1814
        %v1970 = vunpack.c.l.b16 %v1815
        %v1971 = vunpack.c.l.b16 %v1816
        %v1972 = vunpack.c.h.b16 %v1816
        %v1973 = vunpack.c.l.b16 %v1817
        %v1974 = vunpack.c.l.b16 %v1818
        %v1975 = vunpack.c.h.b16 %v1818
        %v1976 = vunpack.c.l.b16 %v1819
        %v1977 = vpack.c.b16 %v1968, %v1965
        %v1978 = vpack.c.b16 %v1969, %v1966
        %v1979 = vpack.c.b16 %v1970, %v1967
        %v1980 = vpack.c.b16 %v1974, %v1971
        %v1981 = vpack.c.b16 %v1975, %v1972
        %v1982 = vpack.c.b16 %v1976, %v1973
        %v1990 = vlaneseq
        %v1991 = vshrl.u32 %v1990, 7
        %v1992 = vsub.s32 0, %v1991
        %v1993 = vrot.slane %v1823, %v1992
        %v1994 = vlaneseq
        %v1995 = vshrl.u32 %v1994, 7
        %v1996 = vsub.s32 1, %v1995
        %v1997 = vrot.slane %v1823, %v1996
        %v1998 = vlaneseq
        %v1999 = vshrl.u32 %v1998, 7
        %v2000 = vsub.s32 2, %v1999
        %v2001 = vrot.slane %v1823, %v2000
        %2005 = vmatprep.subr.bf16.mxu0 %v1978
        %2006 = vmatpush1.bf16.msra.mxu0 %v1977
        %2007 = vmatprep.subr.bf16.mxu0 %v1981
        %2008 = vmatpush1.bf16.msra.mxu0 %v1980
        %2009 = vmatprep.subr.bf16.mxu0 0
        %2010 = vmatpush1.bf16.msra.mxu0 0
        %2011 = vmatprep.subr.bf16.mxu0 0
        %2012 = vmatpush1.bf16.msra.mxu0 0
        %2013 = vmatprep.subr.bf16.mxu0 0
        %2014 = vmatpush1.bf16.msra.mxu0 0
        %2015 = vmatprep.subr.bf16.mxu0 0
        %2016 = vmatpush1.bf16.msra.mxu0 0
        %2017 = vmatprep.subr.bf16.mxu0 0
        %2018 = vmatpush1.bf16.msra.mxu0 0
        %2019 = vmatprep.subr.bf16.mxu0 0
        %2020 = vmatpush1.bf16.msra.mxu0 0
        %2021 = vmatprep.subr.bf16.mxu0 0
        %2022 = vmatpush1.bf16.msra.mxu0 0
        %2023 = vmatprep.subr.bf16.mxu0 0
        %2024 = vmatpush1.bf16.msra.mxu0 0
        %2025 = vmatprep.subr.bf16.mxu0 0
        %2026 = vmatpush1.bf16.msra.mxu0 0
        %2027 = vmatprep.subr.bf16.mxu0 0
        %2028 = vmatpush1.bf16.msra.mxu0 0
        %2029 = vmatprep.subr.bf16.mxu0 0
        %2030 = vmatpush1.bf16.msra.mxu0 0
        %2031 = vmatprep.subr.bf16.mxu0 0
        %2032 = vmatpush1.bf16.msra.mxu0 0
        %2033 = vmatprep.subr.bf16.mxu0 0
        %2034 = vmatpush1.bf16.msra.mxu0 0
        %2035 = vmatprep.subr.bf16.mxu0 0
        %2036 = vmatpush1.bf16.msra.mxu0 0
        %2037 = vmatprep.mubr.bf16.mxu0 0
        %2038 = vmatmul.mubr.bf16.gmra.mrb[0].mxu0 %v1215
        %v2039 = vpop.f32.mrb[0].mxu0
        %v2040 = vadd.f32 %v1993, %v2039
        %v2041 = vpop.f32.mrb[0].mxu0
        %v2042 = vadd.f32 %v1997, %v2041
        %v2043 = vpop.f32.mrb[0].mxu0
        %v2044 = vpop.f32.mrb[0].mxu0
        %2045 = vdwg.mxu0
        %2046 = vmatprep.subr.bf16.mxu0 0
        %2047 = vmatpush1.bf16.msra.mxu0 %v1979
        %2048 = vmatprep.subr.bf16.mxu0 0
        %2049 = vmatpush1.bf16.msra.mxu0 %v1982
        %2050 = vmatprep.subr.bf16.mxu0 0
        %2051 = vmatpush1.bf16.msra.mxu0 0
        %2052 = vmatprep.subr.bf16.mxu0 0
        %2053 = vmatpush1.bf16.msra.mxu0 0
        %2054 = vmatprep.subr.bf16.mxu0 0
        %2055 = vmatpush1.bf16.msra.mxu0 0
        %2056 = vmatprep.subr.bf16.mxu0 0
        %2057 = vmatpush1.bf16.msra.mxu0 0
        %2058 = vmatprep.subr.bf16.mxu0 0
        %2059 = vmatpush1.bf16.msra.mxu0 0
        %2060 = vmatprep.subr.bf16.mxu0 0
        %2061 = vmatpush1.bf16.msra.mxu0 0
        %2062 = vmatprep.subr.bf16.mxu0 0
        %2063 = vmatpush1.bf16.msra.mxu0 0
        %2064 = vmatprep.subr.bf16.mxu0 0
        %2065 = vmatpush1.bf16.msra.mxu0 0
        %2066 = vmatprep.subr.bf16.mxu0 0
        %2067 = vmatpush1.bf16.msra.mxu0 0
        %2068 = vmatprep.subr.bf16.mxu0 0
        %2069 = vmatpush1.bf16.msra.mxu0 0
        %2070 = vmatprep.subr.bf16.mxu0 0
        %2071 = vmatpush1.bf16.msra.mxu0 0
        %2072 = vmatprep.subr.bf16.mxu0 0
        %2073 = vmatpush1.bf16.msra.mxu0 0
        %2074 = vmatprep.subr.bf16.mxu0 0
        %2075 = vmatpush1.bf16.msra.mxu0 0
        %2076 = vmatprep.subr.bf16.mxu0 0
        %2077 = vmatpush1.bf16.msra.mxu0 0
        %2078 = vmatprep.mubr.bf16.mxu0 0
        %2079 = vmatmul.mubr.bf16.gmra.mrb[0].mxu0 %v1215
        %v2080 = vpop.f32.mrb[0].mxu0
        %v2081 = vadd.f32 %v2001, %v2080
        %v2082 = vpop.f32.mrb[0].mxu0
        %v2083 = vpop.f32.mrb[0].mxu0
        %v2084 = vpop.f32.mrb[0].mxu0
        %2085 = vdwg.mxu0
        %v2086 = vadd.f32 %v1911, %v2040
        %v2087 = vxor.u32 %v2086, 2147483648
        %v2088 = vmul.f32 %v2087, 1.442695
        %v2089 = vpow.pop %v2088
        %v2090 = vadd.f32 %v2089, 1.0
        %v2091 = vrcp.pop %v2090
        %v2092 = vmul.f32 1.0, %v2091
        %v2093 = vadd.f32 %v1913, %v2042
        %v2094 = vxor.u32 %v2093, 2147483648
        %v2095 = vmul.f32 %v2094, 1.442695
        %v2096 = vpow.pop %v2095
        %v2097 = vadd.f32 %v2096, 1.0
        %v2098 = vrcp.pop %v2097
        %v2099 = vmul.f32 1.0, %v2098
        %v2100 = vmul.f32 %v2092, %v2081
        %v2101 = vadd.f32 %v1952, %v2100
        %v2102 = vtanh.pop %v2101
        %v2103 = vsub.f32 1.0, %v2099
        %v2104 = vmul.f32 %v2103, %v2102
        %v2105 = vmul.f32 %v2099, 0.0
        %v2106 = vadd.f32 %v2104, %v2105
        %v2107 = vpack.c.bf16 %v2106, %v2106
        %v2109 = vsel %vm1213, %v2107, 0
        %2111 = vmatprep.subr.bf16.mxu0 %v1978
        %2112 = vmatpush1.bf16.msra.mxu0 %v1977
        %2113 = vmatprep.subr.bf16.mxu0 %v1981
        %2114 = vmatpush1.bf16.msra.mxu0 %v1980
        %2115 = vmatprep.subr.bf16.mxu0 0
        %2116 = vmatpush1.bf16.msra.mxu0 0
        %2117 = vmatprep.subr.bf16.mxu0 0
        %2118 = vmatpush1.bf16.msra.mxu0 0
        %2119 = vmatprep.subr.bf16.mxu0 0
        %2120 = vmatpush1.bf16.msra.mxu0 0
        %2121 = vmatprep.subr.bf16.mxu0 0
        %2122 = vmatpush1.bf16.msra.mxu0 0
        %2123 = vmatprep.subr.bf16.mxu0 0
        %2124 = vmatpush1.bf16.msra.mxu0 0
        %2125 = vmatprep.subr.bf16.mxu0 0
        %2126 = vmatpush1.bf16.msra.mxu0 0
        %2127 = vmatprep.subr.bf16.mxu0 0
        %2128 = vmatpush1.bf16.msra.mxu0 0
        %2129 = vmatprep.subr.bf16.mxu0 0
        %2130 = vmatpush1.bf16.msra.mxu0 0
        %2131 = vmatprep.subr.bf16.mxu0 0
        %2132 = vmatpush1.bf16.msra.mxu0 0
        %2133 = vmatprep.subr.bf16.mxu0 0
        %2134 = vmatpush1.bf16.msra.mxu0 0
        %2135 = vmatprep.subr.bf16.mxu0 0
        %2136 = vmatpush1.bf16.msra.mxu0 0
        %2137 = vmatprep.subr.bf16.mxu0 0
        %2138 = vmatpush1.bf16.msra.mxu0 0
        %2139 = vmatprep.subr.bf16.mxu0 0
        %2140 = vmatpush1.bf16.msra.mxu0 0
        %2141 = vmatprep.subr.bf16.mxu0 0
        %2142 = vmatpush1.bf16.msra.mxu0 0
        %2143 = vmatprep.mubr.bf16.mxu0 0
        %2144 = vmatmul.mubr.bf16.gmra.mrb[0].mxu0 %v2109
        %v2145 = vpop.f32.mrb[0].mxu0
        %v2146 = vadd.f32 %v1993, %v2145
        %v2147 = vpop.f32.mrb[0].mxu0
        %v2148 = vadd.f32 %v1997, %v2147
        %v2149 = vpop.f32.mrb[0].mxu0
        %v2150 = vpop.f32.mrb[0].mxu0
        %2151 = vdwg.mxu0
        %2152 = vmatprep.subr.bf16.mxu0 0
        %2153 = vmatpush1.bf16.msra.mxu0 %v1979
        %2154 = vmatprep.subr.bf16.mxu0 0
        %2155 = vmatpush1.bf16.msra.mxu0 %v1982
        %2156 = vmatprep.subr.bf16.mxu0 0
        %2157 = vmatpush1.bf16.msra.mxu0 0
        %2158 = vmatprep.subr.bf16.mxu0 0
        %2159 = vmatpush1.bf16.msra.mxu0 0
        %2160 = vmatprep.subr.bf16.mxu0 0
        %2161 = vmatpush1.bf16.msra.mxu0 0
        %2162 = vmatprep.subr.bf16.mxu0 0
        %2163 = vmatpush1.bf16.msra.mxu0 0
        %2164 = vmatprep.subr.bf16.mxu0 0
        %2165 = vmatpush1.bf16.msra.mxu0 0
        %2166 = vmatprep.subr.bf16.mxu0 0
        %2167 = vmatpush1.bf16.msra.mxu0 0
        %2168 = vmatprep.subr.bf16.mxu0 0
        %2169 = vmatpush1.bf16.msra.mxu0 0
        %2170 = vmatprep.subr.bf16.mxu0 0
        %2171 = vmatpush1.bf16.msra.mxu0 0
        %2172 = vmatprep.subr.bf16.mxu0 0
        %2173 = vmatpush1.bf16.msra.mxu0 0
        %2174 = vmatprep.subr.bf16.mxu0 0
        %2175 = vmatpush1.bf16.msra.mxu0 0
        %2176 = vmatprep.subr.bf16.mxu0 0
        %2177 = vmatpush1.bf16.msra.mxu0 0
        %2178 = vmatprep.subr.bf16.mxu0 0
        %2179 = vmatpush1.bf16.msra.mxu0 0
        %2180 = vmatprep.subr.bf16.mxu0 0
        %2181 = vmatpush1.bf16.msra.mxu0 0
        %2182 = vmatprep.subr.bf16.mxu0 0
        %2183 = vmatpush1.bf16.msra.mxu0 0
        %2184 = vmatprep.mubr.bf16.mxu0 0
        %2185 = vmatmul.mubr.bf16.gmra.mrb[0].mxu0 %v2109
        %v2186 = vpop.f32.mrb[0].mxu0
        %v2187 = vadd.f32 %v2001, %v2186
        %v2188 = vpop.f32.mrb[0].mxu0
        %v2189 = vpop.f32.mrb[0].mxu0
        %v2190 = vpop.f32.mrb[0].mxu0
        %2191 = vdwg.mxu0
        %v2193 = vrot.slane %v2146, 7
        %v2195 = vadd.f32 %v1911, %v2193
        %v2196 = vxor.u32 %v2195, 2147483648
        %v2197 = vmul.f32 %v2196, 1.442695
        %v2198 = vpow.pop %v2197
        %v2199 = vadd.f32 %v2198, 1.0
        %v2200 = vrcp.pop %v2199
        %v2201 = vmul.f32 1.0, %v2200
        %v2203 = vrot.slane %v2148, 7
        %v2205 = vadd.f32 %v1913, %v2203
        %v2206 = vxor.u32 %v2205, 2147483648
        %v2207 = vmul.f32 %v2206, 1.442695
        %v2208 = vpow.pop %v2207
        %v2209 = vadd.f32 %v2208, 1.0
        %v2210 = vrcp.pop %v2209
        %v2211 = vmul.f32 1.0, %v2210
        %v2213 = vrot.slane %v2187, 7
        %v2215 = vmul.f32 %v2201, %v2213
        %v2216 = vadd.f32 %v1952, %v2215
        %v2217 = vtanh.pop %v2216
        %v2218 = vsub.f32 1.0, %v2211
        %v2219 = vmul.f32 %v2218, %v2217
        %v2221 = vrot.slane %v2106, 7
        %v2223 = vmul.f32 %v2211, %v2221
        %v2224 = vadd.f32 %v2219, %v2223
        %v2225 = vpack.c.bf16 %v2224, %v2224
        %v2227 = vshrl.u32 %v2225, 16
        %v2230 = vsel %vm1213, %v2227, 0
        %2232 = vmatprep.subr.bf16.mxu0 %v1978
        %2233 = vmatpush1.bf16.msra.mxu0 %v1977
        %2234 = vmatprep.subr.bf16.mxu0 %v1981
        %2235 = vmatpush1.bf16.msra.mxu0 %v1980
        %2236 = vmatprep.subr.bf16.mxu0 0
        %2237 = vmatpush1.bf16.msra.mxu0 0
        %2238 = vmatprep.subr.bf16.mxu0 0
        %2239 = vmatpush1.bf16.msra.mxu0 0
        %2240 = vmatprep.subr.bf16.mxu0 0
        %2241 = vmatpush1.bf16.msra.mxu0 0
        %2242 = vmatprep.subr.bf16.mxu0 0
        %2243 = vmatpush1.bf16.msra.mxu0 0
        %2244 = vmatprep.subr.bf16.mxu0 0
        %2245 = vmatpush1.bf16.msra.mxu0 0
        %2246 = vmatprep.subr.bf16.mxu0 0
        %2247 = vmatpush1.bf16.msra.mxu0 0
        %2248 = vmatprep.subr.bf16.mxu0 0
        %2249 = vmatpush1.bf16.msra.mxu0 0
        %2250 = vmatprep.subr.bf16.mxu0 0
        %2251 = vmatpush1.bf16.msra.mxu0 0
        %2252 = vmatprep.subr.bf16.mxu0 0
        %2253 = vmatpush1.bf16.msra.mxu0 0
        %2254 = vmatprep.subr.bf16.mxu0 0
        %2255 = vmatpush1.bf16.msra.mxu0 0
        %2256 = vmatprep.subr.bf16.mxu0 0
        %2257 = vmatpush1.bf16.msra.mxu0 0
        %2258 = vmatprep.subr.bf16.mxu0 0
        %2259 = vmatpush1.bf16.msra.mxu0 0
        %2260 = vmatprep.subr.bf16.mxu0 0
        %2261 = vmatpush1.bf16.msra.mxu0 0
        %2262 = vmatprep.subr.bf16.mxu0 0
        %2263 = vmatpush1.bf16.msra.mxu0 0
        %2264 = vmatprep.mubr.bf16.mxu0 0
        %2265 = vmatmul.mubr.bf16.gmra.mrb[0].mxu0 %v2230
        %v2266 = vpop.f32.mrb[0].mxu0
        %v2267 = vadd.f32 %v1993, %v2266
        %v2268 = vpop.f32.mrb[0].mxu0
        %v2269 = vadd.f32 %v1997, %v2268
        %v2270 = vpop.f32.mrb[0].mxu0
        %v2271 = vpop.f32.mrb[0].mxu0
        %2272 = vdwg.mxu0
        %2273 = vmatprep.subr.bf16.mxu0 0
        %2274 = vmatpush1.bf16.msra.mxu0 %v1979
        %2275 = vmatprep.subr.bf16.mxu0 0
        %2276 = vmatpush1.bf16.msra.mxu0 %v1982
        %2277 = vmatprep.subr.bf16.mxu0 0
        %2278 = vmatpush1.bf16.msra.mxu0 0
        %2279 = vmatprep.subr.bf16.mxu0 0
        %2280 = vmatpush1.bf16.msra.mxu0 0
        %2281 = vmatprep.subr.bf16.mxu0 0
        %2282 = vmatpush1.bf16.msra.mxu0 0
        %2283 = vmatprep.subr.bf16.mxu0 0
        %2284 = vmatpush1.bf16.msra.mxu0 0
        %2285 = vmatprep.subr.bf16.mxu0 0
        %2286 = vmatpush1.bf16.msra.mxu0 0
        %2287 = vmatprep.subr.bf16.mxu0 0
        %2288 = vmatpush1.bf16.msra.mxu0 0
        %2289 = vmatprep.subr.bf16.mxu0 0
        %2290 = vmatpush1.bf16.msra.mxu0 0
        %2291 = vmatprep.subr.bf16.mxu0 0
        %2292 = vmatpush1.bf16.msra.mxu0 0
        %2293 = vmatprep.subr.bf16.mxu0 0
        %2294 = vmatpush1.bf16.msra.mxu0 0
        %2295 = vmatprep.subr.bf16.mxu0 0
        %2296 = vmatpush1.bf16.msra.mxu0 0
        %2297 = vmatprep.subr.bf16.mxu0 0
        %2298 = vmatpush1.bf16.msra.mxu0 0
        %2299 = vmatprep.subr.bf16.mxu0 0
        %2300 = vmatpush1.bf16.msra.mxu0 0
        %2301 = vmatprep.subr.bf16.mxu0 0
        %2302 = vmatpush1.bf16.msra.mxu0 0
        %2303 = vmatprep.subr.bf16.mxu0 0
        %2304 = vmatpush1.bf16.msra.mxu0 0
        %2305 = vmatprep.mubr.bf16.mxu0 0
        %2306 = vmatmul.mubr.bf16.gmra.mrb[0].mxu0 %v2230
        %v2307 = vpop.f32.mrb[0].mxu0
        %v2308 = vadd.f32 %v2001, %v2307
        %v2309 = vpop.f32.mrb[0].mxu0
        %v2310 = vpop.f32.mrb[0].mxu0
        %v2311 = vpop.f32.mrb[0].mxu0
        %2312 = vdwg.mxu0
        %v2314 = vrot.slane %v2267, 6
        %v2316 = vadd.f32 %v1911, %v2314
        %v2317 = vxor.u32 %v2316, 2147483648
        %v2318 = vmul.f32 %v2317, 1.442695
        %v2319 = vpow.pop %v2318
        %v2320 = vadd.f32 %v2319, 1.0
        %v2321 = vrcp.pop %v2320
        %v2322 = vmul.f32 1.0, %v2321
        %v2324 = vrot.slane %v2269, 6
        %v2326 = vadd.f32 %v1913, %v2324
        %v2327 = vxor.u32 %v2326, 2147483648
        %v2328 = vmul.f32 %v2327, 1.442695
        %v2329 = vpow.pop %v2328
        %v2330 = vadd.f32 %v2329, 1.0
        %v2331 = vrcp.pop %v2330
        %v2332 = vmul.f32 1.0, %v2331
        %v2334 = vrot.slane %v2308, 6
        %v2336 = vmul.f32 %v2322, %v2334
        %v2337 = vadd.f32 %v1952, %v2336
        %v2338 = vtanh.pop %v2337
        %v2339 = vsub.f32 1.0, %v2332
        %v2340 = vmul.f32 %v2339, %v2338
        %v2342 = vrot.slane %v2224, 7
        %v2344 = vmul.f32 %v2332, %v2342
        %v2345 = vadd.f32 %v2340, %v2344
        %v2346 = vpack.c.bf16 %v2345, %v2345
        %v2348 = vrot.slane %v2346, 1
        %v2350 = vsel %vm1213, %v2348, 0
        %2352 = vmatprep.subr.bf16.mxu0 %v1978
        %2353 = vmatpush1.bf16.msra.mxu0 %v1977
        %2354 = vmatprep.subr.bf16.mxu0 %v1981
        %2355 = vmatpush1.bf16.msra.mxu0 %v1980
        %2356 = vmatprep.subr.bf16.mxu0 0
        %2357 = vmatpush1.bf16.msra.mxu0 0
        %2358 = vmatprep.subr.bf16.mxu0 0
        %2359 = vmatpush1.bf16.msra.mxu0 0
        %2360 = vmatprep.subr.bf16.mxu0 0
        %2361 = vmatpush1.bf16.msra.mxu0 0
        %2362 = vmatprep.subr.bf16.mxu0 0
        %2363 = vmatpush1.bf16.msra.mxu0 0
        %2364 = vmatprep.subr.bf16.mxu0 0
        %2365 = vmatpush1.bf16.msra.mxu0 0
        %2366 = vmatprep.subr.bf16.mxu0 0
        %2367 = vmatpush1.bf16.msra.mxu0 0
        %2368 = vmatprep.subr.bf16.mxu0 0
        %2369 = vmatpush1.bf16.msra.mxu0 0
        %2370 = vmatprep.subr.bf16.mxu0 0
        %2371 = vmatpush1.bf16.msra.mxu0 0
        %2372 = vmatprep.subr.bf16.mxu0 0
        %2373 = vmatpush1.bf16.msra.mxu0 0
        %2374 = vmatprep.subr.bf16.mxu0 0
        %2375 = vmatpush1.bf16.msra.mxu0 0
        %2376 = vmatprep.subr.bf16.mxu0 0
        %2377 = vmatpush1.bf16.msra.mxu0 0
        %2378 = vmatprep.subr.bf16.mxu0 0
        %2379 = vmatpush1.bf16.msra.mxu0 0
        %2380 = vmatprep.subr.bf16.mxu0 0
        %2381 = vmatpush1.bf16.msra.mxu0 0
        %2382 = vmatprep.subr.bf16.mxu0 0
        %2383 = vmatpush1.bf16.msra.mxu0 0
        %2384 = vmatprep.mubr.bf16.mxu0 0
        %2385 = vmatmul.mubr.bf16.gmra.mrb[0].mxu0 %v2350
        %v2386 = vpop.f32.mrb[0].mxu0
        %v2387 = vadd.f32 %v1993, %v2386
        %v2388 = vpop.f32.mrb[0].mxu0
        %v2389 = vadd.f32 %v1997, %v2388
        %v2390 = vpop.f32.mrb[0].mxu0
        %v2391 = vpop.f32.mrb[0].mxu0
        %2392 = vdwg.mxu0
        %2393 = vmatprep.subr.bf16.mxu0 0
        %2394 = vmatpush1.bf16.msra.mxu0 %v1979
        %2395 = vmatprep.subr.bf16.mxu0 0
        %2396 = vmatpush1.bf16.msra.mxu0 %v1982
        %2397 = vmatprep.subr.bf16.mxu0 0
        %2398 = vmatpush1.bf16.msra.mxu0 0
        %2399 = vmatprep.subr.bf16.mxu0 0
        %2400 = vmatpush1.bf16.msra.mxu0 0
        %2401 = vmatprep.subr.bf16.mxu0 0
        %2402 = vmatpush1.bf16.msra.mxu0 0
        %2403 = vmatprep.subr.bf16.mxu0 0
        %2404 = vmatpush1.bf16.msra.mxu0 0
        %2405 = vmatprep.subr.bf16.mxu0 0
        %2406 = vmatpush1.bf16.msra.mxu0 0
        %2407 = vmatprep.subr.bf16.mxu0 0
        %2408 = vmatpush1.bf16.msra.mxu0 0
        %2409 = vmatprep.subr.bf16.mxu0 0
        %2410 = vmatpush1.bf16.msra.mxu0 0
        %2411 = vmatprep.subr.bf16.mxu0 0
        %2412 = vmatpush1.bf16.msra.mxu0 0
        %2413 = vmatprep.subr.bf16.mxu0 0
        %2414 = vmatpush1.bf16.msra.mxu0 0
        %2415 = vmatprep.subr.bf16.mxu0 0
        %2416 = vmatpush1.bf16.msra.mxu0 0
        %2417 = vmatprep.subr.bf16.mxu0 0
        %2418 = vmatpush1.bf16.msra.mxu0 0
        %2419 = vmatprep.subr.bf16.mxu0 0
        %2420 = vmatpush1.bf16.msra.mxu0 0
        %2421 = vmatprep.subr.bf16.mxu0 0
        %2422 = vmatpush1.bf16.msra.mxu0 0
        %2423 = vmatprep.subr.bf16.mxu0 0
        %2424 = vmatpush1.bf16.msra.mxu0 0
        %2425 = vmatprep.mubr.bf16.mxu0 0
        %2426 = vmatmul.mubr.bf16.gmra.mrb[0].mxu0 %v2350
        %v2427 = vpop.f32.mrb[0].mxu0
        %v2428 = vadd.f32 %v2001, %v2427
        %v2429 = vpop.f32.mrb[0].mxu0
        %v2430 = vpop.f32.mrb[0].mxu0
        %v2431 = vpop.f32.mrb[0].mxu0
        %2432 = vdwg.mxu0
        %v2434 = vrot.slane %v2387, 5
        %v2436 = vadd.f32 %v1911, %v2434
        %v2437 = vxor.u32 %v2436, 2147483648
        %v2438 = vmul.f32 %v2437, 1.442695
        %v2439 = vpow.pop %v2438
        %v2440 = vadd.f32 %v2439, 1.0
        %v2441 = vrcp.pop %v2440
        %v2442 = vmul.f32 1.0, %v2441
        %v2444 = vrot.slane %v2389, 5
        %v2446 = vadd.f32 %v1913, %v2444
        %v2447 = vxor.u32 %v2446, 2147483648
        %v2448 = vmul.f32 %v2447, 1.442695
        %v2449 = vpow.pop %v2448
        %v2450 = vadd.f32 %v2449, 1.0
        %v2451 = vrcp.pop %v2450
        %v2452 = vmul.f32 1.0, %v2451
        %v2454 = vrot.slane %v2428, 5
        %v2456 = vmul.f32 %v2442, %v2454
        %v2457 = vadd.f32 %v1952, %v2456
        %v2458 = vtanh.pop %v2457
        %v2459 = vsub.f32 1.0, %v2452
        %v2460 = vmul.f32 %v2459, %v2458
        %v2462 = vrot.slane %v2345, 7
        %v2464 = vmul.f32 %v2452, %v2462
        %v2465 = vadd.f32 %v2460, %v2464
        %v2466 = vpack.c.bf16 %v2465, %v2465
        %v2468 = vshrl.u32 %v2466, 16
        %v2470 = vrot.slane %v2468, 1
        %v2472 = vsel %vm1213, %v2470, 0
        %2474 = vmatprep.subr.bf16.mxu0 %v1978
        %2475 = vmatpush1.bf16.msra.mxu0 %v1977
        %2476 = vmatprep.subr.bf16.mxu0 %v1981
        %2477 = vmatpush1.bf16.msra.mxu0 %v1980
        %2478 = vmatprep.subr.bf16.mxu0 0
        %2479 = vmatpush1.bf16.msra.mxu0 0
        %2480 = vmatprep.subr.bf16.mxu0 0
        %2481 = vmatpush1.bf16.msra.mxu0 0
        %2482 = vmatprep.subr.bf16.mxu0 0
        %2483 = vmatpush1.bf16.msra.mxu0 0
        %2484 = vmatprep.subr.bf16.mxu0 0
        %2485 = vmatpush1.bf16.msra.mxu0 0
        %2486 = vmatprep.subr.bf16.mxu0 0
        %2487 = vmatpush1.bf16.msra.mxu0 0
        %2488 = vmatprep.subr.bf16.mxu0 0
        %2489 = vmatpush1.bf16.msra.mxu0 0
        %2490 = vmatprep.subr.bf16.mxu0 0
        %2491 = vmatpush1.bf16.msra.mxu0 0
        %2492 = vmatprep.subr.bf16.mxu0 0
        %2493 = vmatpush1.bf16.msra.mxu0 0
        %2494 = vmatprep.subr.bf16.mxu0 0
        %2495 = vmatpush1.bf16.msra.mxu0 0
        %2496 = vmatprep.subr.bf16.mxu0 0
        %2497 = vmatpush1.bf16.msra.mxu0 0
        %2498 = vmatprep.subr.bf16.mxu0 0
        %2499 = vmatpush1.bf16.msra.mxu0 0
        %2500 = vmatprep.subr.bf16.mxu0 0
        %2501 = vmatpush1.bf16.msra.mxu0 0
        %2502 = vmatprep.subr.bf16.mxu0 0
        %2503 = vmatpush1.bf16.msra.mxu0 0
        %2504 = vmatprep.subr.bf16.mxu0 0
        %2505 = vmatpush1.bf16.msra.mxu0 0
        %2506 = vmatprep.mubr.bf16.mxu0 0
        %2507 = vmatmul.mubr.bf16.gmra.mrb[0].mxu0 %v2472
        %v2508 = vpop.f32.mrb[0].mxu0
        %v2509 = vadd.f32 %v1993, %v2508
        %v2510 = vpop.f32.mrb[0].mxu0
        %v2511 = vadd.f32 %v1997, %v2510
        %v2512 = vpop.f32.mrb[0].mxu0
        %v2513 = vpop.f32.mrb[0].mxu0
        %2514 = vdwg.mxu0
        %2515 = vmatprep.subr.bf16.mxu0 0
        %2516 = vmatpush1.bf16.msra.mxu0 %v1979
        %2517 = vmatprep.subr.bf16.mxu0 0
        %2518 = vmatpush1.bf16.msra.mxu0 %v1982
        %2519 = vmatprep.subr.bf16.mxu0 0
        %2520 = vmatpush1.bf16.msra.mxu0 0
        %2521 = vmatprep.subr.bf16.mxu0 0
        %2522 = vmatpush1.bf16.msra.mxu0 0
        %2523 = vmatprep.subr.bf16.mxu0 0
        %2524 = vmatpush1.bf16.msra.mxu0 0
        %2525 = vmatprep.subr.bf16.mxu0 0
        %2526 = vmatpush1.bf16.msra.mxu0 0
        %2527 = vmatprep.subr.bf16.mxu0 0
        %2528 = vmatpush1.bf16.msra.mxu0 0
        %2529 = vmatprep.subr.bf16.mxu0 0
        %2530 = vmatpush1.bf16.msra.mxu0 0
        %2531 = vmatprep.subr.bf16.mxu0 0
        %2532 = vmatpush1.bf16.msra.mxu0 0
        %2533 = vmatprep.subr.bf16.mxu0 0
        %2534 = vmatpush1.bf16.msra.mxu0 0
        %2535 = vmatprep.subr.bf16.mxu0 0
        %2536 = vmatpush1.bf16.msra.mxu0 0
        %2537 = vmatprep.subr.bf16.mxu0 0
        %2538 = vmatpush1.bf16.msra.mxu0 0
        %2539 = vmatprep.subr.bf16.mxu0 0
        %2540 = vmatpush1.bf16.msra.mxu0 0
        %2541 = vmatprep.subr.bf16.mxu0 0
        %2542 = vmatpush1.bf16.msra.mxu0 0
        %2543 = vmatprep.subr.bf16.mxu0 0
        %2544 = vmatpush1.bf16.msra.mxu0 0
        %2545 = vmatprep.subr.bf16.mxu0 0
        %2546 = vmatpush1.bf16.msra.mxu0 0
        %2547 = vmatprep.mubr.bf16.mxu0 0
        %2548 = vmatmul.mubr.bf16.gmra.mrb[0].mxu0 %v2472
        %v2549 = vpop.f32.mrb[0].mxu0
        %v2550 = vadd.f32 %v2001, %v2549
        %v2551 = vpop.f32.mrb[0].mxu0
        %v2552 = vpop.f32.mrb[0].mxu0
        %v2553 = vpop.f32.mrb[0].mxu0
        %2554 = vdwg.mxu0
        %v2556 = vrot.slane %v2509, 4
        %v2558 = vadd.f32 %v1911, %v2556
        %v2559 = vxor.u32 %v2558, 2147483648
        %v2560 = vmul.f32 %v2559, 1.442695
        %v2561 = vpow.pop %v2560
        %v2562 = vadd.f32 %v2561, 1.0
        %v2563 = vrcp.pop %v2562
        %v2564 = vmul.f32 1.0, %v2563
        %v2566 = vrot.slane %v2511, 4
        %v2568 = vadd.f32 %v1913, %v2566
        %v2569 = vxor.u32 %v2568, 2147483648
        %v2570 = vmul.f32 %v2569, 1.442695
        %v2571 = vpow.pop %v2570
        %v2572 = vadd.f32 %v2571, 1.0
        %v2573 = vrcp.pop %v2572
        %v2574 = vmul.f32 1.0, %v2573
        %v2576 = vrot.slane %v2550, 4
        %v2578 = vmul.f32 %v2564, %v2576
        %v2579 = vadd.f32 %v1952, %v2578
        %v2580 = vtanh.pop %v2579
        %v2581 = vsub.f32 1.0, %v2574
        %v2582 = vmul.f32 %v2581, %v2580
        %v2584 = vrot.slane %v2465, 7
        %v2586 = vmul.f32 %v2574, %v2584
        %v2587 = vadd.f32 %v2582, %v2586
        %v2588 = vsel %vm887, %v2106, %v2224
        %v2589 = vsel %vm889, %v2588, %v2345
        %v2590 = vsel %vm891, %v2589, %v2465
        %v2591 = vsel %vm893, %v2590, %v2587
        %v2592 = vld [vmem:[%s2 + $0x5] ss:$0 sm:$0xff]
        %v2593 = vld [vmem:[%s2 + $0x6] ss:$0 sm:$0xff]
        %vm2594 = vcmask 258048
        %v2595 = vsel %vm2594, %v2591, 0.0
        %2596 = vadd.xlane.f32.xlu0 %v2595
        %v2597 = vpop.xlane.xlu0 %2596
        %v2598 = vrcp.pop 32.0
        %v2599 = vmul.f32 %v2597, %v2598
        %v2600 = vsub.f32 %v2591, %v2599
        %v2601 = vmul.f32 %v2600, %v2600
        %v2602 = vsel %vm2594, %v2601, 0.0
        %2603 = vadd.xlane.f32.xlu0 %v2602
        %v2604 = vpop.xlane.xlu0 %2603
        %v2605 = vmul.f32 %v2604, %v2598
        %v2606 = vadd.f32 %v2605, 1e-05
        %v2607 = vrsqrt.pop %v2606
        %v2608 = vmul.f32 %v2600, %v2607
        %v2609 = vmul.f32 %v2608, %v2592
        %v2610 = vadd.f32 %v2609, %v2593
        %v2611 = vpack.c.bf16 %v2610, %v2610
        %v2612 = vld [vmem:[#allocation2 + $0x4b0] sm:$0xff]
        %v2613 = vld [vmem:[#allocation2 + $0x4b8] sm:$0xff]
        %v2614 = vld [vmem:[#allocation2 + $0x4c4] sm:$0xff]
        %v2615 = vld [vmem:[#allocation2 + $0x4cc] sm:$0xff]
        %v2616 = vld [vmem:[#allocation2 + $0x4d8] sm:$0xff]
        %v2617 = vld [vmem:[#allocation2 + $0x4e0] sm:$0xff]
        %v2618 = vld [vmem:[#allocation2 + $0x4ec] sm:$0xff]
        %v2619 = vld [vmem:[#allocation2 + $0x4f4] sm:$0xff]
        %s2620 = scalar_lea.vmem %s2, 7
        %v2621 = vld [vmem:[%s2620] ss:$8 sm:$0xf]
        %v2623 = vlaneseq
        %v2624 = vshrl.u32 %v2623, 7
        %v2625 = vsub.s32 0, %v2624
        %v2626 = vrot.slane %v2621, %v2625
        %v2627 = vlaneseq
        %v2628 = vshrl.u32 %v2627, 7
        %v2629 = vsub.s32 1, %v2628
        %v2630 = vrot.slane %v2621, %v2629
        %v2631 = vlaneseq
        %v2632 = vshrl.u32 %v2631, 7
        %v2633 = vsub.s32 2, %v2632
        %v2634 = vrot.slane %v2621, %v2633
        %v2635 = vlaneseq
        %v2636 = vshrl.u32 %v2635, 7
        %v2637 = vsub.s32 3, %v2636
        %v2638 = vrot.slane %v2621, %v2637
        %v2651 = vunpack.c.l.b16 %v2612
        %v2652 = vunpack.c.h.b16 %v2612
        %v2653 = vunpack.c.l.b16 %v2613
        %v2654 = vunpack.c.h.b16 %v2613
        %v2655 = vunpack.c.l.b16 %v2614
        %v2656 = vunpack.c.h.b16 %v2614
        %v2657 = vunpack.c.l.b16 %v2615
        %v2658 = vunpack.c.h.b16 %v2615
        %v2659 = vunpack.c.l.b16 %v2616
        %v2660 = vunpack.c.h.b16 %v2616
        %v2661 = vunpack.c.l.b16 %v2617
        %v2662 = vunpack.c.h.b16 %v2617
        %v2663 = vunpack.c.l.b16 %v2618
        %v2664 = vunpack.c.h.b16 %v2618
        %v2665 = vunpack.c.l.b16 %v2619
        %v2666 = vunpack.c.h.b16 %v2619
        %v2667 = vpack.c.b16 %v2655, %v2651
        %v2668 = vpack.c.b16 %v2656, %v2652
        %v2669 = vpack.c.b16 %v2657, %v2653
        %v2670 = vpack.c.b16 %v2658, %v2654
        %v2671 = vpack.c.b16 %v2663, %v2659
        %v2672 = vpack.c.b16 %v2664, %v2660
        %v2673 = vpack.c.b16 %v2665, %v2661
        %v2674 = vpack.c.b16 %v2666, %v2662
        %v2684 = vsel %vm1213, %v2611, 0
        %2686 = vmatprep.subr.bf16.mxu0 %v2668
        %2687 = vmatpush1.bf16.msra.mxu0 %v2667
        %2688 = vmatprep.subr.bf16.mxu0 %v2672
        %2689 = vmatpush1.bf16.msra.mxu0 %v2671
        %2690 = vmatprep.subr.bf16.mxu0 0
        %2691 = vmatpush1.bf16.msra.mxu0 0
        %2692 = vmatprep.subr.bf16.mxu0 0
        %2693 = vmatpush1.bf16.msra.mxu0 0
        %2694 = vmatprep.subr.bf16.mxu0 0
        %2695 = vmatpush1.bf16.msra.mxu0 0
        %2696 = vmatprep.subr.bf16.mxu0 0
        %2697 = vmatpush1.bf16.msra.mxu0 0
        %2698 = vmatprep.subr.bf16.mxu0 0
        %2699 = vmatpush1.bf16.msra.mxu0 0
        %2700 = vmatprep.subr.bf16.mxu0 0
        %2701 = vmatpush1.bf16.msra.mxu0 0
        %2702 = vmatprep.subr.bf16.mxu0 0
        %2703 = vmatpush1.bf16.msra.mxu0 0
        %2704 = vmatprep.subr.bf16.mxu0 0
        %2705 = vmatpush1.bf16.msra.mxu0 0
        %2706 = vmatprep.subr.bf16.mxu0 0
        %2707 = vmatpush1.bf16.msra.mxu0 0
        %2708 = vmatprep.subr.bf16.mxu0 0
        %2709 = vmatpush1.bf16.msra.mxu0 0
        %2710 = vmatprep.subr.bf16.mxu0 0
        %2711 = vmatpush1.bf16.msra.mxu0 0
        %2712 = vmatprep.subr.bf16.mxu0 0
        %2713 = vmatpush1.bf16.msra.mxu0 0
        %2714 = vmatprep.subr.bf16.mxu0 0
        %2715 = vmatpush1.bf16.msra.mxu0 0
        %2716 = vmatprep.subr.bf16.mxu0 0
        %2717 = vmatpush1.bf16.msra.mxu0 0
        %2718 = vmatprep.mubr.bf16.mxu0 0
        %2719 = vmatmul.mubr.bf16.gmra.mrb[0].mxu0 %v2684
        %v2720 = vpop.f32.mrb[0].mxu0
        %v2721 = vadd.f32 %v2626, %v2720
        %v2722 = vpop.f32.mrb[0].mxu0
        %v2723 = vadd.f32 %v2630, %v2722
        %v2724 = vpop.f32.mrb[0].mxu0
        %v2725 = vpop.f32.mrb[0].mxu0
        %2726 = vdwg.mxu0
        %2727 = vmatprep.subr.bf16.mxu0 %v2670
        %2728 = vmatpush1.bf16.msra.mxu0 %v2669
        %2729 = vmatprep.subr.bf16.mxu0 %v2674
        %2730 = vmatpush1.bf16.msra.mxu0 %v2673
        %2731 = vmatprep.subr.bf16.mxu0 0
        %2732 = vmatpush1.bf16.msra.mxu0 0
        %2733 = vmatprep.subr.bf16.mxu0 0
        %2734 = vmatpush1.bf16.msra.mxu0 0
        %2735 = vmatprep.subr.bf16.mxu0 0
        %2736 = vmatpush1.bf16.msra.mxu0 0
        %2737 = vmatprep.subr.bf16.mxu0 0
        %2738 = vmatpush1.bf16.msra.mxu0 0
        %2739 = vmatprep.subr.bf16.mxu0 0
        %2740 = vmatpush1.bf16.msra.mxu0 0
        %2741 = vmatprep.subr.bf16.mxu0 0
        %2742 = vmatpush1.bf16.msra.mxu0 0
        %2743 = vmatprep.subr.bf16.mxu0 0
        %2744 = vmatpush1.bf16.msra.mxu0 0
        %2745 = vmatprep.subr.bf16.mxu0 0
        %2746 = vmatpush1.bf16.msra.mxu0 0
        %2747 = vmatprep.subr.bf16.mxu0 0
        %2748 = vmatpush1.bf16.msra.mxu0 0
        %2749 = vmatprep.subr.bf16.mxu0 0
        %2750 = vmatpush1.bf16.msra.mxu0 0
        %2751 = vmatprep.subr.bf16.mxu0 0
        %2752 = vmatpush1.bf16.msra.mxu0 0
        %2753 = vmatprep.subr.bf16.mxu0 0
        %2754 = vmatpush1.bf16.msra.mxu0 0
        %2755 = vmatprep.subr.bf16.mxu0 0
        %2756 = vmatpush1.bf16.msra.mxu0 0
        %2757 = vmatprep.subr.bf16.mxu0 0
        %2758 = vmatpush1.bf16.msra.mxu0 0
        %2759 = vmatprep.mubr.bf16.mxu0 0
        %2760 = vmatmul.mubr.bf16.gmra.mrb[0].mxu0 %v2684
        %v2761 = vpop.f32.mrb[0].mxu0
        %v2762 = vadd.f32 %v2634, %v2761
        %v2763 = vpop.f32.mrb[0].mxu0
        %v2764 = vadd.f32 %v2638, %v2763
        %v2765 = vpop.f32.mrb[0].mxu0
        %v2766 = vpop.f32.mrb[0].mxu0
        %2767 = vdwg.mxu0
        %v2768 = vld [vmem:[#allocation2 + $0x500] sm:$0xff]
        %v2769 = vld [vmem:[#allocation2 + $0x508] sm:$0xff]
        %v2770 = vld [vmem:[#allocation2 + $0x514] sm:$0xff]
        %v2771 = vld [vmem:[#allocation2 + $0x51c] sm:$0xff]
        %v2772 = vld [vmem:[#allocation2 + $0x528] sm:$0xff]
        %v2773 = vld [vmem:[#allocation2 + $0x530] sm:$0xff]
        %v2774 = vld [vmem:[#allocation2 + $0x53c] sm:$0xff]
        %v2775 = vld [vmem:[#allocation2 + $0x544] sm:$0xff]
        %v2784 = vunpack.c.l.b16 %v2768
        %v2785 = vunpack.c.h.b16 %v2768
        %v2786 = vunpack.c.l.b16 %v2769
        %v2787 = vunpack.c.h.b16 %v2769
        %v2788 = vunpack.c.l.b16 %v2770
        %v2789 = vunpack.c.h.b16 %v2770
        %v2790 = vunpack.c.l.b16 %v2771
        %v2791 = vunpack.c.h.b16 %v2771
        %v2792 = vunpack.c.l.b16 %v2772
        %v2793 = vunpack.c.h.b16 %v2772
        %v2794 = vunpack.c.l.b16 %v2773
        %v2795 = vunpack.c.h.b16 %v2773
        %v2796 = vunpack.c.l.b16 %v2774
        %v2797 = vunpack.c.h.b16 %v2774
        %v2798 = vunpack.c.l.b16 %v2775
        %v2799 = vunpack.c.h.b16 %v2775
        %v2800 = vpack.c.b16 %v2788, %v2784
        %v2801 = vpack.c.b16 %v2789, %v2785
        %v2802 = vpack.c.b16 %v2790, %v2786
        %v2803 = vpack.c.b16 %v2791, %v2787
        %v2804 = vpack.c.b16 %v2796, %v2792
        %v2805 = vpack.c.b16 %v2797, %v2793
        %v2806 = vpack.c.b16 %v2798, %v2794
        %v2807 = vpack.c.b16 %v2799, %v2795
        %2816 = vmatprep.subr.bf16.mxu0 %v2801
        %2817 = vmatpush1.bf16.msra.mxu0 %v2800
        %2818 = vmatprep.subr.bf16.mxu0 %v2805
        %2819 = vmatpush1.bf16.msra.mxu0 %v2804
        %2820 = vmatprep.subr.bf16.mxu0 0
        %2821 = vmatpush1.bf16.msra.mxu0 0
        %2822 = vmatprep.subr.bf16.mxu0 0
        %2823 = vmatpush1.bf16.msra.mxu0 0
        %2824 = vmatprep.subr.bf16.mxu0 0
        %2825 = vmatpush1.bf16.msra.mxu0 0
        %2826 = vmatprep.subr.bf16.mxu0 0
        %2827 = vmatpush1.bf16.msra.mxu0 0
        %2828 = vmatprep.subr.bf16.mxu0 0
        %2829 = vmatpush1.bf16.msra.mxu0 0
        %2830 = vmatprep.subr.bf16.mxu0 0
        %2831 = vmatpush1.bf16.msra.mxu0 0
        %2832 = vmatprep.subr.bf16.mxu0 0
        %2833 = vmatpush1.bf16.msra.mxu0 0
        %2834 = vmatprep.subr.bf16.mxu0 0
        %2835 = vmatpush1.bf16.msra.mxu0 0
        %2836 = vmatprep.subr.bf16.mxu0 0
        %2837 = vmatpush1.bf16.msra.mxu0 0
        %2838 = vmatprep.subr.bf16.mxu0 0
        %2839 = vmatpush1.bf16.msra.mxu0 0
        %2840 = vmatprep.subr.bf16.mxu0 0
        %2841 = vmatpush1.bf16.msra.mxu0 0
        %2842 = vmatprep.subr.bf16.mxu0 0
        %2843 = vmatpush1.bf16.msra.mxu0 0
        %2844 = vmatprep.subr.bf16.mxu0 0
        %2845 = vmatpush1.bf16.msra.mxu0 0
        %2846 = vmatprep.subr.bf16.mxu0 0
        %2847 = vmatpush1.bf16.msra.mxu0 0
        %2848 = vmatprep.mubr.bf16.mxu0 0
        %2849 = vmatmul.mubr.bf16.gmra.mrb[0].mxu0 %v2684
        %v2850 = vpop.f32.mrb[0].mxu0
        %v2851 = vadd.f32 0.0, %v2850
        %v2852 = vpop.f32.mrb[0].mxu0
        %v2853 = vadd.f32 0.0, %v2852
        %v2854 = vpop.f32.mrb[0].mxu0
        %v2855 = vpop.f32.mrb[0].mxu0
        %2856 = vdwg.mxu0
        %2857 = vmatprep.subr.bf16.mxu0 %v2803
        %2858 = vmatpush1.bf16.msra.mxu0 %v2802
        %2859 = vmatprep.subr.bf16.mxu0 %v2807
        %2860 = vmatpush1.bf16.msra.mxu0 %v2806
        %2861 = vmatprep.subr.bf16.mxu0 0
        %2862 = vmatpush1.bf16.msra.mxu0 0
        %2863 = vmatprep.subr.bf16.mxu0 0
        %2864 = vmatpush1.bf16.msra.mxu0 0
        %2865 = vmatprep.subr.bf16.mxu0 0
        %2866 = vmatpush1.bf16.msra.mxu0 0
        %2867 = vmatprep.subr.bf16.mxu0 0
        %2868 = vmatpush1.bf16.msra.mxu0 0
        %2869 = vmatprep.subr.bf16.mxu0 0
        %2870 = vmatpush1.bf16.msra.mxu0 0
        %2871 = vmatprep.subr.bf16.mxu0 0
        %2872 = vmatpush1.bf16.msra.mxu0 0
        %2873 = vmatprep.subr.bf16.mxu0 0
        %2874 = vmatpush1.bf16.msra.mxu0 0
        %2875 = vmatprep.subr.bf16.mxu0 0
        %2876 = vmatpush1.bf16.msra.mxu0 0
        %2877 = vmatprep.subr.bf16.mxu0 0
        %2878 = vmatpush1.bf16.msra.mxu0 0
        %2879 = vmatprep.subr.bf16.mxu0 0
        %2880 = vmatpush1.bf16.msra.mxu0 0
        %2881 = vmatprep.subr.bf16.mxu0 0
        %2882 = vmatpush1.bf16.msra.mxu0 0
        %2883 = vmatprep.subr.bf16.mxu0 0
        %2884 = vmatpush1.bf16.msra.mxu0 0
        %2885 = vmatprep.subr.bf16.mxu0 0
        %2886 = vmatpush1.bf16.msra.mxu0 0
        %2887 = vmatprep.subr.bf16.mxu0 0
        %2888 = vmatpush1.bf16.msra.mxu0 0
        %2889 = vmatprep.mubr.bf16.mxu0 0
        %2890 = vmatmul.mubr.bf16.gmra.mrb[0].mxu0 %v2684
        %v2891 = vpop.f32.mrb[0].mxu0
        %v2892 = vadd.f32 0.0, %v2891
        %v2893 = vpop.f32.mrb[0].mxu0
        %v2894 = vadd.f32 0.0, %v2893
        %v2895 = vpop.f32.mrb[0].mxu0
        %v2896 = vpop.f32.mrb[0].mxu0
        %2897 = vdwg.mxu0
        %v2898 = vpack.c.bf16 %v2851, %v2851
        %v2899 = vpack.c.bf16 %v2853, %v2853
        %v2900 = vpack.c.bf16 %v2892, %v2892
        %v2901 = vpack.c.bf16 %v2894, %v2894
        %v2902 = vpack.c.bf16 %v2721, %v2721
        %v2904 = vsel %vm1213, %v2902, 0
        %2906 = vmatprep.subr.bf16.mxu0 0
        %2907 = vmatpush1.bf16.xpose.msra.mxu0 %v2684
        %2908 = vmatprep.subr.bf16.mxu0 0
        %2909 = vmatpush1.bf16.xpose.msra.mxu0 0
        %2910 = vmatprep.subr.bf16.mxu0 0
        %2911 = vmatpush1.bf16.xpose.msra.mxu0 0
        %2912 = vmatprep.subr.bf16.mxu0 0
        %2913 = vmatpush1.bf16.xpose.msra.mxu0 0
        %2914 = vmatprep.subr.bf16.mxu0 0
        %2915 = vmatpush1.bf16.xpose.msra.mxu0 0
        %2916 = vmatprep.subr.bf16.mxu0 0
        %2917 = vmatpush1.bf16.xpose.msra.mxu0 0
        %2918 = vmatprep.subr.bf16.mxu0 0
        %2919 = vmatpush1.bf16.xpose.msra.mxu0 0
        %2920 = vmatprep.subr.bf16.mxu0 0
        %2921 = vmatpush1.bf16.xpose.msra.mxu0 0
        %2922 = vmatprep.subr.bf16.mxu0 0
        %2923 = vmatpush1.bf16.xpose.msra.mxu0 0
        %2924 = vmatprep.subr.bf16.mxu0 0
        %2925 = vmatpush1.bf16.xpose.msra.mxu0 0
        %2926 = vmatprep.subr.bf16.mxu0 0
        %2927 = vmatpush1.bf16.xpose.msra.mxu0 0
        %2928 = vmatprep.subr.bf16.mxu0 0
        %2929 = vmatpush1.bf16.xpose.msra.mxu0 0
        %2930 = vmatprep.subr.bf16.mxu0 0
        %2931 = vmatpush1.bf16.xpose.msra.mxu0 0
        %2932 = vmatprep.subr.bf16.mxu0 0
        %2933 = vmatpush1.bf16.xpose.msra.mxu0 0
        %2934 = vmatprep.subr.bf16.mxu0 0
        %2935 = vmatpush1.bf16.xpose.msra.mxu0 0
        %2936 = vmatprep.subr.bf16.mxu0 0
        %2937 = vmatpush1.bf16.xpose.msra.mxu0 0
        %2938 = vmatprep.mubr.bf16.mxu0 0
        %2939 = vmatmul.mubr.bf16.gmra.mrb[0].mxu0 %v2904
        %v2940 = vpop.f32.mrb[0].mxu0
        %v2941 = vadd.f32 0.0, %v2940
        %v2942 = vpop.f32.mrb[0].mxu0
        %v2943 = vpop.f32.mrb[0].mxu0
        %v2944 = vpop.f32.mrb[0].mxu0
        %2945 = vdwg.mxu0
        %vm2946 = vcmask 36864
        %v2947 = vsel %vm2946, %v2941, -inf
        %2948 = vmax.xlane.f32.xlu0 %v2947
        %v2949 = vpop.xlane.xlu0 %2948
        %v2950 = vsub.f32 %v2941, %v2949
        %v2951 = vmul.f32 %v2950, 1.442695
        %v2952 = vpow.pop %v2951
        %v2953 = vsel %vm2946, %v2952, 0.0
        %2954 = vadd.xlane.f32.xlu0 %v2953
        %v2955 = vpop.xlane.xlu0 %2954
        %v2956 = vrcp.pop %v2955
        %v2957 = vmul.f32 %v2952, %v2956
        %v2958 = vpack.c.bf16 %v2957, %v2957
        %v2959 = vpack.c.bf16 %v2723, %v2723
        %v2961 = vsel %vm1213, %v2959, 0
        %2963 = vmatprep.subr.bf16.mxu0 0
        %2964 = vmatpush1.bf16.xpose.msra.mxu0 %v2684
        %2965 = vmatprep.subr.bf16.mxu0 0
        %2966 = vmatpush1.bf16.xpose.msra.mxu0 0
        %2967 = vmatprep.subr.bf16.mxu0 0
        %2968 = vmatpush1.bf16.xpose.msra.mxu0 0
        %2969 = vmatprep.subr.bf16.mxu0 0
        %2970 = vmatpush1.bf16.xpose.msra.mxu0 0
        %2971 = vmatprep.subr.bf16.mxu0 0
        %2972 = vmatpush1.bf16.xpose.msra.mxu0 0
        %2973 = vmatprep.subr.bf16.mxu0 0
        %2974 = vmatpush1.bf16.xpose.msra.mxu0 0
        %2975 = vmatprep.subr.bf16.mxu0 0
        %2976 = vmatpush1.bf16.xpose.msra.mxu0 0
        %2977 = vmatprep.subr.bf16.mxu0 0
        %2978 = vmatpush1.bf16.xpose.msra.mxu0 0
        %2979 = vmatprep.subr.bf16.mxu0 0
        %2980 = vmatpush1.bf16.xpose.msra.mxu0 0
        %2981 = vmatprep.subr.bf16.mxu0 0
        %2982 = vmatpush1.bf16.xpose.msra.mxu0 0
        %2983 = vmatprep.subr.bf16.mxu0 0
        %2984 = vmatpush1.bf16.xpose.msra.mxu0 0
        %2985 = vmatprep.subr.bf16.mxu0 0
        %2986 = vmatpush1.bf16.xpose.msra.mxu0 0
        %2987 = vmatprep.subr.bf16.mxu0 0
        %2988 = vmatpush1.bf16.xpose.msra.mxu0 0
        %2989 = vmatprep.subr.bf16.mxu0 0
        %2990 = vmatpush1.bf16.xpose.msra.mxu0 0
        %2991 = vmatprep.subr.bf16.mxu0 0
        %2992 = vmatpush1.bf16.xpose.msra.mxu0 0
        %2993 = vmatprep.subr.bf16.mxu0 0
        %2994 = vmatpush1.bf16.xpose.msra.mxu0 0
        %2995 = vmatprep.mubr.bf16.mxu0 0
        %2996 = vmatmul.mubr.bf16.gmra.mrb[0].mxu0 %v2961
        %v2997 = vpop.f32.mrb[0].mxu0
        %v2998 = vadd.f32 0.0, %v2997
        %v2999 = vpop.f32.mrb[0].mxu0
        %v3000 = vpop.f32.mrb[0].mxu0
        %v3001 = vpop.f32.mrb[0].mxu0
        %3002 = vdwg.mxu0
        %v3003 = vsel %vm2946, %v2998, -inf
        %3004 = vmax.xlane.f32.xlu0 %v3003
        %v3005 = vpop.xlane.xlu0 %3004
        %v3006 = vsub.f32 %v2998, %v3005
        %v3007 = vmul.f32 %v3006, 1.442695
        %v3008 = vpow.pop %v3007
        %v3009 = vsel %vm2946, %v3008, 0.0
        %3010 = vadd.xlane.f32.xlu0 %v3009
        %v3011 = vpop.xlane.xlu0 %3010
        %v3012 = vrcp.pop %v3011
        %v3013 = vmul.f32 %v3008, %v3012
        %v3014 = vpack.c.bf16 %v3013, %v3013
        %vm3015 = vcmask 39936
        %v3017 = vsel %vm3015, %v3014, 0
        %v3019 = vsel %vm889, 4294967295, 65535
        %v3020 = vsel %vm891, %v3019, 0
        %v3022 = vand.u32 %v2899, %v3020
        %3024 = vmatprep.subr.bf16.mxu0 0
        %3025 = vmatpush1.bf16.msra.mxu0 %v3022
        %3026 = vmatprep.subr.bf16.mxu0 0
        %3027 = vmatpush1.bf16.msra.mxu0 0
        %3028 = vmatprep.subr.bf16.mxu0 0
        %3029 = vmatpush1.bf16.msra.mxu0 0
        %3030 = vmatprep.subr.bf16.mxu0 0
        %3031 = vmatpush1.bf16.msra.mxu0 0
        %3032 = vmatprep.subr.bf16.mxu0 0
        %3033 = vmatpush1.bf16.msra.mxu0 0
        %3034 = vmatprep.subr.bf16.mxu0 0
        %3035 = vmatpush1.bf16.msra.mxu0 0
        %3036 = vmatprep.subr.bf16.mxu0 0
        %3037 = vmatpush1.bf16.msra.mxu0 0
        %3038 = vmatprep.subr.bf16.mxu0 0
        %3039 = vmatpush1.bf16.msra.mxu0 0
        %3040 = vmatprep.subr.bf16.mxu0 0
        %3041 = vmatpush1.bf16.msra.mxu0 0
        %3042 = vmatprep.subr.bf16.mxu0 0
        %3043 = vmatpush1.bf16.msra.mxu0 0
        %3044 = vmatprep.subr.bf16.mxu0 0
        %3045 = vmatpush1.bf16.msra.mxu0 0
        %3046 = vmatprep.subr.bf16.mxu0 0
        %3047 = vmatpush1.bf16.msra.mxu0 0
        %3048 = vmatprep.subr.bf16.mxu0 0
        %3049 = vmatpush1.bf16.msra.mxu0 0
        %3050 = vmatprep.subr.bf16.mxu0 0
        %3051 = vmatpush1.bf16.msra.mxu0 0
        %3052 = vmatprep.subr.bf16.mxu0 0
        %3053 = vmatpush1.bf16.msra.mxu0 0
        %3054 = vmatprep.subr.bf16.mxu0 0
        %3055 = vmatpush1.bf16.msra.mxu0 0
        %3056 = vmatprep.mubr.bf16.mxu0 0
        %3057 = vmatmul.mubr.bf16.gmra.mrb[0].mxu0 %v3017
        %v3058 = vpop.f32.mrb[0].mxu0
        %v3059 = vadd.f32 0.0, %v3058
        %v3060 = vpop.f32.mrb[0].mxu0
        %v3061 = vpop.f32.mrb[0].mxu0
        %v3062 = vpop.f32.mrb[0].mxu0
        %3063 = vdwg.mxu0
        %v3065 = vsel %vm3015, %v2958, 0
        %v3068 = vand.u32 %v2898, %v3020
        %3070 = vmatprep.subr.bf16.mxu0 0
        %3071 = vmatpush1.bf16.msra.mxu0 %v3068
        %3072 = vmatprep.subr.bf16.mxu0 0
        %3073 = vmatpush1.bf16.msra.mxu0 0
        %3074 = vmatprep.subr.bf16.mxu0 0
        %3075 = vmatpush1.bf16.msra.mxu0 0
        %3076 = vmatprep.subr.bf16.mxu0 0
        %3077 = vmatpush1.bf16.msra.mxu0 0
        %3078 = vmatprep.subr.bf16.mxu0 0
        %3079 = vmatpush1.bf16.msra.mxu0 0
        %3080 = vmatprep.subr.bf16.mxu0 0
        %3081 = vmatpush1.bf16.msra.mxu0 0
        %3082 = vmatprep.subr.bf16.mxu0 0
        %3083 = vmatpush1.bf16.msra.mxu0 0
        %3084 = vmatprep.subr.bf16.mxu0 0
        %3085 = vmatpush1.bf16.msra.mxu0 0
        %3086 = vmatprep.subr.bf16.mxu0 0
        %3087 = vmatpush1.bf16.msra.mxu0 0
        %3088 = vmatprep.subr.bf16.mxu0 0
        %3089 = vmatpush1.bf16.msra.mxu0 0
        %3090 = vmatprep.subr.bf16.mxu0 0
        %3091 = vmatpush1.bf16.msra.mxu0 0
        %3092 = vmatprep.subr.bf16.mxu0 0
        %3093 = vmatpush1.bf16.msra.mxu0 0
        %3094 = vmatprep.subr.bf16.mxu0 0
        %3095 = vmatpush1.bf16.msra.mxu0 0
        %3096 = vmatprep.subr.bf16.mxu0 0
        %3097 = vmatpush1.bf16.msra.mxu0 0
        %3098 = vmatprep.subr.bf16.mxu0 0
        %3099 = vmatpush1.bf16.msra.mxu0 0
        %3100 = vmatprep.subr.bf16.mxu0 0
        %3101 = vmatpush1.bf16.msra.mxu0 0
        %3102 = vmatprep.mubr.bf16.mxu0 0
        %3103 = vmatmul.mubr.bf16.gmra.mrb[0].mxu0 %v3065
        %v3104 = vpop.f32.mrb[0].mxu0
        %v3105 = vadd.f32 %v3059, %v3104
        %v3106 = vpop.f32.mrb[0].mxu0
        %v3107 = vpop.f32.mrb[0].mxu0
        %v3108 = vpop.f32.mrb[0].mxu0
        %3109 = vdwg.mxu0
        %v3110 = vpack.c.bf16 %v2762, %v2762
        %v3112 = vsel %vm1213, %v3110, 0
        %3114 = vmatprep.subr.bf16.mxu0 0
        %3115 = vmatpush1.bf16.xpose.msra.mxu0 %v2684
        %3116 = vmatprep.subr.bf16.mxu0 0
        %3117 = vmatpush1.bf16.xpose.msra.mxu0 0
        %3118 = vmatprep.subr.bf16.mxu0 0
        %3119 = vmatpush1.bf16.xpose.msra.mxu0 0
        %3120 = vmatprep.subr.bf16.mxu0 0
        %3121 = vmatpush1.bf16.xpose.msra.mxu0 0
        %3122 = vmatprep.subr.bf16.mxu0 0
        %3123 = vmatpush1.bf16.xpose.msra.mxu0 0
        %3124 = vmatprep.subr.bf16.mxu0 0
        %3125 = vmatpush1.bf16.xpose.msra.mxu0 0
        %3126 = vmatprep.subr.bf16.mxu0 0
        %3127 = vmatpush1.bf16.xpose.msra.mxu0 0
        %3128 = vmatprep.subr.bf16.mxu0 0
        %3129 = vmatpush1.bf16.xpose.msra.mxu0 0
        %3130 = vmatprep.subr.bf16.mxu0 0
        %3131 = vmatpush1.bf16.xpose.msra.mxu0 0
        %3132 = vmatprep.subr.bf16.mxu0 0
        %3133 = vmatpush1.bf16.xpose.msra.mxu0 0
        %3134 = vmatprep.subr.bf16.mxu0 0
        %3135 = vmatpush1.bf16.xpose.msra.mxu0 0
        %3136 = vmatprep.subr.bf16.mxu0 0
        %3137 = vmatpush1.bf16.xpose.msra.mxu0 0
        %3138 = vmatprep.subr.bf16.mxu0 0
        %3139 = vmatpush1.bf16.xpose.msra.mxu0 0
        %3140 = vmatprep.subr.bf16.mxu0 0
        %3141 = vmatpush1.bf16.xpose.msra.mxu0 0
        %3142 = vmatprep.subr.bf16.mxu0 0
        %3143 = vmatpush1.bf16.xpose.msra.mxu0 0
        %3144 = vmatprep.subr.bf16.mxu0 0
        %3145 = vmatpush1.bf16.xpose.msra.mxu0 0
        %3146 = vmatprep.mubr.bf16.mxu0 0
        %3147 = vmatmul.mubr.bf16.gmra.mrb[0].mxu0 %v3112
        %v3148 = vpop.f32.mrb[0].mxu0
        %v3149 = vadd.f32 0.0, %v3148
        %v3150 = vpop.f32.mrb[0].mxu0
        %v3151 = vpop.f32.mrb[0].mxu0
        %v3152 = vpop.f32.mrb[0].mxu0
        %3153 = vdwg.mxu0
        %v3154 = vsel %vm2946, %v3149, -inf
        %3155 = vmax.xlane.f32.xlu0 %v3154
        %v3156 = vpop.xlane.xlu0 %3155
        %v3157 = vsub.f32 %v3149, %v3156
        %v3158 = vmul.f32 %v3157, 1.442695
        %v3159 = vpow.pop %v3158
        %v3160 = vsel %vm2946, %v3159, 0.0
        %3161 = vadd.xlane.f32.xlu0 %v3160
        %v3162 = vpop.xlane.xlu0 %3161
        %v3163 = vrcp.pop %v3162
        %v3164 = vmul.f32 %v3159, %v3163
        %v3165 = vpack.c.bf16 %v3164, %v3164
        %v3167 = vsel %vm3015, %v3165, 0
        %v3170 = vand.u32 %v2900, %v3020
        %3172 = vmatprep.subr.bf16.mxu0 0
        %3173 = vmatpush1.bf16.msra.mxu0 %v3170
        %3174 = vmatprep.subr.bf16.mxu0 0
        %3175 = vmatpush1.bf16.msra.mxu0 0
        %3176 = vmatprep.subr.bf16.mxu0 0
        %3177 = vmatpush1.bf16.msra.mxu0 0
        %3178 = vmatprep.subr.bf16.mxu0 0
        %3179 = vmatpush1.bf16.msra.mxu0 0
        %3180 = vmatprep.subr.bf16.mxu0 0
        %3181 = vmatpush1.bf16.msra.mxu0 0
        %3182 = vmatprep.subr.bf16.mxu0 0
        %3183 = vmatpush1.bf16.msra.mxu0 0
        %3184 = vmatprep.subr.bf16.mxu0 0
        %3185 = vmatpush1.bf16.msra.mxu0 0
        %3186 = vmatprep.subr.bf16.mxu0 0
        %3187 = vmatpush1.bf16.msra.mxu0 0
        %3188 = vmatprep.subr.bf16.mxu0 0
        %3189 = vmatpush1.bf16.msra.mxu0 0
        %3190 = vmatprep.subr.bf16.mxu0 0
        %3191 = vmatpush1.bf16.msra.mxu0 0
        %3192 = vmatprep.subr.bf16.mxu0 0
        %3193 = vmatpush1.bf16.msra.mxu0 0
        %3194 = vmatprep.subr.bf16.mxu0 0
        %3195 = vmatpush1.bf16.msra.mxu0 0
        %3196 = vmatprep.subr.bf16.mxu0 0
        %3197 = vmatpush1.bf16.msra.mxu0 0
        %3198 = vmatprep.subr.bf16.mxu0 0
        %3199 = vmatpush1.bf16.msra.mxu0 0
        %3200 = vmatprep.subr.bf16.mxu0 0
        %3201 = vmatpush1.bf16.msra.mxu0 0
        %3202 = vmatprep.subr.bf16.mxu0 0
        %3203 = vmatpush1.bf16.msra.mxu0 0
        %3204 = vmatprep.mubr.bf16.mxu0 0
        %3205 = vmatmul.mubr.bf16.gmra.mrb[0].mxu0 %v3167
        %v3206 = vpop.f32.mrb[0].mxu0
        %v3207 = vadd.f32 0.0, %v3206
        %v3208 = vpop.f32.mrb[0].mxu0
        %v3209 = vpop.f32.mrb[0].mxu0
        %v3210 = vpop.f32.mrb[0].mxu0
        %3211 = vdwg.mxu0
        %v3212 = vadd.f32 %v3105, %v3207
        %v3213 = vpack.c.bf16 %v2764, %v2764
        %v3215 = vsel %vm1213, %v3213, 0
        %3217 = vmatprep.subr.bf16.mxu0 0
        %3218 = vmatpush1.bf16.xpose.msra.mxu0 %v2684
        %3219 = vmatprep.subr.bf16.mxu0 0
        %3220 = vmatpush1.bf16.xpose.msra.mxu0 0
        %3221 = vmatprep.subr.bf16.mxu0 0
        %3222 = vmatpush1.bf16.xpose.msra.mxu0 0
        %3223 = vmatprep.subr.bf16.mxu0 0
        %3224 = vmatpush1.bf16.xpose.msra.mxu0 0
        %3225 = vmatprep.subr.bf16.mxu0 0
        %3226 = vmatpush1.bf16.xpose.msra.mxu0 0
        %3227 = vmatprep.subr.bf16.mxu0 0
        %3228 = vmatpush1.bf16.xpose.msra.mxu0 0
        %3229 = vmatprep.subr.bf16.mxu0 0
        %3230 = vmatpush1.bf16.xpose.msra.mxu0 0
        %3231 = vmatprep.subr.bf16.mxu0 0
        %3232 = vmatpush1.bf16.xpose.msra.mxu0 0
        %3233 = vmatprep.subr.bf16.mxu0 0
        %3234 = vmatpush1.bf16.xpose.msra.mxu0 0
        %3235 = vmatprep.subr.bf16.mxu0 0
        %3236 = vmatpush1.bf16.xpose.msra.mxu0 0
        %3237 = vmatprep.subr.bf16.mxu0 0
        %3238 = vmatpush1.bf16.xpose.msra.mxu0 0
        %3239 = vmatprep.subr.bf16.mxu0 0
        %3240 = vmatpush1.bf16.xpose.msra.mxu0 0
        %3241 = vmatprep.subr.bf16.mxu0 0
        %3242 = vmatpush1.bf16.xpose.msra.mxu0 0
        %3243 = vmatprep.subr.bf16.mxu0 0
        %3244 = vmatpush1.bf16.xpose.msra.mxu0 0
        %3245 = vmatprep.subr.bf16.mxu0 0
        %3246 = vmatpush1.bf16.xpose.msra.mxu0 0
        %3247 = vmatprep.subr.bf16.mxu0 0
        %3248 = vmatpush1.bf16.xpose.msra.mxu0 0
        %3249 = vmatprep.mubr.bf16.mxu0 0
        %3250 = vmatmul.mubr.bf16.gmra.mrb[0].mxu0 %v3215
        %v3251 = vpop.f32.mrb[0].mxu0
        %v3252 = vadd.f32 0.0, %v3251
        %v3253 = vpop.f32.mrb[0].mxu0
        %v3254 = vpop.f32.mrb[0].mxu0
        %v3255 = vpop.f32.mrb[0].mxu0
        %3256 = vdwg.mxu0
        %v3257 = vsel %vm2946, %v3252, -inf
        %3258 = vmax.xlane.f32.xlu0 %v3257
        %v3259 = vpop.xlane.xlu0 %3258
        %v3260 = vsub.f32 %v3252, %v3259
        %v3261 = vmul.f32 %v3260, 1.442695
        %v3262 = vpow.pop %v3261
        %v3263 = vsel %vm2946, %v3262, 0.0
        %3264 = vadd.xlane.f32.xlu0 %v3263
        %v3265 = vpop.xlane.xlu0 %3264
        %v3266 = vrcp.pop %v3265
        %v3267 = vmul.f32 %v3262, %v3266
        %v3268 = vpack.c.bf16 %v3267, %v3267
        %v3270 = vsel %vm3015, %v3268, 0
        %v3273 = vand.u32 %v2901, %v3020
        %3275 = vmatprep.subr.bf16.mxu0 0
        %3276 = vmatpush1.bf16.msra.mxu0 %v3273
        %3277 = vmatprep.subr.bf16.mxu0 0
        %3278 = vmatpush1.bf16.msra.mxu0 0
        %3279 = vmatprep.subr.bf16.mxu0 0
        %3280 = vmatpush1.bf16.msra.mxu0 0
        %3281 = vmatprep.subr.bf16.mxu0 0
        %3282 = vmatpush1.bf16.msra.mxu0 0
        %3283 = vmatprep.subr.bf16.mxu0 0
        %3284 = vmatpush1.bf16.msra.mxu0 0
        %3285 = vmatprep.subr.bf16.mxu0 0
        %3286 = vmatpush1.bf16.msra.mxu0 0
        %3287 = vmatprep.subr.bf16.mxu0 0
        %3288 = vmatpush1.bf16.msra.mxu0 0
        %3289 = vmatprep.subr.bf16.mxu0 0
        %3290 = vmatpush1.bf16.msra.mxu0 0
        %3291 = vmatprep.subr.bf16.mxu0 0
        %3292 = vmatpush1.bf16.msra.mxu0 0
        %3293 = vmatprep.subr.bf16.mxu0 0
        %3294 = vmatpush1.bf16.msra.mxu0 0
        %3295 = vmatprep.subr.bf16.mxu0 0
        %3296 = vmatpush1.bf16.msra.mxu0 0
        %3297 = vmatprep.subr.bf16.mxu0 0
        %3298 = vmatpush1.bf16.msra.mxu0 0
        %3299 = vmatprep.subr.bf16.mxu0 0
        %3300 = vmatpush1.bf16.msra.mxu0 0
        %3301 = vmatprep.subr.bf16.mxu0 0
        %3302 = vmatpush1.bf16.msra.mxu0 0
        %3303 = vmatprep.subr.bf16.mxu0 0
        %3304 = vmatpush1.bf16.msra.mxu0 0
        %3305 = vmatprep.subr.bf16.mxu0 0
        %3306 = vmatpush1.bf16.msra.mxu0 0
        %3307 = vmatprep.mubr.bf16.mxu0 0
        %3308 = vmatmul.mubr.bf16.gmra.mrb[0].mxu0 %v3270
        %v3309 = vpop.f32.mrb[0].mxu0
        %v3310 = vadd.f32 0.0, %v3309
        %v3311 = vpop.f32.mrb[0].mxu0
        %v3312 = vpop.f32.mrb[0].mxu0
        %v3313 = vpop.f32.mrb[0].mxu0
        %3314 = vdwg.mxu0
        %v3315 = vadd.f32 %v3212, %v3310
        %v3316 = vld [vmem:[%s2 + $0x28] ss:$0 sm:$0xff]
        %v3317 = vadd.f32 %v3315, %v3316
        %v3318 = vpack.c.bf16 %v3317, %v3317
        %v3319 = vld [vmem:[#allocation2 + $0x550] sm:$0xff]
        %v3320 = vld [vmem:[#allocation2 + $0x558] sm:$0xff]
        %v3321 = vld [vmem:[#allocation2 + $0x560] sm:$0xf]
        %v3322 = vld [vmem:[#allocation2 + $0x564] sm:$0xff]
        %v3323 = vld [vmem:[#allocation2 + $0x56c] sm:$0xff]
        %v3324 = vld [vmem:[#allocation2 + $0x574] sm:$0xf]
        %v3325 = vld [vmem:[#allocation2 + $0x578] sm:$0xff]
        %v3326 = vld [vmem:[#allocation2 + $0x580] sm:$0xff]
        %v3327 = vld [vmem:[#allocation2 + $0x588] sm:$0xf]
        %v3328 = vld [vmem:[#allocation2 + $0x58c] sm:$0xff]
        %v3329 = vld [vmem:[#allocation2 + $0x594] sm:$0xff]
        %v3330 = vld [vmem:[#allocation2 + $0x59c] sm:$0xf]
        %v3343 = vunpack.c.l.b16 %v3319
        %v3344 = vunpack.c.h.b16 %v3319
        %v3345 = vunpack.c.l.b16 %v3320
        %v3346 = vunpack.c.h.b16 %v3320
        %v3347 = vunpack.c.l.b16 %v3321
        %v3348 = vunpack.c.l.b16 %v3322
        %v3349 = vunpack.c.h.b16 %v3322
        %v3350 = vunpack.c.l.b16 %v3323
        %v3351 = vunpack.c.h.b16 %v3323
        %v3352 = vunpack.c.l.b16 %v3324
        %v3353 = vunpack.c.l.b16 %v3325
        %v3354 = vunpack.c.h.b16 %v3325
        %v3355 = vunpack.c.l.b16 %v3326
        %v3356 = vunpack.c.h.b16 %v3326
        %v3357 = vunpack.c.l.b16 %v3327
        %v3358 = vunpack.c.l.b16 %v3328
        %v3359 = vunpack.c.h.b16 %v3328
        %v3360 = vunpack.c.l.b16 %v3329
        %v3361 = vunpack.c.h.b16 %v3329
        %v3362 = vunpack.c.l.b16 %v3330
        %v3363 = vpack.c.b16 %v3348, %v3343
        %v3364 = vpack.c.b16 %v3349, %v3344
        %v3365 = vpack.c.b16 %v3350, %v3345
        %v3366 = vpack.c.b16 %v3351, %v3346
        %v3367 = vpack.c.b16 %v3352, %v3347
        %v3368 = vpack.c.b16 %v3358, %v3353
        %v3369 = vpack.c.b16 %v3359, %v3354
        %v3370 = vpack.c.b16 %v3360, %v3355
        %v3371 = vpack.c.b16 %v3361, %v3356
        %v3372 = vpack.c.b16 %v3362, %v3357
        %v3384 = vsel %vm1213, %v3318, 0
        %3386 = vmatprep.subr.bf16.mxu0 %v3364
        %3387 = vmatpush1.bf16.msra.mxu0 %v3363
        %3388 = vmatprep.subr.bf16.mxu0 %v3369
        %3389 = vmatpush1.bf16.msra.mxu0 %v3368
        %3390 = vmatprep.subr.bf16.mxu0 0
        %3391 = vmatpush1.bf16.msra.mxu0 0
        %3392 = vmatprep.subr.bf16.mxu0 0
        %3393 = vmatpush1.bf16.msra.mxu0 0
        %3394 = vmatprep.subr.bf16.mxu0 0
        %3395 = vmatpush1.bf16.msra.mxu0 0
        %3396 = vmatprep.subr.bf16.mxu0 0
        %3397 = vmatpush1.bf16.msra.mxu0 0
        %3398 = vmatprep.subr.bf16.mxu0 0
        %3399 = vmatpush1.bf16.msra.mxu0 0
        %3400 = vmatprep.subr.bf16.mxu0 0
        %3401 = vmatpush1.bf16.msra.mxu0 0
        %3402 = vmatprep.subr.bf16.mxu0 0
        %3403 = vmatpush1.bf16.msra.mxu0 0
        %3404 = vmatprep.subr.bf16.mxu0 0
        %3405 = vmatpush1.bf16.msra.mxu0 0
        %3406 = vmatprep.subr.bf16.mxu0 0
        %3407 = vmatpush1.bf16.msra.mxu0 0
        %3408 = vmatprep.subr.bf16.mxu0 0
        %3409 = vmatpush1.bf16.msra.mxu0 0
        %3410 = vmatprep.subr.bf16.mxu0 0
        %3411 = vmatpush1.bf16.msra.mxu0 0
        %3412 = vmatprep.subr.bf16.mxu0 0
        %3413 = vmatpush1.bf16.msra.mxu0 0
        %3414 = vmatprep.subr.bf16.mxu0 0
        %3415 = vmatpush1.bf16.msra.mxu0 0
        %3416 = vmatprep.subr.bf16.mxu0 0
        %3417 = vmatpush1.bf16.msra.mxu0 0
        %3418 = vmatprep.mubr.bf16.mxu0 0
        %3419 = vmatmul.mubr.bf16.gmra.mrb[0].mxu0 %v3384
        %v3420 = vpop.f32.mrb[0].mxu0
        %v3421 = vadd.f32 0.0, %v3420
        %v3422 = vpop.f32.mrb[0].mxu0
        %v3423 = vadd.f32 0.0, %v3422
        %v3424 = vpop.f32.mrb[0].mxu0
        %v3425 = vpop.f32.mrb[0].mxu0
        %3426 = vdwg.mxu0
        %3427 = vmatprep.subr.bf16.mxu0 %v3366
        %3428 = vmatpush1.bf16.msra.mxu0 %v3365
        %3429 = vmatprep.subr.bf16.mxu0 %v3371
        %3430 = vmatpush1.bf16.msra.mxu0 %v3370
        %3431 = vmatprep.subr.bf16.mxu0 0
        %3432 = vmatpush1.bf16.msra.mxu0 0
        %3433 = vmatprep.subr.bf16.mxu0 0
        %3434 = vmatpush1.bf16.msra.mxu0 0
        %3435 = vmatprep.subr.bf16.mxu0 0
        %3436 = vmatpush1.bf16.msra.mxu0 0
        %3437 = vmatprep.subr.bf16.mxu0 0
        %3438 = vmatpush1.bf16.msra.mxu0 0
        %3439 = vmatprep.subr.bf16.mxu0 0
        %3440 = vmatpush1.bf16.msra.mxu0 0
        %3441 = vmatprep.subr.bf16.mxu0 0
        %3442 = vmatpush1.bf16.msra.mxu0 0
        %3443 = vmatprep.subr.bf16.mxu0 0
        %3444 = vmatpush1.bf16.msra.mxu0 0
        %3445 = vmatprep.subr.bf16.mxu0 0
        %3446 = vmatpush1.bf16.msra.mxu0 0
        %3447 = vmatprep.subr.bf16.mxu0 0
        %3448 = vmatpush1.bf16.msra.mxu0 0
        %3449 = vmatprep.subr.bf16.mxu0 0
        %3450 = vmatpush1.bf16.msra.mxu0 0
        %3451 = vmatprep.subr.bf16.mxu0 0
        %3452 = vmatpush1.bf16.msra.mxu0 0
        %3453 = vmatprep.subr.bf16.mxu0 0
        %3454 = vmatpush1.bf16.msra.mxu0 0
        %3455 = vmatprep.subr.bf16.mxu0 0
        %3456 = vmatpush1.bf16.msra.mxu0 0
        %3457 = vmatprep.subr.bf16.mxu0 0
        %3458 = vmatpush1.bf16.msra.mxu0 0
        %3459 = vmatprep.mubr.bf16.mxu0 0
        %3460 = vmatmul.mubr.bf16.gmra.mrb[0].mxu0 %v3384
        %v3461 = vpop.f32.mrb[0].mxu0
        %v3462 = vadd.f32 0.0, %v3461
        %v3463 = vpop.f32.mrb[0].mxu0
        %v3464 = vadd.f32 0.0, %v3463
        %v3465 = vpop.f32.mrb[0].mxu0
        %v3466 = vpop.f32.mrb[0].mxu0
        %3467 = vdwg.mxu0
        %3468 = vmatprep.subr.bf16.mxu0 0
        %3469 = vmatpush1.bf16.msra.mxu0 %v3367
        %3470 = vmatprep.subr.bf16.mxu0 0
        %3471 = vmatpush1.bf16.msra.mxu0 %v3372
        %3472 = vmatprep.subr.bf16.mxu0 0
        %3473 = vmatpush1.bf16.msra.mxu0 0
        %3474 = vmatprep.subr.bf16.mxu0 0
        %3475 = vmatpush1.bf16.msra.mxu0 0
        %3476 = vmatprep.subr.bf16.mxu0 0
        %3477 = vmatpush1.bf16.msra.mxu0 0
        %3478 = vmatprep.subr.bf16.mxu0 0
        %3479 = vmatpush1.bf16.msra.mxu0 0
        %3480 = vmatprep.subr.bf16.mxu0 0
        %3481 = vmatpush1.bf16.msra.mxu0 0
        %3482 = vmatprep.subr.bf16.mxu0 0
        %3483 = vmatpush1.bf16.msra.mxu0 0
        %3484 = vmatprep.subr.bf16.mxu0 0
        %3485 = vmatpush1.bf16.msra.mxu0 0
        %3486 = vmatprep.subr.bf16.mxu0 0
        %3487 = vmatpush1.bf16.msra.mxu0 0
        %3488 = vmatprep.subr.bf16.mxu0 0
        %3489 = vmatpush1.bf16.msra.mxu0 0
        %3490 = vmatprep.subr.bf16.mxu0 0
        %3491 = vmatpush1.bf16.msra.mxu0 0
        %3492 = vmatprep.subr.bf16.mxu0 0
        %3493 = vmatpush1.bf16.msra.mxu0 0
        %3494 = vmatprep.subr.bf16.mxu0 0
        %3495 = vmatpush1.bf16.msra.mxu0 0
        %3496 = vmatprep.subr.bf16.mxu0 0
        %3497 = vmatpush1.bf16.msra.mxu0 0
        %3498 = vmatprep.subr.bf16.mxu0 0
        %3499 = vmatpush1.bf16.msra.mxu0 0
        %3500 = vmatprep.mubr.bf16.mxu0 0
        %3501 = vmatmul.mubr.bf16.gmra.mrb[0].mxu0 %v3384
        %v3502 = vpop.f32.mrb[0].mxu0
        %v3503 = vadd.f32 0.0, %v3502
        %v3504 = vpop.f32.mrb[0].mxu0
        %v3505 = vpop.f32.mrb[0].mxu0
        %v3506 = vpop.f32.mrb[0].mxu0
        %3507 = vdwg.mxu0
        %v3508 = vld [vmem:[%s2 + $0x29] ss:$0 sm:$0xff]
        %v3509 = vadd.f32 %v3508, 0.0
        %v3510 = vadd.f32 %v3509, %v3421
        %v3512 = vrot.slane %v3423, 1
        %v3514 = vadd.f32 %v3510, %v3512
        %v3516 = vrot.slane %v3462, 2
        %v3518 = vadd.f32 %v3514, %v3516
        %v3520 = vrot.slane %v3464, 3
        %v3522 = vadd.f32 %v3518, %v3520
        %v3524 = vrot.slane %v3503, 4
        %v3526 = vadd.f32 %v3522, %v3524
        %3527 = vst [vmem:[%s175] sm:$0x1] %v3526
        %s3528 = sand.u32 %s94, 1
        %s3529 = scalar_lea.sflag [#allocation4], %s3528
        %s3530 = sand.u32 %s94, 1
        %s3531 = scalar_lea.vmem [#allocation5], %s3530
        // Predicated region
        $region37: #{treasure_net_forward.1} parent=31 // pred_check
          %p3532 = pneg %p104
        $region38: #{treasure_net_forward.1} parent=31 // pred_check_branch
          %3534 = sbr.rel (%p3532) target = $region40
        $region39: #{treasure_net_forward.1} parent=31 // pred_region
          %s3536 = ssub.s32 16, 16
          %3537 = vsyncadd %s3529, %s3536
          %s3538 = smul.addr %s18, 16
          %s3539 = scalar_lea.hbm %s3, %s3538
          %s3541 = sshll.u32 %s3531, 4
          %s3542 = int_to_ptr.vmem [resolvable:$true] %s3541
          %3544 = dma.vmem_to_hbm [thread:$0]  %s3542, 16, %s3539, %s3529
        $region40: #{treasure_net_forward.1} parent=31 // pred_fallthru
          _
      $region32: #{treasure_net_forward.1} parent=5 // pred_fallthru
        _
      %p3545 = scmp.le.s32.totalorder 2, %s13
      // Predicated region
      $region41: #{treasure_net_forward.1} parent=5 // pred_check
        %p3546 = pneg %p3545
      $region42: #{treasure_net_forward.1} parent=5 // pred_check_branch
        %3548 = sbr.rel (%p3546) target = $region44
      $region43: #{treasure_net_forward.1} parent=5 // pred_region
        %s3549 = ssub.s32 %s13, 2
        // Predicated region
        $region45: #{treasure_net_forward.1} parent=43 // pred_check
          %p3550 = pneg %p110
        $region46: #{treasure_net_forward.1} parent=43 // pred_check_branch
          %3552 = sbr.rel (%p3550) target = $region48
        $region47: #{treasure_net_forward.1} parent=43 // pred_region
          %s3553 = sand.u32 %s95, 1
          %s3554 = scalar_lea.sflag [#allocation4], %s3553
          %s3555 = sand.u32 %s95, 1
          %s3556 = scalar_lea.vmem [#allocation5], %s3555
          %3557 = dma.done %s3554, 16
        $region48: #{treasure_net_forward.1} parent=43 // pred_fallthru
          _
      $region44: #{treasure_net_forward.1} parent=5 // pred_fallthru
        _
    $region6: #{treasure_net_forward.1} parent=1 // loop_footer
      %s17 = sadd.s32 1, %s13
    $region7: #{treasure_net_forward.1} parent=1 // loop_footer_branch
      %12 = sbr.rel target = $region3
    $region8: #{treasure_net_forward.1} parent=1 // loop_exit
      _
    %3558 = vsyncpa [#allocation3], 1
    %s3559 = scalar_lea.sflag [#allocation3], 1
    %3560 = vsyncpa %s3559, 1
    %3561 = vsyncpa [#allocation4], 1
    %s3562 = scalar_lea.sflag [#allocation4], 1
    %3563 = vsyncpa %s3562, 1

</llo_original>
